<compile_context>
chip_gen: v6e
topology: v6e:2x2x1
jax: 0.10.0
libtpu: 0.0.40
codegen_flags: <defaults>
</compile_context>

<pallas_src>
import jax
import jax.numpy as jnp
from jax.experimental import pallas as pl
from jax.experimental.pallas import tpu as pltpu


def _round_up(x, m):
    return (x + m - 1) // m * m


# ----------------------------------------------------------------------------
# In-kernel helpers
# ----------------------------------------------------------------------------

def _lstm_gates(h, c, gates):
    """LSTM cell update from pre-activation gates, chunk order (i, f, o, g)."""
    R = h.shape[-1]
    i_g = jax.nn.sigmoid(gates[:, 0 * R:1 * R])
    f_g = jax.nn.sigmoid(gates[:, 1 * R:2 * R])
    o_g = jax.nn.sigmoid(gates[:, 2 * R:3 * R])
    g_t = jnp.tanh(gates[:, 3 * R:4 * R])
    c_new = f_g * c + i_g * g_t
    h_new = o_g * jnp.tanh(c_new)
    return h_new, c_new


def _soft_attention(feats, feats_proj, h, h2att_w, h2att_b, alpha_w_col):
    """Additive (Bahdanau) attention.
    feats: (B, L, F) f32, feats_proj: (B, L, H) f32, h: (B, R) f32,
    h2att_w: (R, H) bf16, h2att_b: (1, H) f32, alpha_w_col: (H, 1) f32."""
    B, L, _ = feats.shape
    H = feats_proj.shape[-1]
    h_att = jnp.dot(h.astype(jnp.bfloat16), h2att_w,
                    preferred_element_type=jnp.float32) + h2att_b      # (B, H)
    e = jnp.tanh(feats_proj + h_att[:, None, :])                       # (B, L, H)
    # score as an MXU matmul instead of elementwise-mul + cross-lane reduce
    score = jnp.dot(e.reshape(B * L, H).astype(jnp.bfloat16),
                    alpha_w_col.astype(jnp.bfloat16),
                    preferred_element_type=jnp.float32).reshape(B, L)  # (B, L)
    score = score - jnp.max(score, axis=-1, keepdims=True)
    p = jnp.exp(score)
    alpha = p * pl.reciprocal(jnp.sum(p, axis=-1, keepdims=True), approx=True)
    att_res = jnp.sum(alpha[:, :, None] * feats, axis=1)               # (B, F)
    return att_res


# ----------------------------------------------------------------------------
# Fused review / reasoning kernel  (grid over review steps)
# ----------------------------------------------------------------------------

def _review_kernel(fc_ref, fcw_ref, fcb_ref, att_ref,
                   a2aw_ref, a2ab_ref, h2aw_ref, h2ab_ref, alw_ref,
                   gw_ref, gb_ref, rw_ref, rb_ref,
                   thought_ref, reason_ref, h_out_ref, c_out_ref,
                   h_sc, c_sc, rmax_sc):
    s = pl.program_id(0)
    att = att_ref[...]                       # (B, L, F) f32, stays resident in VMEM
    B, L, F = att.shape
    H = a2aw_ref.shape[-1]

    @pl.when(s == 0)
    def _init():
        # fc2h folded into the review kernel's first step
        h0 = jnp.dot(fc_ref[...].astype(jnp.bfloat16), fcw_ref[...],
                     preferred_element_type=jnp.float32) + fcb_ref[...]
        h_sc[...] = h0
        c_sc[...] = h0

    h = h_sc[...]
    c = c_sc[...]

    # per-step att2att(att_feats) projection, computed in VMEM (no HBM round-trip)
    attp = (jnp.dot(att.astype(jnp.bfloat16).reshape(B * L, F), a2aw_ref[0],
                    preferred_element_type=jnp.float32).reshape(B, L, H)
            + a2ab_ref[0])

    att_res = _soft_attention(att, attp, h, h2aw_ref[0], h2ab_ref[0], alw_ref[0])

    # single fused gate matmul: [att_res, h] @ [i2h ; h2h]
    x_cat = jnp.concatenate([att_res, h], axis=1).astype(jnp.bfloat16)
    gates = jnp.dot(x_cat, gw_ref[0], preferred_element_type=jnp.float32) + gb_ref[0]
    h_new, c_new = _lstm_gates(h, c, gates)

    h_sc[...] = h_new
    c_sc[...] = c_new
    thought_ref[0] = h_new                   # (B, R) slice of the (S, B, R) output

    # reason_linear + running max over review steps, folded into this kernel
    rm = jnp.dot(h_new.astype(jnp.bfloat16), rw_ref[...],
                 preferred_element_type=jnp.float32) + rb_ref[...]      # (B, TWpad)

    @pl.when(s == 0)
    def _rinit():
        rmax_sc[...] = rm

    @pl.when(s > 0)
    def _racc():
        rmax_sc[...] = jnp.maximum(rmax_sc[...], rm)

    # constant-index outputs: VMEM resident, written back to HBM once at grid end
    h_out_ref[...] = h_new
    c_out_ref[...] = c_new
    reason_ref[...] = rmax_sc[...]


def review_pallas(fc_feats, att_feats, p, num_review_steps):
    B, Ffc = fc_feats.shape
    L, F = att_feats.shape[1], att_feats.shape[2]
    R = p["fc2h_b"].shape[1]
    H = p["rs_h2att_w"].shape[2]
    TWp = p["reason_w"].shape[1]
    G = p["rs_gates_w"].shape[1]
    G4 = p["rs_gates_w"].shape[2]
    S = num_review_steps

    def const(shape):
        return pl.BlockSpec(shape, lambda s, _n=len(shape): (0,) * _n)

    def step3(d1, d2):
        return pl.BlockSpec((1, d1, d2), lambda s: (s, 0, 0))

    grid_spec = pltpu.PrefetchScalarGridSpec(
        num_scalar_prefetch=0,
        grid=(S,),
        in_specs=[
            const((B, Ffc)), const((Ffc, R)), const((1, R)),
            const((B, L, F)),
            step3(F, H), step3(1, H), step3(R, H), step3(1, H), step3(H, 1),
            step3(G, G4), step3(1, G4),
            const((R, TWp)), const((1, TWp)),
        ],
        out_specs=[
            pl.BlockSpec((1, B, R), lambda s: (s, 0, 0)),   # thought vectors (S, B, R)
            const((B, TWp)),                                # reason (running max)
            const((B, R)), const((B, R)),                   # final h, c
        ],
        scratch_shapes=[
            pltpu.VMEM((B, R), jnp.float32),
            pltpu.VMEM((B, R), jnp.float32),
            pltpu.VMEM((B, TWp), jnp.float32),
        ],
    )
    out_shapes = (
        jax.ShapeDtypeStruct((S, B, R), jnp.float32),
        jax.ShapeDtypeStruct((B, TWp), jnp.float32),
        jax.ShapeDtypeStruct((B, R), jnp.float32),
        jax.ShapeDtypeStruct((B, R), jnp.float32),
    )
    return pl.pallas_call(
        _review_kernel,
        out_shape=out_shapes,
        grid_spec=grid_spec,
        compiler_params=pltpu.CompilerParams(dimension_semantics=("arbitrary",)),
    )(fc_feats, p["fc2h_w"], p["fc2h_b"], att_feats,
      p["rs_att2att_w"], p["rs_att2att_b"], p["rs_h2att_w"], p["rs_h2att_b"],
      p["rs_alpha_w"], p["rs_gates_w"], p["rs_gate_b"],
      p["reason_w"], p["reason_b"])


# ----------------------------------------------------------------------------
# Fused decoder kernel  (grid over time steps; logit + log-softmax fused in)
# ----------------------------------------------------------------------------

def _decoder_kernel(xt_ref, tv_ref, hin_ref, cin_ref,
                    a2aw_ref, a2ab_ref, h2aw_ref, h2ab_ref, alw_ref,
                    gw_ref, gb_ref, lw_ref, lb_ref,
                    logp_ref,
                    h_sc, c_sc, tvp_sc):
    t = pl.program_id(0)
    tv = tv_ref[...]                         # (B, S, R) thought vectors, resident
    B, S, R = tv.shape
    H = tvp_sc.shape[-1]

    @pl.when(t == 0)
    def _init():
        h_sc[...] = hin_ref[...]
        c_sc[...] = cin_ref[...]
        # decoder att2att projection of thought vectors, computed once
        tvp_sc[...] = (jnp.dot(tv.astype(jnp.bfloat16).reshape(B * S, R), a2aw_ref[...],
                               preferred_element_type=jnp.float32).reshape(B, S, H)
                       + a2ab_ref[...])

    xt = xt_ref[0]                           # (B, E) embedded token for this step
    h = h_sc[...]
    c = c_sc[...]

    att_res = _soft_attention(tv, tvp_sc[...], h,
                              h2aw_ref[...], h2ab_ref[...], alw_ref[...])

    # single fused gate matmul: [xt, h, att_res] @ [x2h ; h2h ; a2h]
    x_cat = jnp.concatenate([xt, h, att_res], axis=1).astype(jnp.bfloat16)
    gates = jnp.dot(x_cat, gw_ref[...], preferred_element_type=jnp.float32) + gb_ref[...]
    h_new, c_new = _lstm_gates(h, c, gates)
    h_sc[...] = h_new
    c_sc[...] = c_new

    # logits + log-softmax over the padded, lane-dense (128) vocab axis.
    # Padded columns carry a -1e30 bias, so they contribute 0 to the LSE.
    y = jnp.dot(h_new.astype(jnp.bfloat16), lw_ref[...],
                preferred_element_type=jnp.float32) + lb_ref[...]
    z = y - jnp.max(y, axis=-1, keepdims=True)
    lse = jnp.log(jnp.sum(jnp.exp(z), axis=-1, keepdims=True))
    logp_ref[0] = z - lse


def decoder_pallas(xt_all, thought_vectors, h0, c0, p):
    T, B, E = xt_all.shape
    S, R = thought_vectors.shape[1], thought_vectors.shape[2]
    H = p["dec_h2att_w"].shape[1]
    Vp = p["logit_w"].shape[1]
    G = p["dec_gates_w"].shape[0]
    G4 = p["dec_gates_w"].shape[1]

    def const(shape):
        return pl.BlockSpec(shape, lambda t, _n=len(shape): (0,) * _n)

    grid_spec = pltpu.PrefetchScalarGridSpec(
        num_scalar_prefetch=0,
        grid=(T,),
        in_specs=[
            pl.BlockSpec((1, B, E), lambda t: (t, 0, 0)),   # per-step embedded token
            const((B, S, R)), const((B, R)), const((B, R)),
            const((R, H)), const((1, H)), const((R, H)), const((1, H)), const((H, 1)),
            const((G, G4)), const((1, G4)),
            const((R, Vp)), const((1, Vp)),
        ],
        out_specs=pl.BlockSpec((1, B, Vp), lambda t: (t, 0, 0)),
        scratch_shapes=[
            pltpu.VMEM((B, R), jnp.float32),
            pltpu.VMEM((B, R), jnp.float32),
            pltpu.VMEM((B, S, H), jnp.float32),
        ],
    )
    return pl.pallas_call(
        _decoder_kernel,
        out_shape=jax.ShapeDtypeStruct((T, B, Vp), jnp.float32),
        grid_spec=grid_spec,
        compiler_params=pltpu.CompilerParams(dimension_semantics=("arbitrary",)),
    )(xt_all, thought_vectors, h0, c0,
      p["dec_att2att_w"], p["dec_att2att_b"], p["dec_h2att_w"], p["dec_h2att_b"],
      p["dec_alpha_w"], p["dec_gates_w"], p["dec_gate_b"],
      p["logit_w"], p["logit_b"])


# ----------------------------------------------------------------------------
# Parameter init (deterministic; weights stored (in, out); matmul weights bf16)
# ----------------------------------------------------------------------------

def init_params(key, cfg):
    R = cfg["rnn_size"]
    E = cfg["input_encoding_size"]
    F = cfg["att_feat_size"]
    H = cfg["att_hid_size"]
    V = cfg["vocab_size"] + 1
    S = cfg["num_review_steps"]
    TW = cfg["top_words_count"]
    Ffc = cfg["fc_feat_size"]
    Vp = _round_up(V, 128)
    TWp = _round_up(TW, 128)

    keys = iter(jax.random.split(key, 64))

    def u(shape):
        return jax.random.uniform(next(keys), shape, jnp.float32, -0.1, 0.1)

    bf = lambda x: x.astype(jnp.bfloat16)

    # review-step weights stacked along a leading step axis; gate weights concatenated
    rs_i2h = u((S, F, 4 * R))
    rs_h2h = u((S, R, 4 * R))

    params = dict(
        fc2h_w=bf(u((Ffc, R))), fc2h_b=u((1, R)),
        embed=u((V, E)),
        # review cores
        rs_att2att_w=bf(u((S, F, H))), rs_att2att_b=u((S, 1, H)),
        rs_h2att_w=bf(u((S, R, H))), rs_h2att_b=u((S, 1, H)),
        rs_alpha_w=u((S, H, 1)),
        rs_gates_w=bf(jnp.concatenate([rs_i2h, rs_h2h], axis=1)),   # (S, F+R, 4R)
        rs_gate_b=u((S, 1, 4 * R)),
        # reason head (lane-padded to 128, sliced back outside)
        reason_w=bf(jnp.pad(u((R, TW)), ((0, 0), (0, TWp - TW)))),
        reason_b=jnp.pad(u((1, TW)), ((0, 0), (0, TWp - TW))),
        # decoder core (gate weights concatenated: x2h ; h2h ; a2h)
        dec_att2att_w=bf(u((R, H))), dec_att2att_b=u((1, H)),
        dec_h2att_w=bf(u((R, H))), dec_h2att_b=u((1, H)),
        dec_alpha_w=u((H, 1)),
        dec_gates_w=bf(jnp.concatenate([u((E, 4 * R)), u((R, 4 * R)), u((R, 4 * R))],
                                       axis=0)),                    # (E+2R, 4R)
        dec_gate_b=u((1, 4 * R)),
        # logit head, vocab padded to a lane-dense 128 (padded cols masked via bias)
        logit_w=bf(jnp.pad(u((R, V)), ((0, 0), (0, Vp - V)))),
        logit_b=jnp.pad(jnp.zeros((1, V), jnp.float32), ((0, 0), (0, Vp - V)),
                        constant_values=-1e30),                     # logit.bias.fill_(0)
    )
    return params


# ----------------------------------------------------------------------------
# Forward pass (ss_prob = 0.0, use_mos = False, eval-mode dropout)
# ----------------------------------------------------------------------------

def reviewnet_forward(params, fc_feats, att_feats, seq, cfg):
    V = cfg["vocab_size"] + 1
    TW = cfg["top_words_count"]
    S = cfg["num_review_steps"]

    # --- fused review / reasoning phase (one kernel, grid over review steps) ---
    thought_svr, reason_pad, h, c = review_pallas(fc_feats, att_feats, params, S)
    thought_vectors = jnp.transpose(thought_svr, (1, 0, 2))       # (B, S, R)
    reason_pred = reason_pad[:, :TW]

    # --- fused decoder (one kernel, grid over time steps) ---
    # TODO(synk): the PyTorch forward breaks when an all-zero token column appears
    # (i >= 1 and seq[:, i].sum() == 0). That per-step host sync is removed here; we
    # decode the full static seq_length, which is identical whenever no such column
    # exists (as in this demo and any padded-with-nonzero batch).
    xt_all = jnp.transpose(params["embed"][seq], (1, 0, 2))       # (T, B, E), one gather
    logp_tbv = decoder_pallas(xt_all, thought_vectors, h, c, params)
    outputs = jnp.transpose(logp_tbv, (1, 0, 2))[:, :, :V]        # (B, T, vocab+1)
    return outputs, reason_pred


# ----------------------------------------------------------------------------
# Demo
# ----------------------------------------------------------------------------

if __name__ == "__main__":
    cfg = dict(
        vocab_size=50,
        input_encoding_size=32,
        rnn_size=32,
        fc_feat_size=64,
        att_feat_size=32,
        att_num=16,
        att_hid_size=32,
        num_review_steps=4,
        top_words_count=16,
        seq_length=6,
    )
    B = 4

    root = jax.random.PRNGKey(0)
    k_param, k_fc, k_att, k_seq = jax.random.split(root, 4)

    params = init_params(k_param, cfg)
    fc_feats = jax.random.normal(k_fc, (B, cfg["fc_feat_size"]), jnp.float32)
    att_feats = jax.random.normal(k_att, (B, cfg["att_num"], cfg["att_feat_size"]),
                                  jnp.float32)
    seq = jax.random.randint(k_seq, (B, cfg["seq_length"]), 1, cfg["vocab_size"] + 1,
                             jnp.int32)

    fwd = jax.jit(lambda p, f, a, s: reviewnet_forward(p, f, a, s, cfg))
    outputs, reason_pred = fwd(params, fc_feats, att_feats, seq)
    outputs = jax.block_until_ready(outputs)
    reason_pred = jax.block_until_ready(reason_pred)

    assert outputs.shape == (B, cfg["seq_length"], cfg["vocab_size"] + 1)
    assert reason_pred.shape == (B, cfg["top_words_count"])
    assert bool(jnp.all(jnp.isfinite(outputs)))
    assert bool(jnp.all(jnp.isfinite(reason_pred)))
    # log-softmax rows must (approximately) sum to 1 in prob space
    assert bool(jnp.all(jnp.abs(jnp.sum(jnp.exp(outputs), axis=-1) - 1.0) < 1e-3))

    print("KERNEL_OK")
</pallas_src>

<mosaic_0001>
module attributes {stable_mosaic.version = 11 : i64} {
  func.func @_review_kernel(%arg0: i32, %arg1: memref<4x64xf32, #tpu.memory_space<vmem>>, %arg2: memref<64x32xbf16, #tpu.memory_space<vmem>>, %arg3: memref<1x32xf32, #tpu.memory_space<vmem>>, %arg4: memref<4x16x32xf32, #tpu.memory_space<vmem>>, %arg5: memref<1x32x32xbf16, #tpu.memory_space<vmem>>, %arg6: memref<1x1x32xf32, #tpu.memory_space<vmem>>, %arg7: memref<1x32x32xbf16, #tpu.memory_space<vmem>>, %arg8: memref<1x1x32xf32, #tpu.memory_space<vmem>>, %arg9: memref<1x32x1xf32, #tpu.memory_space<vmem>>, %arg10: memref<1x64x128xbf16, #tpu.memory_space<vmem>>, %arg11: memref<1x1x128xf32, #tpu.memory_space<vmem>>, %arg12: memref<32x128xbf16, #tpu.memory_space<vmem>>, %arg13: memref<1x128xf32, #tpu.memory_space<vmem>>, %arg14: memref<1x4x32xf32, #tpu.memory_space<vmem>>, %arg15: memref<4x128xf32, #tpu.memory_space<vmem>>, %arg16: memref<4x32xf32, #tpu.memory_space<vmem>>, %arg17: memref<4x32xf32, #tpu.memory_space<vmem>>, %arg18: memref<4x32xf32, #tpu.memory_space<vmem>>, %arg19: memref<4x32xf32, #tpu.memory_space<vmem>>, %arg20: memref<4x128xf32, #tpu.memory_space<vmem>>) attributes {dimension_semantics = [#tpu.dimension_semantics<arbitrary>], iteration_bounds = array<i64: 4>, scalar_prefetch = 0 : i64, scratch_operands = 3 : i64, tpu.core_type = #tpu.core_type<tc>, window_params = [{pipeline_mode = #tpu.pipeline_mode<synchronous>, transform_indices = @transform_0, window_bounds = array<i64: 4, 64>}, {pipeline_mode = #tpu.pipeline_mode<synchronous>, transform_indices = @transform_1, window_bounds = array<i64: 64, 32>}, {pipeline_mode = #tpu.pipeline_mode<synchronous>, transform_indices = @transform_2, window_bounds = array<i64: 1, 32>}, {pipeline_mode = #tpu.pipeline_mode<synchronous>, transform_indices = @transform_3, window_bounds = array<i64: 4, 16, 32>}, {transform_indices = @transform_4, window_bounds = array<i64: 1, 32, 32>}, {transform_indices = @transform_5, window_bounds = array<i64: 1, 1, 32>}, {transform_indices = @transform_6, window_bounds = array<i64: 1, 32, 32>}, {transform_indices = @transform_7, window_bounds = array<i64: 1, 1, 32>}, {transform_indices = @transform_8, window_bounds = array<i64: 1, 32, 1>}, {transform_indices = @transform_9, window_bounds = array<i64: 1, 64, 128>}, {transform_indices = @transform_10, window_bounds = array<i64: 1, 1, 128>}, {pipeline_mode = #tpu.pipeline_mode<synchronous>, transform_indices = @transform_11, window_bounds = array<i64: 32, 128>}, {pipeline_mode = #tpu.pipeline_mode<synchronous>, transform_indices = @transform_12, window_bounds = array<i64: 1, 128>}, {transform_indices = @transform_13, window_bounds = array<i64: 1, 4, 32>}, {pipeline_mode = #tpu.pipeline_mode<synchronous>, transform_indices = @transform_14, window_bounds = array<i64: 4, 128>}, {pipeline_mode = #tpu.pipeline_mode<synchronous>, transform_indices = @transform_15, window_bounds = array<i64: 4, 32>}, {pipeline_mode = #tpu.pipeline_mode<synchronous>, transform_indices = @transform_16, window_bounds = array<i64: 4, 32>}]} {
    %c0 = arith.constant 0 : index
    %c0_0 = arith.constant 0 : index
    %c0_1 = arith.constant 0 : index
    %0 = vector.load %arg4[%c0, %c0_0, %c0_1] : memref<4x16x32xf32, #tpu.memory_space<vmem>>, vector<4x16x32xf32>
    %c0_i32 = arith.constant 0 : i32
    %1 = arith.cmpi eq, %arg0, %c0_i32 : i32
    %2 = arith.extui %1 : i1 to i32
    %c0_i32_2 = arith.constant 0 : i32
    %3 = arith.cmpi ne, %2, %c0_i32_2 : i32
    scf.if %3 {
      %c0_61 = arith.constant 0 : index
      %c0_62 = arith.constant 0 : index
      %105 = vector.load %arg1[%c0_61, %c0_62] : memref<4x64xf32, #tpu.memory_space<vmem>>, vector<4x64xf32>
      %106 = arith.truncf %105 : vector<4x64xf32> to vector<4x64xbf16>
      %c0_63 = arith.constant 0 : index
      %c0_64 = arith.constant 0 : index
      %107 = vector.load %arg2[%c0_63, %c0_64] : memref<64x32xbf16, #tpu.memory_space<vmem>>, vector<64x32xbf16>
      %cst_65 = arith.constant dense<0.000000e+00> : vector<4x32xf32>
      %108 = tpu.matmul %106, %107, %cst_65 {dimension_numbers = #tpu.dot_dimension_numbers<[1], [0], [0], [1], [0, 0, 1, 1], [], []>} : vector<4x64xbf16>, vector<64x32xbf16>, vector<4x32xf32> -> vector<4x32xf32>
      %c0_66 = arith.constant 0 : index
      %c0_67 = arith.constant 0 : index
      %109 = vector.load %arg3[%c0_66, %c0_67] : memref<1x32xf32, #tpu.memory_space<vmem>>, vector<1x32xf32>
      %110 = vector.broadcast %109 : vector<1x32xf32> to vector<4x32xf32>
      %111 = arith.addf %108, %110 : vector<4x32xf32>
      %c0_68 = arith.constant 0 : index
      %c0_69 = arith.constant 0 : index
      %112 = vector.load %arg18[%c0_68, %c0_69] : memref<4x32xf32, #tpu.memory_space<vmem>>, vector<4x32xf32>
      tpu.vector_store %arg18[%c0_68, %c0_69], %111 {strides = array<i32>} : memref<4x32xf32, #tpu.memory_space<vmem>>, vector<4x32xf32>,
      %c0_70 = arith.constant 0 : index
      %c0_71 = arith.constant 0 : index
      %113 = vector.load %arg19[%c0_70, %c0_71] : memref<4x32xf32, #tpu.memory_space<vmem>>, vector<4x32xf32>
      tpu.vector_store %arg19[%c0_70, %c0_71], %111 {strides = array<i32>} : memref<4x32xf32, #tpu.memory_space<vmem>>, vector<4x32xf32>,
    } else {
    }
    %c0_3 = arith.constant 0 : index
    %c0_4 = arith.constant 0 : index
    %4 = vector.load %arg18[%c0_3, %c0_4] : memref<4x32xf32, #tpu.memory_space<vmem>>, vector<4x32xf32>
    %c0_5 = arith.constant 0 : index
    %c0_6 = arith.constant 0 : index
    %5 = vector.load %arg19[%c0_5, %c0_6] : memref<4x32xf32, #tpu.memory_space<vmem>>, vector<4x32xf32>
    %6 = arith.truncf %0 : vector<4x16x32xf32> to vector<4x16x32xbf16>
    %7 = vector.shape_cast %6 : vector<4x16x32xbf16> to vector<64x32xbf16>
    %c0_7 = arith.constant 0 : index
    %c0_8 = arith.constant 0 : index
    %c0_9 = arith.constant 0 : index
    %8 = vector.load %arg5[%c0_7, %c0_8, %c0_9] : memref<1x32x32xbf16, #tpu.memory_space<vmem>>, vector<1x32x32xbf16>
    %9 = vector.shape_cast %8 : vector<1x32x32xbf16> to vector<32x32xbf16>
    %cst = arith.constant dense<0.000000e+00> : vector<64x32xf32>
    %10 = tpu.matmul %7, %9, %cst {dimension_numbers = #tpu.dot_dimension_numbers<[1], [0], [0], [1], [0, 0, 1, 1], [], []>} : vector<64x32xbf16>, vector<32x32xbf16>, vector<64x32xf32> -> vector<64x32xf32>
    %11 = vector.shape_cast %10 : vector<64x32xf32> to vector<4x16x32xf32>
    %c0_10 = arith.constant 0 : index
    %c0_11 = arith.constant 0 : index
    %c0_12 = arith.constant 0 : index
    %12 = vector.load %arg6[%c0_10, %c0_11, %c0_12] : memref<1x1x32xf32, #tpu.memory_space<vmem>>, vector<1x1x32xf32>
    %13 = vector.shape_cast %12 : vector<1x1x32xf32> to vector<1x32xf32>
    %14 = vector.shape_cast %13 : vector<1x32xf32> to vector<1x1x32xf32>
    %15 = vector.broadcast %14 : vector<1x1x32xf32> to vector<4x16x32xf32>
    %16 = arith.addf %11, %15 : vector<4x16x32xf32>
    %c0_13 = arith.constant 0 : index
    %c0_14 = arith.constant 0 : index
    %c0_15 = arith.constant 0 : index
    %17 = vector.load %arg7[%c0_13, %c0_14, %c0_15] : memref<1x32x32xbf16, #tpu.memory_space<vmem>>, vector<1x32x32xbf16>
    %18 = vector.shape_cast %17 : vector<1x32x32xbf16> to vector<32x32xbf16>
    %c0_16 = arith.constant 0 : index
    %c0_17 = arith.constant 0 : index
    %c0_18 = arith.constant 0 : index
    %19 = vector.load %arg8[%c0_16, %c0_17, %c0_18] : memref<1x1x32xf32, #tpu.memory_space<vmem>>, vector<1x1x32xf32>
    %20 = vector.shape_cast %19 : vector<1x1x32xf32> to vector<1x32xf32>
    %c0_19 = arith.constant 0 : index
    %c0_20 = arith.constant 0 : index
    %c0_21 = arith.constant 0 : index
    %21 = vector.load %arg9[%c0_19, %c0_20, %c0_21] : memref<1x32x1xf32, #tpu.memory_space<vmem>>, vector<1x32x1xf32>
    %22 = vector.shape_cast %21 : vector<1x32x1xf32> to vector<32x1xf32>
    %23 = arith.truncf %4 : vector<4x32xf32> to vector<4x32xbf16>
    %cst_22 = arith.constant dense<0.000000e+00> : vector<4x32xf32>
    %24 = tpu.matmul %23, %18, %cst_22 {dimension_numbers = #tpu.dot_dimension_numbers<[1], [0], [0], [1], [0, 0, 1, 1], [], []>} : vector<4x32xbf16>, vector<32x32xbf16>, vector<4x32xf32> -> vector<4x32xf32>
    %25 = vector.broadcast %20 : vector<1x32xf32> to vector<4x32xf32>
    %26 = arith.addf %24, %25 : vector<4x32xf32>
    %27 = vector.shape_cast %26 : vector<4x32xf32> to vector<4x1x32xf32>
    %28 = vector.broadcast %27 : vector<4x1x32xf32> to vector<4x16x32xf32>
    %29 = arith.addf %16, %28 : vector<4x16x32xf32>
    %30 = math.tanh %29 : vector<4x16x32xf32>
    %31 = vector.shape_cast %30 : vector<4x16x32xf32> to vector<64x32xf32>
    %32 = arith.truncf %31 : vector<64x32xf32> to vector<64x32xbf16>
    %33 = arith.truncf %22 : vector<32x1xf32> to vector<32x1xbf16>
    %cst_23 = arith.constant dense<0.000000e+00> : vector<64x1xf32>
    %34 = tpu.matmul %32, %33, %cst_23 {dimension_numbers = #tpu.dot_dimension_numbers<[1], [0], [0], [1], [0, 0, 1, 1], [], []>} : vector<64x32xbf16>, vector<32x1xbf16>, vector<64x1xf32> -> vector<64x1xf32>
    %35 = vector.shape_cast %34 : vector<64x1xf32> to vector<4x16xf32>
    %cst_24 = arith.constant dense<0xFF800000> : vector<4xf32>
    %36 = vector.multi_reduction <maximumf>, %35, %cst_24 [1] : vector<4x16xf32> to vector<4xf32>
    %37 = vector.shape_cast %36 : vector<4xf32> to vector<4x1xf32>
    %38 = vector.broadcast %37 : vector<4x1xf32> to vector<4x16xf32>
    %39 = arith.subf %35, %38 : vector<4x16xf32>
    %40 = math.exp %39 : vector<4x16xf32>
    %cst_25 = arith.constant dense<0.000000e+00> : vector<4xf32>
    %41 = vector.multi_reduction <add>, %40, %cst_25 [1] : vector<4x16xf32> to vector<4xf32>
    %42 = vector.shape_cast %41 : vector<4xf32> to vector<4x1xf32>
    %43 = tpu.reciprocal %42 {approx = true} : vector<4x1xf32> -> vector<4x1xf32>
    %44 = vector.broadcast %43 : vector<4x1xf32> to vector<4x16xf32>
    %45 = arith.mulf %40, %44 : vector<4x16xf32>
    %46 = vector.shape_cast %45 : vector<4x16xf32> to vector<4x16x1xf32>
    %47 = vector.broadcast %46 : vector<4x16x1xf32> to vector<4x16x32xf32>
    %48 = arith.mulf %47, %0 : vector<4x16x32xf32>
    %cst_26 = arith.constant dense<0.000000e+00> : vector<4x32xf32>
    %49 = vector.multi_reduction <add>, %48, %cst_26 [1] : vector<4x16x32xf32> to vector<4x32xf32>
    %50 = tpu.concatenate %49, %4 in 1 : vector<4x32xf32>, vector<4x32xf32> -> vector<4x64xf32>
    %51 = arith.truncf %50 : vector<4x64xf32> to vector<4x64xbf16>
    %c0_27 = arith.constant 0 : index
    %c0_28 = arith.constant 0 : index
    %c0_29 = arith.constant 0 : index
    %52 = vector.load %arg10[%c0_27, %c0_28, %c0_29] : memref<1x64x128xbf16, #tpu.memory_space<vmem>>, vector<1x64x128xbf16>
    %53 = vector.shape_cast %52 : vector<1x64x128xbf16> to vector<64x128xbf16>
    %cst_30 = arith.constant dense<0.000000e+00> : vector<4x128xf32>
    %54 = tpu.matmul %51, %53, %cst_30 {dimension_numbers = #tpu.dot_dimension_numbers<[1], [0], [0], [1], [0, 0, 1, 1], [], []>} : vector<4x64xbf16>, vector<64x128xbf16>, vector<4x128xf32> -> vector<4x128xf32>
    %c0_31 = arith.constant 0 : index
    %c0_32 = arith.constant 0 : index
    %c0_33 = arith.constant 0 : index
    %55 = vector.load %arg11[%c0_31, %c0_32, %c0_33] : memref<1x1x128xf32, #tpu.memory_space<vmem>>, vector<1x1x128xf32>
    %56 = vector.shape_cast %55 : vector<1x1x128xf32> to vector<1x128xf32>
    %57 = vector.broadcast %56 : vector<1x128xf32> to vector<4x128xf32>
    %58 = arith.addf %54, %57 : vector<4x128xf32>
    %59 = vector.extract_strided_slice %58 {offsets = [0, 0], sizes = [4, 32], strides = [1, 1]} : vector<4x128xf32> to vector<4x32xf32>
    %60 = arith.negf %59 : vector<4x32xf32>
    %61 = math.exp %60 : vector<4x32xf32>
    %cst_34 = arith.constant 1.000000e+00 : f32
    %62 = vector.broadcast %cst_34 : f32 to vector<4x32xf32>
    %63 = arith.addf %62, %61 : vector<4x32xf32>
    %64 = arith.divf %62, %63 : vector<4x32xf32>
    %65 = vector.extract_strided_slice %58 {offsets = [0, 32], sizes = [4, 32], strides = [1, 1]} : vector<4x128xf32> to vector<4x32xf32>
    %66 = arith.negf %65 : vector<4x32xf32>
    %67 = math.exp %66 : vector<4x32xf32>
    %cst_35 = arith.constant 1.000000e+00 : f32
    %68 = vector.broadcast %cst_35 : f32 to vector<4x32xf32>
    %69 = arith.addf %68, %67 : vector<4x32xf32>
    %70 = arith.divf %68, %69 : vector<4x32xf32>
    %71 = vector.extract_strided_slice %58 {offsets = [0, 64], sizes = [4, 32], strides = [1, 1]} : vector<4x128xf32> to vector<4x32xf32>
    %72 = arith.negf %71 : vector<4x32xf32>
    %73 = math.exp %72 : vector<4x32xf32>
    %cst_36 = arith.constant 1.000000e+00 : f32
    %74 = vector.broadcast %cst_36 : f32 to vector<4x32xf32>
    %75 = arith.addf %74, %73 : vector<4x32xf32>
    %76 = arith.divf %74, %75 : vector<4x32xf32>
    %77 = vector.extract_strided_slice %58 {offsets = [0, 96], sizes = [4, 32], strides = [1, 1]} : vector<4x128xf32> to vector<4x32xf32>
    %78 = math.tanh %77 : vector<4x32xf32>
    %79 = arith.mulf %70, %5 : vector<4x32xf32>
    %80 = arith.mulf %64, %78 : vector<4x32xf32>
    %81 = arith.addf %79, %80 : vector<4x32xf32>
    %82 = math.tanh %81 : vector<4x32xf32>
    %83 = arith.mulf %76, %82 : vector<4x32xf32>
    %c0_37 = arith.constant 0 : index
    %c0_38 = arith.constant 0 : index
    %84 = vector.load %arg18[%c0_37, %c0_38] : memref<4x32xf32, #tpu.memory_space<vmem>>, vector<4x32xf32>
    tpu.vector_store %arg18[%c0_37, %c0_38], %83 {strides = array<i32>} : memref<4x32xf32, #tpu.memory_space<vmem>>, vector<4x32xf32>,
    %c0_39 = arith.constant 0 : index
    %c0_40 = arith.constant 0 : index
    %85 = vector.load %arg19[%c0_39, %c0_40] : memref<4x32xf32, #tpu.memory_space<vmem>>, vector<4x32xf32>
    tpu.vector_store %arg19[%c0_39, %c0_40], %81 {strides = array<i32>} : memref<4x32xf32, #tpu.memory_space<vmem>>, vector<4x32xf32>,
    %c0_41 = arith.constant 0 : index
    %c0_42 = arith.constant 0 : index
    %c0_43 = arith.constant 0 : index
    %86 = vector.load %arg14[%c0_41, %c0_42, %c0_43] : memref<1x4x32xf32, #tpu.memory_space<vmem>>, vector<1x4x32xf32>
    %87 = vector.shape_cast %86 : vector<1x4x32xf32> to vector<4x32xf32>
    %88 = vector.shape_cast %83 : vector<4x32xf32> to vector<1x4x32xf32>
    tpu.vector_store %arg14[%c0_41, %c0_42, %c0_43], %88 {strides = array<i32>} : memref<1x4x32xf32, #tpu.memory_space<vmem>>, vector<1x4x32xf32>,
    %89 = arith.truncf %83 : vector<4x32xf32> to vector<4x32xbf16>
    %c0_44 = arith.constant 0 : index
    %c0_45 = arith.constant 0 : index
    %90 = vector.load %arg12[%c0_44, %c0_45] : memref<32x128xbf16, #tpu.memory_space<vmem>>, vector<32x128xbf16>
    %cst_46 = arith.constant dense<0.000000e+00> : vector<4x128xf32>
    %91 = tpu.matmul %89, %90, %cst_46 {dimension_numbers = #tpu.dot_dimension_numbers<[1], [0], [0], [1], [0, 0, 1, 1], [], []>} : vector<4x32xbf16>, vector<32x128xbf16>, vector<4x128xf32> -> vector<4x128xf32>
    %c0_47 = arith.constant 0 : index
    %c0_48 = arith.constant 0 : index
    %92 = vector.load %arg13[%c0_47, %c0_48] : memref<1x128xf32, #tpu.memory_space<vmem>>, vector<1x128xf32>
    %93 = vector.broadcast %92 : vector<1x128xf32> to vector<4x128xf32>
    %94 = arith.addf %91, %93 : vector<4x128xf32>
    %c0_i32_49 = arith.constant 0 : i32
    %95 = arith.cmpi eq, %arg0, %c0_i32_49 : i32
    %96 = arith.extui %95 : i1 to i32
    %c0_i32_50 = arith.constant 0 : i32
    %97 = arith.cmpi ne, %96, %c0_i32_50 : i32
    scf.if %97 {
      %c0_61 = arith.constant 0 : index
      %c0_62 = arith.constant 0 : index
      %105 = vector.load %arg20[%c0_61, %c0_62] : memref<4x128xf32, #tpu.memory_space<vmem>>, vector<4x128xf32>
      tpu.vector_store %arg20[%c0_61, %c0_62], %94 {strides = array<i32>} : memref<4x128xf32, #tpu.memory_space<vmem>>, vector<4x128xf32>,
    } else {
    }
    %c0_i32_51 = arith.constant 0 : i32
    %98 = arith.cmpi sgt, %arg0, %c0_i32_51 : i32
    %99 = arith.extui %98 : i1 to i32
    %c0_i32_52 = arith.constant 0 : i32
    %100 = arith.cmpi ne, %99, %c0_i32_52 : i32
    scf.if %100 {
      %c0_61 = arith.constant 0 : index
      %c0_62 = arith.constant 0 : index
      %105 = vector.load %arg20[%c0_61, %c0_62] : memref<4x128xf32, #tpu.memory_space<vmem>>, vector<4x128xf32>
      %106 = arith.maximumf %105, %94 : vector<4x128xf32>
      %c0_63 = arith.constant 0 : index
      %c0_64 = arith.constant 0 : index
      %107 = vector.load %arg20[%c0_63, %c0_64] : memref<4x128xf32, #tpu.memory_space<vmem>>, vector<4x128xf32>
      tpu.vector_store %arg20[%c0_63, %c0_64], %106 {strides = array<i32>} : memref<4x128xf32, #tpu.memory_space<vmem>>, vector<4x128xf32>,
    } else {
    }
    %c0_53 = arith.constant 0 : index
    %c0_54 = arith.constant 0 : index
    %101 = vector.load %arg16[%c0_53, %c0_54] : memref<4x32xf32, #tpu.memory_space<vmem>>, vector<4x32xf32>
    tpu.vector_store %arg16[%c0_53, %c0_54], %83 {strides = array<i32>} : memref<4x32xf32, #tpu.memory_space<vmem>>, vector<4x32xf32>,
    %c0_55 = arith.constant 0 : index
    %c0_56 = arith.constant 0 : index
    %102 = vector.load %arg17[%c0_55, %c0_56] : memref<4x32xf32, #tpu.memory_space<vmem>>, vector<4x32xf32>
    tpu.vector_store %arg17[%c0_55, %c0_56], %81 {strides = array<i32>} : memref<4x32xf32, #tpu.memory_space<vmem>>, vector<4x32xf32>,
    %c0_57 = arith.constant 0 : index
    %c0_58 = arith.constant 0 : index
    %103 = vector.load %arg20[%c0_57, %c0_58] : memref<4x128xf32, #tpu.memory_space<vmem>>, vector<4x128xf32>
    %c0_59 = arith.constant 0 : index
    %c0_60 = arith.constant 0 : index
    %104 = vector.load %arg15[%c0_59, %c0_60] : memref<4x128xf32, #tpu.memory_space<vmem>>, vector<4x128xf32>
    tpu.vector_store %arg15[%c0_59, %c0_60], %103 {strides = array<i32>} : memref<4x128xf32, #tpu.memory_space<vmem>>, vector<4x128xf32>,
    return
  }
  func.func @transform_0(%arg0: i32) -> (i32, i32) {
    %c0_i32 = arith.constant 0 : i32
    %c0_i32_0 = arith.constant 0 : i32
    %c0_i32_1 = arith.constant 0 : i32
    return %c0_i32, %c0_i32_0 : i32, i32
  }
  func.func @transform_1(%arg0: i32) -> (i32, i32) {
    %c0_i32 = arith.constant 0 : i32
    %c0_i32_0 = arith.constant 0 : i32
    %c0_i32_1 = arith.constant 0 : i32
    return %c0_i32, %c0_i32_0 : i32, i32
  }
  func.func @transform_2(%arg0: i32) -> (i32, i32) {
    %c0_i32 = arith.constant 0 : i32
    %c0_i32_0 = arith.constant 0 : i32
    %c0_i32_1 = arith.constant 0 : i32
    return %c0_i32, %c0_i32_0 : i32, i32
  }
  func.func @transform_3(%arg0: i32) -> (i32, i32, i32) {
    %c0_i32 = arith.constant 0 : i32
    %c0_i32_0 = arith.constant 0 : i32
    %c0_i32_1 = arith.constant 0 : i32
    %c0_i32_2 = arith.constant 0 : i32
    return %c0_i32, %c0_i32_0, %c0_i32_1 : i32, i32, i32
  }
  func.func @transform_4(%arg0: i32) -> (i32, i32, i32) {
    %c0_i32 = arith.constant 0 : i32
    %c0_i32_0 = arith.constant 0 : i32
    %c0_i32_1 = arith.constant 0 : i32
    return %arg0, %c0_i32, %c0_i32_0 : i32, i32, i32
  }
  func.func @transform_5(%arg0: i32) -> (i32, i32, i32) {
    %c0_i32 = arith.constant 0 : i32
    %c0_i32_0 = arith.constant 0 : i32
    %c0_i32_1 = arith.constant 0 : i32
    return %arg0, %c0_i32, %c0_i32_0 : i32, i32, i32
  }
  func.func @transform_6(%arg0: i32) -> (i32, i32, i32) {
    %c0_i32 = arith.constant 0 : i32
    %c0_i32_0 = arith.constant 0 : i32
    %c0_i32_1 = arith.constant 0 : i32
    return %arg0, %c0_i32, %c0_i32_0 : i32, i32, i32
  }
  func.func @transform_7(%arg0: i32) -> (i32, i32, i32) {
    %c0_i32 = arith.constant 0 : i32
    %c0_i32_0 = arith.constant 0 : i32
    %c0_i32_1 = arith.constant 0 : i32
    return %arg0, %c0_i32, %c0_i32_0 : i32, i32, i32
  }
  func.func @transform_8(%arg0: i32) -> (i32, i32, i32) {
    %c0_i32 = arith.constant 0 : i32
    %c0_i32_0 = arith.constant 0 : i32
    %c0_i32_1 = arith.constant 0 : i32
    return %arg0, %c0_i32, %c0_i32_0 : i32, i32, i32
  }
  func.func @transform_9(%arg0: i32) -> (i32, i32, i32) {
    %c0_i32 = arith.constant 0 : i32
    %c0_i32_0 = arith.constant 0 : i32
    %c0_i32_1 = arith.constant 0 : i32
    return %arg0, %c0_i32, %c0_i32_0 : i32, i32, i32
  }
  func.func @transform_10(%arg0: i32) -> (i32, i32, i32) {
    %c0_i32 = arith.constant 0 : i32
    %c0_i32_0 = arith.constant 0 : i32
    %c0_i32_1 = arith.constant 0 : i32
    return %arg0, %c0_i32, %c0_i32_0 : i32, i32, i32
  }
  func.func @transform_11(%arg0: i32) -> (i32, i32) {
    %c0_i32 = arith.constant 0 : i32
    %c0_i32_0 = arith.constant 0 : i32
    %c0_i32_1 = arith.constant 0 : i32
    return %c0_i32, %c0_i32_0 : i32, i32
  }
  func.func @transform_12(%arg0: i32) -> (i32, i32) {
    %c0_i32 = arith.constant 0 : i32
    %c0_i32_0 = arith.constant 0 : i32
    %c0_i32_1 = arith.constant 0 : i32
    return %c0_i32, %c0_i32_0 : i32, i32
  }
  func.func @transform_13(%arg0: i32) -> (i32, i32, i32) {
    %c0_i32 = arith.constant 0 : i32
    %c0_i32_0 = arith.constant 0 : i32
    %c0_i32_1 = arith.constant 0 : i32
    return %arg0, %c0_i32, %c0_i32_0 : i32, i32, i32
  }
  func.func @transform_14(%arg0: i32) -> (i32, i32) {
    %c0_i32 = arith.constant 0 : i32
    %c0_i32_0 = arith.constant 0 : i32
    %c0_i32_1 = arith.constant 0 : i32
    return %c0_i32, %c0_i32_0 : i32, i32
  }
  func.func @transform_15(%arg0: i32) -> (i32, i32) {
    %c0_i32 = arith.constant 0 : i32
    %c0_i32_0 = arith.constant 0 : i32
    %c0_i32_1 = arith.constant 0 : i32
    return %c0_i32, %c0_i32_0 : i32, i32
  }
  func.func @transform_16(%arg0: i32) -> (i32, i32) {
    %c0_i32 = arith.constant 0 : i32
    %c0_i32_0 = arith.constant 0 : i32
    %c0_i32_1 = arith.constant 0 : i32
    return %c0_i32, %c0_i32_0 : i32, i32
  }
}

module attributes {stable_mosaic.version = 11 : i64} {
  func.func @_decoder_kernel(%arg0: i32, %arg1: memref<1x4x32xf32, #tpu.memory_space<vmem>>, %arg2: memref<4x4x32xf32, #tpu.memory_space<vmem>>, %arg3: memref<4x32xf32, #tpu.memory_space<vmem>>, %arg4: memref<4x32xf32, #tpu.memory_space<vmem>>, %arg5: memref<32x32xbf16, #tpu.memory_space<vmem>>, %arg6: memref<1x32xf32, #tpu.memory_space<vmem>>, %arg7: memref<32x32xbf16, #tpu.memory_space<vmem>>, %arg8: memref<1x32xf32, #tpu.memory_space<vmem>>, %arg9: memref<32x1xf32, #tpu.memory_space<vmem>>, %arg10: memref<96x128xbf16, #tpu.memory_space<vmem>>, %arg11: memref<1x128xf32, #tpu.memory_space<vmem>>, %arg12: memref<32x128xbf16, #tpu.memory_space<vmem>>, %arg13: memref<1x128xf32, #tpu.memory_space<vmem>>, %arg14: memref<1x4x128xf32, #tpu.memory_space<vmem>>, %arg15: memref<4x32xf32, #tpu.memory_space<vmem>>, %arg16: memref<4x32xf32, #tpu.memory_space<vmem>>, %arg17: memref<4x4x32xf32, #tpu.memory_space<vmem>>) attributes {dimension_semantics = [#tpu.dimension_semantics<arbitrary>], iteration_bounds = array<i64: 6>, scalar_prefetch = 0 : i64, scratch_operands = 3 : i64, tpu.core_type = #tpu.core_type<tc>, window_params = [{transform_indices = @transform_0, window_bounds = array<i64: 1, 4, 32>}, {pipeline_mode = #tpu.pipeline_mode<synchronous>, transform_indices = @transform_1, window_bounds = array<i64: 4, 4, 32>}, {pipeline_mode = #tpu.pipeline_mode<synchronous>, transform_indices = @transform_2, window_bounds = array<i64: 4, 32>}, {pipeline_mode = #tpu.pipeline_mode<synchronous>, transform_indices = @transform_3, window_bounds = array<i64: 4, 32>}, {pipeline_mode = #tpu.pipeline_mode<synchronous>, transform_indices = @transform_4, window_bounds = array<i64: 32, 32>}, {pipeline_mode = #tpu.pipeline_mode<synchronous>, transform_indices = @transform_5, window_bounds = array<i64: 1, 32>}, {pipeline_mode = #tpu.pipeline_mode<synchronous>, transform_indices = @transform_6, window_bounds = array<i64: 32, 32>}, {pipeline_mode = #tpu.pipeline_mode<synchronous>, transform_indices = @transform_7, window_bounds = array<i64: 1, 32>}, {pipeline_mode = #tpu.pipeline_mode<synchronous>, transform_indices = @transform_8, window_bounds = array<i64: 32, 1>}, {pipeline_mode = #tpu.pipeline_mode<synchronous>, transform_indices = @transform_9, window_bounds = array<i64: 96, 128>}, {pipeline_mode = #tpu.pipeline_mode<synchronous>, transform_indices = @transform_10, window_bounds = array<i64: 1, 128>}, {pipeline_mode = #tpu.pipeline_mode<synchronous>, transform_indices = @transform_11, window_bounds = array<i64: 32, 128>}, {pipeline_mode = #tpu.pipeline_mode<synchronous>, transform_indices = @transform_12, window_bounds = array<i64: 1, 128>}, {transform_indices = @transform_13, window_bounds = array<i64: 1, 4, 128>}]} {
    %c0 = arith.constant 0 : index
    %c0_0 = arith.constant 0 : index
    %c0_1 = arith.constant 0 : index
    %0 = vector.load %arg2[%c0, %c0_0, %c0_1] : memref<4x4x32xf32, #tpu.memory_space<vmem>>, vector<4x4x32xf32>
    %c0_i32 = arith.constant 0 : i32
    %1 = arith.cmpi eq, %arg0, %c0_i32 : i32
    %2 = arith.extui %1 : i1 to i32
    %c0_i32_2 = arith.constant 0 : i32
    %3 = arith.cmpi ne, %2, %c0_i32_2 : i32
    scf.if %3 {
      %c0_45 = arith.constant 0 : index
      %c0_46 = arith.constant 0 : index
      %92 = vector.load %arg3[%c0_45, %c0_46] : memref<4x32xf32, #tpu.memory_space<vmem>>, vector<4x32xf32>
      %c0_47 = arith.constant 0 : index
      %c0_48 = arith.constant 0 : index
      %93 = vector.load %arg15[%c0_47, %c0_48] : memref<4x32xf32, #tpu.memory_space<vmem>>, vector<4x32xf32>
      tpu.vector_store %arg15[%c0_47, %c0_48], %92 {strides = array<i32>} : memref<4x32xf32, #tpu.memory_space<vmem>>, vector<4x32xf32>,
      %c0_49 = arith.constant 0 : index
      %c0_50 = arith.constant 0 : index
      %94 = vector.load %arg4[%c0_49, %c0_50] : memref<4x32xf32, #tpu.memory_space<vmem>>, vector<4x32xf32>
      %c0_51 = arith.constant 0 : index
      %c0_52 = arith.constant 0 : index
      %95 = vector.load %arg16[%c0_51, %c0_52] : memref<4x32xf32, #tpu.memory_space<vmem>>, vector<4x32xf32>
      tpu.vector_store %arg16[%c0_51, %c0_52], %94 {strides = array<i32>} : memref<4x32xf32, #tpu.memory_space<vmem>>, vector<4x32xf32>,
      %96 = arith.truncf %0 : vector<4x4x32xf32> to vector<4x4x32xbf16>
      %97 = vector.shape_cast %96 : vector<4x4x32xbf16> to vector<16x32xbf16>
      %c0_53 = arith.constant 0 : index
      %c0_54 = arith.constant 0 : index
      %98 = vector.load %arg5[%c0_53, %c0_54] : memref<32x32xbf16, #tpu.memory_space<vmem>>, vector<32x32xbf16>
      %cst_55 = arith.constant dense<0.000000e+00> : vector<16x32xf32>
      %99 = tpu.matmul %97, %98, %cst_55 {dimension_numbers = #tpu.dot_dimension_numbers<[1], [0], [0], [1], [0, 0, 1, 1], [], []>} : vector<16x32xbf16>, vector<32x32xbf16>, vector<16x32xf32> -> vector<16x32xf32>
      %100 = vector.shape_cast %99 : vector<16x32xf32> to vector<4x4x32xf32>
      %c0_56 = arith.constant 0 : index
      %c0_57 = arith.constant 0 : index
      %101 = vector.load %arg6[%c0_56, %c0_57] : memref<1x32xf32, #tpu.memory_space<vmem>>, vector<1x32xf32>
      %102 = vector.shape_cast %101 : vector<1x32xf32> to vector<1x1x32xf32>
      %103 = vector.broadcast %102 : vector<1x1x32xf32> to vector<4x4x32xf32>
      %104 = arith.addf %100, %103 : vector<4x4x32xf32>
      %c0_58 = arith.constant 0 : index
      %c0_59 = arith.constant 0 : index
      %c0_60 = arith.constant 0 : index
      %105 = vector.load %arg17[%c0_58, %c0_59, %c0_60] : memref<4x4x32xf32, #tpu.memory_space<vmem>>, vector<4x4x32xf32>
      tpu.vector_store %arg17[%c0_58, %c0_59, %c0_60], %104 {strides = array<i32>} : memref<4x4x32xf32, #tpu.memory_space<vmem>>, vector<4x4x32xf32>,
    } else {
    }
    %c0_3 = arith.constant 0 : index
    %c0_4 = arith.constant 0 : index
    %c0_5 = arith.constant 0 : index
    %4 = vector.load %arg1[%c0_3, %c0_4, %c0_5] : memref<1x4x32xf32, #tpu.memory_space<vmem>>, vector<1x4x32xf32>
    %5 = vector.shape_cast %4 : vector<1x4x32xf32> to vector<4x32xf32>
    %c0_6 = arith.constant 0 : index
    %c0_7 = arith.constant 0 : index
    %6 = vector.load %arg15[%c0_6, %c0_7] : memref<4x32xf32, #tpu.memory_space<vmem>>, vector<4x32xf32>
    %c0_8 = arith.constant 0 : index
    %c0_9 = arith.constant 0 : index
    %7 = vector.load %arg16[%c0_8, %c0_9] : memref<4x32xf32, #tpu.memory_space<vmem>>, vector<4x32xf32>
    %c0_10 = arith.constant 0 : index
    %c0_11 = arith.constant 0 : index
    %c0_12 = arith.constant 0 : index
    %8 = vector.load %arg17[%c0_10, %c0_11, %c0_12] : memref<4x4x32xf32, #tpu.memory_space<vmem>>, vector<4x4x32xf32>
    %c0_13 = arith.constant 0 : index
    %c0_14 = arith.constant 0 : index
    %9 = vector.load %arg7[%c0_13, %c0_14] : memref<32x32xbf16, #tpu.memory_space<vmem>>, vector<32x32xbf16>
    %c0_15 = arith.constant 0 : index
    %c0_16 = arith.constant 0 : index
    %10 = vector.load %arg8[%c0_15, %c0_16] : memref<1x32xf32, #tpu.memory_space<vmem>>, vector<1x32xf32>
    %c0_17 = arith.constant 0 : index
    %c0_18 = arith.constant 0 : index
    %11 = vector.load %arg9[%c0_17, %c0_18] : memref<32x1xf32, #tpu.memory_space<vmem>>, vector<32x1xf32>
    %12 = arith.truncf %6 : vector<4x32xf32> to vector<4x32xbf16>
    %cst = arith.constant dense<0.000000e+00> : vector<4x32xf32>
    %13 = tpu.matmul %12, %9, %cst {dimension_numbers = #tpu.dot_dimension_numbers<[1], [0], [0], [1], [0, 0, 1, 1], [], []>} : vector<4x32xbf16>, vector<32x32xbf16>, vector<4x32xf32> -> vector<4x32xf32>
    %14 = vector.broadcast %10 : vector<1x32xf32> to vector<4x32xf32>
    %15 = arith.addf %13, %14 : vector<4x32xf32>
    %16 = vector.shape_cast %15 : vector<4x32xf32> to vector<4x1x32xf32>
    %17 = vector.broadcast %16 : vector<4x1x32xf32> to vector<4x4x32xf32>
    %18 = arith.addf %8, %17 : vector<4x4x32xf32>
    %19 = math.tanh %18 : vector<4x4x32xf32>
    %20 = vector.shape_cast %19 : vector<4x4x32xf32> to vector<16x32xf32>
    %21 = arith.truncf %20 : vector<16x32xf32> to vector<16x32xbf16>
    %22 = arith.truncf %11 : vector<32x1xf32> to vector<32x1xbf16>
    %cst_19 = arith.constant dense<0.000000e+00> : vector<16x1xf32>
    %23 = tpu.matmul %21, %22, %cst_19 {dimension_numbers = #tpu.dot_dimension_numbers<[1], [0], [0], [1], [0, 0, 1, 1], [], []>} : vector<16x32xbf16>, vector<32x1xbf16>, vector<16x1xf32> -> vector<16x1xf32>
    %24 = vector.shape_cast %23 : vector<16x1xf32> to vector<4x4xf32>
    %cst_20 = arith.constant dense<0xFF800000> : vector<4xf32>
    %25 = vector.multi_reduction <maximumf>, %24, %cst_20 [1] : vector<4x4xf32> to vector<4xf32>
    %26 = vector.shape_cast %25 : vector<4xf32> to vector<4x1xf32>
    %27 = vector.broadcast %26 : vector<4x1xf32> to vector<4x4xf32>
    %28 = arith.subf %24, %27 : vector<4x4xf32>
    %29 = math.exp %28 : vector<4x4xf32>
    %cst_21 = arith.constant dense<0.000000e+00> : vector<4xf32>
    %30 = vector.multi_reduction <add>, %29, %cst_21 [1] : vector<4x4xf32> to vector<4xf32>
    %31 = vector.shape_cast %30 : vector<4xf32> to vector<4x1xf32>
    %32 = tpu.reciprocal %31 {approx = true} : vector<4x1xf32> -> vector<4x1xf32>
    %33 = vector.broadcast %32 : vector<4x1xf32> to vector<4x4xf32>
    %34 = arith.mulf %29, %33 : vector<4x4xf32>
    %35 = vector.shape_cast %34 : vector<4x4xf32> to vector<4x4x1xf32>
    %36 = vector.broadcast %35 : vector<4x4x1xf32> to vector<4x4x32xf32>
    %37 = arith.mulf %36, %0 : vector<4x4x32xf32>
    %cst_22 = arith.constant dense<0.000000e+00> : vector<4x32xf32>
    %38 = vector.multi_reduction <add>, %37, %cst_22 [1] : vector<4x4x32xf32> to vector<4x32xf32>
    %39 = tpu.concatenate %5, %6, %38 in 1 : vector<4x32xf32>, vector<4x32xf32>, vector<4x32xf32> -> vector<4x96xf32>
    %40 = arith.truncf %39 : vector<4x96xf32> to vector<4x96xbf16>
    %c0_23 = arith.constant 0 : index
    %c0_24 = arith.constant 0 : index
    %41 = vector.load %arg10[%c0_23, %c0_24] : memref<96x128xbf16, #tpu.memory_space<vmem>>, vector<96x128xbf16>
    %cst_25 = arith.constant dense<0.000000e+00> : vector<4x128xf32>
    %42 = tpu.matmul %40, %41, %cst_25 {dimension_numbers = #tpu.dot_dimension_numbers<[1], [0], [0], [1], [0, 0, 1, 1], [], []>} : vector<4x96xbf16>, vector<96x128xbf16>, vector<4x128xf32> -> vector<4x128xf32>
    %c0_26 = arith.constant 0 : index
    %c0_27 = arith.constant 0 : index
    %43 = vector.load %arg11[%c0_26, %c0_27] : memref<1x128xf32, #tpu.memory_space<vmem>>, vector<1x128xf32>
    %44 = vector.broadcast %43 : vector<1x128xf32> to vector<4x128xf32>
    %45 = arith.addf %42, %44 : vector<4x128xf32>
    %46 = vector.extract_strided_slice %45 {offsets = [0, 0], sizes = [4, 32], strides = [1, 1]} : vector<4x128xf32> to vector<4x32xf32>
    %47 = arith.negf %46 : vector<4x32xf32>
    %48 = math.exp %47 : vector<4x32xf32>
    %cst_28 = arith.constant 1.000000e+00 : f32
    %49 = vector.broadcast %cst_28 : f32 to vector<4x32xf32>
    %50 = arith.addf %49, %48 : vector<4x32xf32>
    %51 = arith.divf %49, %50 : vector<4x32xf32>
    %52 = vector.extract_strided_slice %45 {offsets = [0, 32], sizes = [4, 32], strides = [1, 1]} : vector<4x128xf32> to vector<4x32xf32>
    %53 = arith.negf %52 : vector<4x32xf32>
    %54 = math.exp %53 : vector<4x32xf32>
    %cst_29 = arith.constant 1.000000e+00 : f32
    %55 = vector.broadcast %cst_29 : f32 to vector<4x32xf32>
    %56 = arith.addf %55, %54 : vector<4x32xf32>
    %57 = arith.divf %55, %56 : vector<4x32xf32>
    %58 = vector.extract_strided_slice %45 {offsets = [0, 64], sizes = [4, 32], strides = [1, 1]} : vector<4x128xf32> to vector<4x32xf32>
    %59 = arith.negf %58 : vector<4x32xf32>
    %60 = math.exp %59 : vector<4x32xf32>
    %cst_30 = arith.constant 1.000000e+00 : f32
    %61 = vector.broadcast %cst_30 : f32 to vector<4x32xf32>
    %62 = arith.addf %61, %60 : vector<4x32xf32>
    %63 = arith.divf %61, %62 : vector<4x32xf32>
    %64 = vector.extract_strided_slice %45 {offsets = [0, 96], sizes = [4, 32], strides = [1, 1]} : vector<4x128xf32> to vector<4x32xf32>
    %65 = math.tanh %64 : vector<4x32xf32>
    %66 = arith.mulf %57, %7 : vector<4x32xf32>
    %67 = arith.mulf %51, %65 : vector<4x32xf32>
    %68 = arith.addf %66, %67 : vector<4x32xf32>
    %69 = math.tanh %68 : vector<4x32xf32>
    %70 = arith.mulf %63, %69 : vector<4x32xf32>
    %c0_31 = arith.constant 0 : index
    %c0_32 = arith.constant 0 : index
    %71 = vector.load %arg15[%c0_31, %c0_32] : memref<4x32xf32, #tpu.memory_space<vmem>>, vector<4x32xf32>
    tpu.vector_store %arg15[%c0_31, %c0_32], %70 {strides = array<i32>} : memref<4x32xf32, #tpu.memory_space<vmem>>, vector<4x32xf32>,
    %c0_33 = arith.constant 0 : index
    %c0_34 = arith.constant 0 : index
    %72 = vector.load %arg16[%c0_33, %c0_34] : memref<4x32xf32, #tpu.memory_space<vmem>>, vector<4x32xf32>
    tpu.vector_store %arg16[%c0_33, %c0_34], %68 {strides = array<i32>} : memref<4x32xf32, #tpu.memory_space<vmem>>, vector<4x32xf32>,
    %73 = arith.truncf %70 : vector<4x32xf32> to vector<4x32xbf16>
    %c0_35 = arith.constant 0 : index
    %c0_36 = arith.constant 0 : index
    %74 = vector.load %arg12[%c0_35, %c0_36] : memref<32x128xbf16, #tpu.memory_space<vmem>>, vector<32x128xbf16>
    %cst_37 = arith.constant dense<0.000000e+00> : vector<4x128xf32>
    %75 = tpu.matmul %73, %74, %cst_37 {dimension_numbers = #tpu.dot_dimension_numbers<[1], [0], [0], [1], [0, 0, 1, 1], [], []>} : vector<4x32xbf16>, vector<32x128xbf16>, vector<4x128xf32> -> vector<4x128xf32>
    %c0_38 = arith.constant 0 : index
    %c0_39 = arith.constant 0 : index
    %76 = vector.load %arg13[%c0_38, %c0_39] : memref<1x128xf32, #tpu.memory_space<vmem>>, vector<1x128xf32>
    %77 = vector.broadcast %76 : vector<1x128xf32> to vector<4x128xf32>
    %78 = arith.addf %75, %77 : vector<4x128xf32>
    %cst_40 = arith.constant dense<0xFF800000> : vector<4xf32>
    %79 = vector.multi_reduction <maximumf>, %78, %cst_40 [1] : vector<4x128xf32> to vector<4xf32>
    %80 = vector.shape_cast %79 : vector<4xf32> to vector<4x1xf32>
    %81 = vector.broadcast %80 : vector<4x1xf32> to vector<4x128xf32>
    %82 = arith.subf %78, %81 : vector<4x128xf32>
    %83 = math.exp %82 : vector<4x128xf32>
    %cst_41 = arith.constant dense<0.000000e+00> : vector<4xf32>
    %84 = vector.multi_reduction <add>, %83, %cst_41 [1] : vector<4x128xf32> to vector<4xf32>
    %85 = vector.shape_cast %84 : vector<4xf32> to vector<4x1xf32>
    %86 = math.log %85 : vector<4x1xf32>
    %87 = vector.broadcast %86 : vector<4x1xf32> to vector<4x128xf32>
    %88 = arith.subf %82, %87 : vector<4x128xf32>
    %c0_42 = arith.constant 0 : index
    %c0_43 = arith.constant 0 : index
    %c0_44 = arith.constant 0 : index
    %89 = vector.load %arg14[%c0_42, %c0_43, %c0_44] : memref<1x4x128xf32, #tpu.memory_space<vmem>>, vector<1x4x128xf32>
    %90 = vector.shape_cast %89 : vector<1x4x128xf32> to vector<4x128xf32>
    %91 = vector.shape_cast %88 : vector<4x128xf32> to vector<1x4x128xf32>
    tpu.vector_store %arg14[%c0_42, %c0_43, %c0_44], %91 {strides = array<i32>} : memref<1x4x128xf32, #tpu.memory_space<vmem>>, vector<1x4x128xf32>,
    return
  }
  func.func @transform_0(%arg0: i32) -> (i32, i32, i32) {
    %c0_i32 = arith.constant 0 : i32
    %c0_i32_0 = arith.constant 0 : i32
    %c0_i32_1 = arith.constant 0 : i32
    return %arg0, %c0_i32, %c0_i32_0 : i32, i32, i32
  }
  func.func @transform_1(%arg0: i32) -> (i32, i32, i32) {
    %c0_i32 = arith.constant 0 : i32
    %c0_i32_0 = arith.constant 0 : i32
    %c0_i32_1 = arith.constant 0 : i32
    %c0_i32_2 = arith.constant 0 : i32
    return %c0_i32, %c0_i32_0, %c0_i32_1 : i32, i32, i32
  }
  func.func @transform_2(%arg0: i32) -> (i32, i32) {
    %c0_i32 = arith.constant 0 : i32
    %c0_i32_0 = arith.constant 0 : i32
    %c0_i32_1 = arith.constant 0 : i32
    return %c0_i32, %c0_i32_0 : i32, i32
  }
  func.func @transform_3(%arg0: i32) -> (i32, i32) {
    %c0_i32 = arith.constant 0 : i32
    %c0_i32_0 = arith.constant 0 : i32
    %c0_i32_1 = arith.constant 0 : i32
    return %c0_i32, %c0_i32_0 : i32, i32
  }
  func.func @transform_4(%arg0: i32) -> (i32, i32) {
    %c0_i32 = arith.constant 0 : i32
    %c0_i32_0 = arith.constant 0 : i32
    %c0_i32_1 = arith.constant 0 : i32
    return %c0_i32, %c0_i32_0 : i32, i32
  }
  func.func @transform_5(%arg0: i32) -> (i32, i32) {
    %c0_i32 = arith.constant 0 : i32
    %c0_i32_0 = arith.constant 0 : i32
    %c0_i32_1 = arith.constant 0 : i32
    return %c0_i32, %c0_i32_0 : i32, i32
  }
  func.func @transform_6(%arg0: i32) -> (i32, i32) {
    %c0_i32 = arith.constant 0 : i32
    %c0_i32_0 = arith.constant 0 : i32
    %c0_i32_1 = arith.constant 0 : i32
    return %c0_i32, %c0_i32_0 : i32, i32
  }
  func.func @transform_7(%arg0: i32) -> (i32, i32) {
    %c0_i32 = arith.constant 0 : i32
    %c0_i32_0 = arith.constant 0 : i32
    %c0_i32_1 = arith.constant 0 : i32
    return %c0_i32, %c0_i32_0 : i32, i32
  }
  func.func @transform_8(%arg0: i32) -> (i32, i32) {
    %c0_i32 = arith.constant 0 : i32
    %c0_i32_0 = arith.constant 0 : i32
    %c0_i32_1 = arith.constant 0 : i32
    return %c0_i32, %c0_i32_0 : i32, i32
  }
  func.func @transform_9(%arg0: i32) -> (i32, i32) {
    %c0_i32 = arith.constant 0 : i32
    %c0_i32_0 = arith.constant 0 : i32
    %c0_i32_1 = arith.constant 0 : i32
    return %c0_i32, %c0_i32_0 : i32, i32
  }
  func.func @transform_10(%arg0: i32) -> (i32, i32) {
    %c0_i32 = arith.constant 0 : i32
    %c0_i32_0 = arith.constant 0 : i32
    %c0_i32_1 = arith.constant 0 : i32
    return %c0_i32, %c0_i32_0 : i32, i32
  }
  func.func @transform_11(%arg0: i32) -> (i32, i32) {
    %c0_i32 = arith.constant 0 : i32
    %c0_i32_0 = arith.constant 0 : i32
    %c0_i32_1 = arith.constant 0 : i32
    return %c0_i32, %c0_i32_0 : i32, i32
  }
  func.func @transform_12(%arg0: i32) -> (i32, i32) {
    %c0_i32 = arith.constant 0 : i32
    %c0_i32_0 = arith.constant 0 : i32
    %c0_i32_1 = arith.constant 0 : i32
    return %c0_i32, %c0_i32_0 : i32, i32
  }
  func.func @transform_13(%arg0: i32) -> (i32, i32, i32) {
    %c0_i32 = arith.constant 0 : i32
    %c0_i32_0 = arith.constant 0 : i32
    %c0_i32_1 = arith.constant 0 : i32
    return %arg0, %c0_i32, %c0_i32_0 : i32, i32, i32
  }
}

</mosaic_0001>

<llo_original>
// kernel: _lambda_.2
$region0: #{_lambda_.2}
  #allocation0 [shape = 'u32[]', space=smem, size = 0x4, offset = 0x4, fixed_abs, tag = 'smem constant byte address 0x4 - core index']
  #allocation1 [shape = 'u32[144,128]{1,0:T(1,128)}', space=vmem, size = 0x12000, scoped, tag = 'internal scratch']
  #allocation2 [shape = 'f32[4,32]{1,0:T(4,128)}', space=vmem, size = 0x800, scoped, tag = 'scratch operand']
  #allocation3 [shape = 'f32[4,32]{1,0:T(4,128)}', space=vmem, size = 0x800, scoped, tag = 'scratch operand']
  #allocation4 [shape = 'f32[4,128]{1,0:T(4,128)}', space=vmem, size = 0x800, scoped, tag = 'scratch operand']
  %s0 = inlined_call_operand.vmem [shape: f32[4,64], index: 0, kind: input, shape index: {}]
  %s1 = inlined_call_operand.vmem [shape: bf16[64,32], index: 1, kind: input, shape index: {}]
  %s2 = inlined_call_operand.hbm [shape: f32[1,32], index: 2, kind: input, shape index: {}]
  %s3 = inlined_call_operand.vmem [shape: f32[4,16,32], index: 3, kind: input, shape index: {}]
  %s4 = inlined_call_operand.hbm [shape: bf16[4,32,32], index: 4, kind: input, shape index: {}]
  %s5 = inlined_call_operand.hbm [shape: f32[4,1,32], index: 5, kind: input, shape index: {}]
  %s6 = inlined_call_operand.hbm [shape: bf16[4,32,32], index: 6, kind: input, shape index: {}]
  %s7 = inlined_call_operand.hbm [shape: f32[4,1,32], index: 7, kind: input, shape index: {}]
  %s8 = inlined_call_operand.vmem [shape: f32[4,32,1], index: 8, kind: input, shape index: {}]
  %s9 = inlined_call_operand.vmem [shape: bf16[4,64,128], index: 9, kind: input, shape index: {}]
  %s10 = inlined_call_operand.hbm [shape: f32[4,1,128], index: 10, kind: input, shape index: {}]
  %s11 = inlined_call_operand.hbm [shape: bf16[32,128], index: 11, kind: input, shape index: {}]
  %s12 = inlined_call_operand.hbm [shape: f32[1,128], index: 12, kind: input, shape index: {}]
  %s13 = inlined_call_operand.vmem [shape: f32[4,4,32], index: 13, kind: output, shape index: {0}]
  %s14 = inlined_call_operand.hbm [shape: f32[4,128], index: 14, kind: output, shape index: {1}]
  %s15 = inlined_call_operand.vmem [shape: f32[4,32], index: 15, kind: output, shape index: {2}]
  %s16 = inlined_call_operand.vmem [shape: f32[4,32], index: 16, kind: output, shape index: {3}]
  %17 = xla_tuple %s13, %s14, %s15, %s16
  %s18 = sld [smem:[#allocation0]]
  $region153: #{_lambda_.2} parent=0
    _
  %s20 = ssub.s32 1, %s18
  %s21 = scalar_select 0, %s20, %s18
  $region1: #{_lambda_.2} parent=0
    #allocation5 [shape = 'u8[512]{0}', space=vmem, size = 0x400, scoped, tag = 'input window, operand 2, single buffered']
    #allocation6 [shape = 's32[2]{0}', space=sflag, size = 0x8, scoped, tag = 'scoped memory for _lambda_.2']
    #allocation7 [shape = 's32[2]{0}', space=sflag, size = 0x8, scoped, tag = 'scoped memory for _lambda_.2']
    #allocation8 [shape = 'u8[16384]{0}', space=vmem, size = 0x4000, scoped, tag = 'input window, operand 4']
    #allocation9 [shape = 's32[2]{0}', space=sflag, size = 0x8, scoped, tag = 'scoped memory for _lambda_.2']
    #allocation10 [shape = 'u8[1024]{0}', space=vmem, size = 0x400, scoped, tag = 'input window, operand 5']
    #allocation11 [shape = 'u8[16384]{0}', space=vmem, size = 0x4000, scoped, tag = 'input window, operand 6']
    #allocation12 [shape = 's32[2]{0}', space=sflag, size = 0x8, scoped, tag = 'scoped memory for _lambda_.2']
    #allocation13 [shape = 'u8[1024]{0}', space=vmem, size = 0x400, scoped, tag = 'input window, operand 7']
    #allocation14 [shape = 'u8[1024]{0}', space=vmem, size = 0x400, scoped, tag = 'input window, operand 10']
    #allocation15 [shape = 's32[2]{0}', space=sflag, size = 0x8, scoped, tag = 'scoped memory for _lambda_.2']
    #allocation16 [shape = 'u8[8192]{0}', space=vmem, size = 0x2000, scoped, tag = 'input window, operand 11, single buffered']
    #allocation17 [shape = 'u8[512]{0}', space=vmem, size = 0x400, scoped, tag = 'input window, operand 12, single buffered']
    #allocation18 [shape = 's32[1]{0}', space=sflag, size = 0x4, scoped, tag = 'scoped memory for _lambda_.2']
    #allocation19 [shape = 'u8[2048]{0}', space=vmem, size = 0x800, scoped, tag = 'output window, operand 1, single buffered']
    %22 = vsyncpa [#allocation6], 0
    %23 = vsyncpa [#allocation9], 0
    %s24 = scalar_lea.sflag [#allocation9], 1
    %25 = vsyncpa %s24, 0
    %26 = vsyncpa [#allocation12], 0
    %s27 = scalar_lea.sflag [#allocation12], 1
    %28 = vsyncpa %s27, 0
    %29 = vsyncpa [#allocation15], 0
    %s30 = scalar_lea.sflag [#allocation15], 1
    %31 = vsyncpa %s30, 0
    %32 = vsyncpa [#allocation18], 0
    %33 = vsyncpa [#allocation7], 0
    loop: start=0, step=1, limit=6
    $region2: #{_lambda_.2} parent=1 // loop_pre_header
      _
    $region3: #{_lambda_.2} parent=1 // loop_header
      %s35 = sphi 0, %s39
      %p36 = scmp.ge.s32.totalorder %s35, 6
      %s43 = sphi 0, %s43
      %s45 = sphi 0, %s43
      %s46 = sphi 0, %s45
      %s60 = sphi 0, %s46
      %s64 = sphi 0, %s64
      %s66 = sphi 0, %s64
      %s67 = sphi 0, %s66
      %s81 = sphi 0, %s67
      %s85 = sphi 0, %s85
      %s87 = sphi 0, %s85
      %s88 = sphi 0, %s87
      %s102 = sphi 0, %s88
      %s106 = sphi 0, %s106
      %s108 = sphi 0, %s106
      %s109 = sphi 0, %s108
      %s123 = sphi 0, %s109
      %s129 = sphi 0, %s131
      %s132 = sphi 0, %s129
      %s133 = sphi 0, %s132
      %s149 = sphi 0, %s133
      %s155 = sphi 0, %s157
      %s158 = sphi 0, %s155
      %s159 = sphi 0, %s158
      %s175 = sphi 0, %s159
      %s181 = sphi 0, %s183
      %s184 = sphi 0, %s181
      %s185 = sphi 0, %s184
      %s201 = sphi 0, %s185
      %s207 = sphi 0, %s209
      %s210 = sphi 0, %s207
      %s211 = sphi 0, %s210
      %s227 = sphi 0, %s211
      %s233 = sphi 0, %s235
      %s236 = sphi 0, %s233
      %s237 = sphi 0, %s236
      %s253 = sphi 0, %s237
      %s259 = sphi 0, %s261
      %s262 = sphi 0, %s259
      %s263 = sphi 0, %s262
      %s279 = sphi 0, %s263
      %s285 = sphi 0, %s287
      %s288 = sphi 0, %s285
      %s289 = sphi 0, %s288
      %s305 = sphi 0, %s289
      %s309 = sphi 0, %s309
      %s311 = sphi 0, %s309
      %s312 = sphi 0, %s311
      %s326 = sphi 0, %s312
      %s330 = sphi 0, %s330
      %s332 = sphi 0, %s330
      %s333 = sphi 0, %s332
      %s347 = sphi 0, %s333
      %s353 = sphi 0, %s355
      %s356 = sphi 0, %s353
      %s357 = sphi 0, %s356
      %s373 = sphi 0, %s357
      %s377 = sphi 0, %s377
      %s379 = sphi 0, %s377
      %s380 = sphi 0, %s379
      %s394 = sphi 0, %s380
      %s398 = sphi 0, %s398
      %s400 = sphi 0, %s398
      %s401 = sphi 0, %s400
      %s415 = sphi 0, %s401
      %s419 = sphi 0, %s419
      %s421 = sphi 0, %s419
      %s422 = sphi 0, %s421
      %s436 = sphi 0, %s422
    $region4: #{_lambda_.2} parent=1 // loop_header_branch
      %38 = sbr.rel (%p36) target = $region8
    $region5: #{_lambda_.2} parent=1 // loop_body
      %s40 = ssub.s32 %s35, 1
      %s41 = ssub.s32 %s35, 2
      %s42 = sadd.s32 %s35, 1
      %s44 = sadd.s32 %s43, 1
      %p47 = scmp.eq.s32.totalorder %s35, 3
      %p48 = scmp.ne.s32.totalorder %s43, %s45
      %p49 = scmp.eq.s32.totalorder %s35, 0
      %p50 = por %p48, %p49
      %p51 = scmp.ne.s32.totalorder %s43, %s45
      %p52 = scmp.eq.s32.totalorder %s40, 3
      %p53 = por %p51, %p52
      %p54 = scmp.ne.s32.totalorder %s45, %s46
      %p55 = scmp.eq.s32.totalorder %s40, 0
      %p56 = por %p54, %p55
      %p57 = scmp.ne.s32.totalorder %s45, %s46
      %p58 = scmp.eq.s32.totalorder %s41, 3
      %p59 = por %p57, %p58
      %p61 = scmp.ne.s32.totalorder %s46, %s60
      %p62 = scmp.eq.s32.totalorder %s41, 0
      %p63 = por %p61, %p62
      %s65 = sadd.s32 %s64, 1
      %p68 = scmp.eq.s32.totalorder %s35, 3
      %p69 = scmp.ne.s32.totalorder %s64, %s66
      %p70 = scmp.eq.s32.totalorder %s35, 0
      %p71 = por %p69, %p70
      %p72 = scmp.ne.s32.totalorder %s64, %s66
      %p73 = scmp.eq.s32.totalorder %s40, 3
      %p74 = por %p72, %p73
      %p75 = scmp.ne.s32.totalorder %s66, %s67
      %p76 = scmp.eq.s32.totalorder %s40, 0
      %p77 = por %p75, %p76
      %p78 = scmp.ne.s32.totalorder %s66, %s67
      %p79 = scmp.eq.s32.totalorder %s41, 3
      %p80 = por %p78, %p79
      %p82 = scmp.ne.s32.totalorder %s67, %s81
      %p83 = scmp.eq.s32.totalorder %s41, 0
      %p84 = por %p82, %p83
      %s86 = sadd.s32 %s85, 1
      %p89 = scmp.eq.s32.totalorder %s35, 3
      %p90 = scmp.ne.s32.totalorder %s85, %s87
      %p91 = scmp.eq.s32.totalorder %s35, 0
      %p92 = por %p90, %p91
      %p93 = scmp.ne.s32.totalorder %s85, %s87
      %p94 = scmp.eq.s32.totalorder %s40, 3
      %p95 = por %p93, %p94
      %p96 = scmp.ne.s32.totalorder %s87, %s88
      %p97 = scmp.eq.s32.totalorder %s40, 0
      %p98 = por %p96, %p97
      %p99 = scmp.ne.s32.totalorder %s87, %s88
      %p100 = scmp.eq.s32.totalorder %s41, 3
      %p101 = por %p99, %p100
      %p103 = scmp.ne.s32.totalorder %s88, %s102
      %p104 = scmp.eq.s32.totalorder %s41, 0
      %p105 = por %p103, %p104
      %s107 = sadd.s32 %s106, 1
      %p110 = scmp.eq.s32.totalorder %s35, 3
      %p111 = scmp.ne.s32.totalorder %s106, %s108
      %p112 = scmp.eq.s32.totalorder %s35, 0
      %p113 = por %p111, %p112
      %p114 = scmp.ne.s32.totalorder %s106, %s108
      %p115 = scmp.eq.s32.totalorder %s40, 3
      %p116 = por %p114, %p115
      %p117 = scmp.ne.s32.totalorder %s108, %s109
      %p118 = scmp.eq.s32.totalorder %s40, 0
      %p119 = por %p117, %p118
      %p120 = scmp.ne.s32.totalorder %s108, %s109
      %p121 = scmp.eq.s32.totalorder %s41, 3
      %p122 = por %p120, %p121
      %p124 = scmp.ne.s32.totalorder %s109, %s123
      %p125 = scmp.eq.s32.totalorder %s41, 0
      %p126 = por %p124, %p125
      %s127 = ssub.s32 %s35, %s42
      %p128 = scmp.eq.s32.totalorder %s127, 0
      %s130 = sadd.s32 %s129, 1
      %s131 = scalar_select %p128, %s129, %s130
      %p134 = pneg %p128
      %p135 = scmp.eq.s32.totalorder %s35, 3
      %p136 = por %p134, %p135
      %p137 = scmp.ne.s32.totalorder %s129, %s132
      %p138 = scmp.eq.s32.totalorder %s35, 0
      %p139 = por %p137, %p138
      %p140 = scmp.ne.s32.totalorder %s129, %s132
      %p141 = scmp.eq.s32.totalorder %s40, 3
      %p142 = por %p140, %p141
      %p143 = scmp.ne.s32.totalorder %s132, %s133
      %p144 = scmp.eq.s32.totalorder %s40, 0
      %p145 = por %p143, %p144
      %p146 = scmp.ne.s32.totalorder %s132, %s133
      %p147 = scmp.eq.s32.totalorder %s41, 3
      %p148 = por %p146, %p147
      %p150 = scmp.ne.s32.totalorder %s133, %s149
      %p151 = scmp.eq.s32.totalorder %s41, 0
      %p152 = por %p150, %p151
      %s153 = ssub.s32 %s35, %s42
      %p154 = scmp.eq.s32.totalorder %s153, 0
      %s156 = sadd.s32 %s155, 1
      %s157 = scalar_select %p154, %s155, %s156
      %p160 = pneg %p154
      %p161 = scmp.eq.s32.totalorder %s35, 3
      %p162 = por %p160, %p161
      %p163 = scmp.ne.s32.totalorder %s155, %s158
      %p164 = scmp.eq.s32.totalorder %s35, 0
      %p165 = por %p163, %p164
      %p166 = scmp.ne.s32.totalorder %s155, %s158
      %p167 = scmp.eq.s32.totalorder %s40, 3
      %p168 = por %p166, %p167
      %p169 = scmp.ne.s32.totalorder %s158, %s159
      %p170 = scmp.eq.s32.totalorder %s40, 0
      %p171 = por %p169, %p170
      %p172 = scmp.ne.s32.totalorder %s158, %s159
      %p173 = scmp.eq.s32.totalorder %s41, 3
      %p174 = por %p172, %p173
      %p176 = scmp.ne.s32.totalorder %s159, %s175
      %p177 = scmp.eq.s32.totalorder %s41, 0
      %p178 = por %p176, %p177
      %s179 = ssub.s32 %s35, %s42
      %p180 = scmp.eq.s32.totalorder %s179, 0
      %s182 = sadd.s32 %s181, 1
      %s183 = scalar_select %p180, %s181, %s182
      %p186 = pneg %p180
      %p187 = scmp.eq.s32.totalorder %s35, 3
      %p188 = por %p186, %p187
      %p189 = scmp.ne.s32.totalorder %s181, %s184
      %p190 = scmp.eq.s32.totalorder %s35, 0
      %p191 = por %p189, %p190
      %p192 = scmp.ne.s32.totalorder %s181, %s184
      %p193 = scmp.eq.s32.totalorder %s40, 3
      %p194 = por %p192, %p193
      %p195 = scmp.ne.s32.totalorder %s184, %s185
      %p196 = scmp.eq.s32.totalorder %s40, 0
      %p197 = por %p195, %p196
      %p198 = scmp.ne.s32.totalorder %s184, %s185
      %p199 = scmp.eq.s32.totalorder %s41, 3
      %p200 = por %p198, %p199
      %p202 = scmp.ne.s32.totalorder %s185, %s201
      %p203 = scmp.eq.s32.totalorder %s41, 0
      %p204 = por %p202, %p203
      %s205 = ssub.s32 %s35, %s42
      %p206 = scmp.eq.s32.totalorder %s205, 0
      %s208 = sadd.s32 %s207, 1
      %s209 = scalar_select %p206, %s207, %s208
      %p212 = pneg %p206
      %p213 = scmp.eq.s32.totalorder %s35, 3
      %p214 = por %p212, %p213
      %p215 = scmp.ne.s32.totalorder %s207, %s210
      %p216 = scmp.eq.s32.totalorder %s35, 0
      %p217 = por %p215, %p216
      %p218 = scmp.ne.s32.totalorder %s207, %s210
      %p219 = scmp.eq.s32.totalorder %s40, 3
      %p220 = por %p218, %p219
      %p221 = scmp.ne.s32.totalorder %s210, %s211
      %p222 = scmp.eq.s32.totalorder %s40, 0
      %p223 = por %p221, %p222
      %p224 = scmp.ne.s32.totalorder %s210, %s211
      %p225 = scmp.eq.s32.totalorder %s41, 3
      %p226 = por %p224, %p225
      %p228 = scmp.ne.s32.totalorder %s211, %s227
      %p229 = scmp.eq.s32.totalorder %s41, 0
      %p230 = por %p228, %p229
      %s231 = ssub.s32 %s35, %s42
      %p232 = scmp.eq.s32.totalorder %s231, 0
      %s234 = sadd.s32 %s233, 1
      %s235 = scalar_select %p232, %s233, %s234
      %p238 = pneg %p232
      %p239 = scmp.eq.s32.totalorder %s35, 3
      %p240 = por %p238, %p239
      %p241 = scmp.ne.s32.totalorder %s233, %s236
      %p242 = scmp.eq.s32.totalorder %s35, 0
      %p243 = por %p241, %p242
      %p244 = scmp.ne.s32.totalorder %s233, %s236
      %p245 = scmp.eq.s32.totalorder %s40, 3
      %p246 = por %p244, %p245
      %p247 = scmp.ne.s32.totalorder %s236, %s237
      %p248 = scmp.eq.s32.totalorder %s40, 0
      %p249 = por %p247, %p248
      %p250 = scmp.ne.s32.totalorder %s236, %s237
      %p251 = scmp.eq.s32.totalorder %s41, 3
      %p252 = por %p250, %p251
      %p254 = scmp.ne.s32.totalorder %s237, %s253
      %p255 = scmp.eq.s32.totalorder %s41, 0
      %p256 = por %p254, %p255
      %s257 = ssub.s32 %s35, %s42
      %p258 = scmp.eq.s32.totalorder %s257, 0
      %s260 = sadd.s32 %s259, 1
      %s261 = scalar_select %p258, %s259, %s260
      %p264 = pneg %p258
      %p265 = scmp.eq.s32.totalorder %s35, 3
      %p266 = por %p264, %p265
      %p267 = scmp.ne.s32.totalorder %s259, %s262
      %p268 = scmp.eq.s32.totalorder %s35, 0
      %p269 = por %p267, %p268
      %p270 = scmp.ne.s32.totalorder %s259, %s262
      %p271 = scmp.eq.s32.totalorder %s40, 3
      %p272 = por %p270, %p271
      %p273 = scmp.ne.s32.totalorder %s262, %s263
      %p274 = scmp.eq.s32.totalorder %s40, 0
      %p275 = por %p273, %p274
      %p276 = scmp.ne.s32.totalorder %s262, %s263
      %p277 = scmp.eq.s32.totalorder %s41, 3
      %p278 = por %p276, %p277
      %p280 = scmp.ne.s32.totalorder %s263, %s279
      %p281 = scmp.eq.s32.totalorder %s41, 0
      %p282 = por %p280, %p281
      %s283 = ssub.s32 %s35, %s42
      %p284 = scmp.eq.s32.totalorder %s283, 0
      %s286 = sadd.s32 %s285, 1
      %s287 = scalar_select %p284, %s285, %s286
      %p290 = pneg %p284
      %p291 = scmp.eq.s32.totalorder %s35, 3
      %p292 = por %p290, %p291
      %p293 = scmp.ne.s32.totalorder %s285, %s288
      %p294 = scmp.eq.s32.totalorder %s35, 0
      %p295 = por %p293, %p294
      %p296 = scmp.ne.s32.totalorder %s285, %s288
      %p297 = scmp.eq.s32.totalorder %s40, 3
      %p298 = por %p296, %p297
      %p299 = scmp.ne.s32.totalorder %s288, %s289
      %p300 = scmp.eq.s32.totalorder %s40, 0
      %p301 = por %p299, %p300
      %p302 = scmp.ne.s32.totalorder %s288, %s289
      %p303 = scmp.eq.s32.totalorder %s41, 3
      %p304 = por %p302, %p303
      %p306 = scmp.ne.s32.totalorder %s289, %s305
      %p307 = scmp.eq.s32.totalorder %s41, 0
      %p308 = por %p306, %p307
      %s310 = sadd.s32 %s309, 1
      %p313 = scmp.eq.s32.totalorder %s35, 3
      %p314 = scmp.ne.s32.totalorder %s309, %s311
      %p315 = scmp.eq.s32.totalorder %s35, 0
      %p316 = por %p314, %p315
      %p317 = scmp.ne.s32.totalorder %s309, %s311
      %p318 = scmp.eq.s32.totalorder %s40, 3
      %p319 = por %p317, %p318
      %p320 = scmp.ne.s32.totalorder %s311, %s312
      %p321 = scmp.eq.s32.totalorder %s40, 0
      %p322 = por %p320, %p321
      %p323 = scmp.ne.s32.totalorder %s311, %s312
      %p324 = scmp.eq.s32.totalorder %s41, 3
      %p325 = por %p323, %p324
      %p327 = scmp.ne.s32.totalorder %s312, %s326
      %p328 = scmp.eq.s32.totalorder %s41, 0
      %p329 = por %p327, %p328
      %s331 = sadd.s32 %s330, 1
      %p334 = scmp.eq.s32.totalorder %s35, 3
      %p335 = scmp.ne.s32.totalorder %s330, %s332
      %p336 = scmp.eq.s32.totalorder %s35, 0
      %p337 = por %p335, %p336
      %p338 = scmp.ne.s32.totalorder %s330, %s332
      %p339 = scmp.eq.s32.totalorder %s40, 3
      %p340 = por %p338, %p339
      %p341 = scmp.ne.s32.totalorder %s332, %s333
      %p342 = scmp.eq.s32.totalorder %s40, 0
      %p343 = por %p341, %p342
      %p344 = scmp.ne.s32.totalorder %s332, %s333
      %p345 = scmp.eq.s32.totalorder %s41, 3
      %p346 = por %p344, %p345
      %p348 = scmp.ne.s32.totalorder %s333, %s347
      %p349 = scmp.eq.s32.totalorder %s41, 0
      %p350 = por %p348, %p349
      %s351 = ssub.s32 %s35, %s42
      %p352 = scmp.eq.s32.totalorder %s351, 0
      %s354 = sadd.s32 %s353, 1
      %s355 = scalar_select %p352, %s353, %s354
      %p358 = pneg %p352
      %p359 = scmp.eq.s32.totalorder %s35, 3
      %p360 = por %p358, %p359
      %p361 = scmp.ne.s32.totalorder %s353, %s356
      %p362 = scmp.eq.s32.totalorder %s35, 0
      %p363 = por %p361, %p362
      %p364 = scmp.ne.s32.totalorder %s353, %s356
      %p365 = scmp.eq.s32.totalorder %s40, 3
      %p366 = por %p364, %p365
      %p367 = scmp.ne.s32.totalorder %s356, %s357
      %p368 = scmp.eq.s32.totalorder %s40, 0
      %p369 = por %p367, %p368
      %p370 = scmp.ne.s32.totalorder %s356, %s357
      %p371 = scmp.eq.s32.totalorder %s41, 3
      %p372 = por %p370, %p371
      %p374 = scmp.ne.s32.totalorder %s357, %s373
      %p375 = scmp.eq.s32.totalorder %s41, 0
      %p376 = por %p374, %p375
      %s378 = sadd.s32 %s377, 1
      %p381 = scmp.eq.s32.totalorder %s35, 3
      %p382 = scmp.ne.s32.totalorder %s377, %s379
      %p383 = scmp.eq.s32.totalorder %s35, 0
      %p384 = por %p382, %p383
      %p385 = scmp.ne.s32.totalorder %s377, %s379
      %p386 = scmp.eq.s32.totalorder %s40, 3
      %p387 = por %p385, %p386
      %p388 = scmp.ne.s32.totalorder %s379, %s380
      %p389 = scmp.eq.s32.totalorder %s40, 0
      %p390 = por %p388, %p389
      %p391 = scmp.ne.s32.totalorder %s379, %s380
      %p392 = scmp.eq.s32.totalorder %s41, 3
      %p393 = por %p391, %p392
      %p395 = scmp.ne.s32.totalorder %s380, %s394
      %p396 = scmp.eq.s32.totalorder %s41, 0
      %p397 = por %p395, %p396
      %s399 = sadd.s32 %s398, 1
      %p402 = scmp.eq.s32.totalorder %s35, 3
      %p403 = scmp.ne.s32.totalorder %s398, %s400
      %p404 = scmp.eq.s32.totalorder %s35, 0
      %p405 = por %p403, %p404
      %p406 = scmp.ne.s32.totalorder %s398, %s400
      %p407 = scmp.eq.s32.totalorder %s40, 3
      %p408 = por %p406, %p407
      %p409 = scmp.ne.s32.totalorder %s400, %s401
      %p410 = scmp.eq.s32.totalorder %s40, 0
      %p411 = por %p409, %p410
      %p412 = scmp.ne.s32.totalorder %s400, %s401
      %p413 = scmp.eq.s32.totalorder %s41, 3
      %p414 = por %p412, %p413
      %p416 = scmp.ne.s32.totalorder %s401, %s415
      %p417 = scmp.eq.s32.totalorder %s41, 0
      %p418 = por %p416, %p417
      %s420 = sadd.s32 %s419, 1
      %p423 = scmp.eq.s32.totalorder %s35, 3
      %p424 = scmp.ne.s32.totalorder %s419, %s421
      %p425 = scmp.eq.s32.totalorder %s35, 0
      %p426 = por %p424, %p425
      %p427 = scmp.ne.s32.totalorder %s419, %s421
      %p428 = scmp.eq.s32.totalorder %s40, 3
      %p429 = por %p427, %p428
      %p430 = scmp.ne.s32.totalorder %s421, %s422
      %p431 = scmp.eq.s32.totalorder %s40, 0
      %p432 = por %p430, %p431
      %p433 = scmp.ne.s32.totalorder %s421, %s422
      %p434 = scmp.eq.s32.totalorder %s41, 3
      %p435 = por %p433, %p434
      %p437 = scmp.ne.s32.totalorder %s422, %s436
      %p438 = scmp.eq.s32.totalorder %s41, 0
      %p439 = por %p437, %p438
      %p440 = scmp.le.s32.totalorder 1, %s35
      %p441 = scmp.lt.s32.totalorder %s35, 5
      %p442 = pnand %p440, %p441
      %p443 = pneg %p442
      // Predicated region
      $region9: #{_lambda_.2} parent=5 // pred_check
        _
      $region10: #{_lambda_.2} parent=5 // pred_check_branch
        %445 = sbr.rel (%p442) target = $region12
      $region11: #{_lambda_.2} parent=5 // pred_region
        %s446 = ssub.s32 %s35, 1
        // Predicated region
        $region13: #{_lambda_.2} parent=11 // pred_check
          %p447 = pneg %p56
        $region14: #{_lambda_.2} parent=11 // pred_check_branch
          %449 = sbr.rel (%p447) target = $region16
        $region15: #{_lambda_.2} parent=11 // pred_region
          _
        $region16: #{_lambda_.2} parent=11 // pred_fallthru
          _
        // Predicated region
        $region17: #{_lambda_.2} parent=11 // pred_check
          %p450 = pneg %p77
        $region18: #{_lambda_.2} parent=11 // pred_check_branch
          %452 = sbr.rel (%p450) target = $region20
        $region19: #{_lambda_.2} parent=11 // pred_region
          _
        $region20: #{_lambda_.2} parent=11 // pred_fallthru
          _
        // Predicated region
        $region21: #{_lambda_.2} parent=11 // pred_check
          %p453 = pneg %p98
        $region22: #{_lambda_.2} parent=11 // pred_check_branch
          %455 = sbr.rel (%p453) target = $region24
        $region23: #{_lambda_.2} parent=11 // pred_region
          %s457 = ssub.s32 16, 16
          %458 = vsyncadd [#allocation6], %s457
          %s460 = sshll.u32 [#allocation5], 4
          %s461 = int_to_ptr.vmem [resolvable:$true] %s460
          %463 = dma.hbm_to_vmem [thread:$0]  %s2, 16, %s461, [#allocation6]
        $region24: #{_lambda_.2} parent=11 // pred_fallthru
          _
        // Predicated region
        $region25: #{_lambda_.2} parent=11 // pred_check
          %p464 = pneg %p119
        $region26: #{_lambda_.2} parent=11 // pred_check_branch
          %466 = sbr.rel (%p464) target = $region28
        $region27: #{_lambda_.2} parent=11 // pred_region
          _
        $region28: #{_lambda_.2} parent=11 // pred_fallthru
          _
        // Predicated region
        $region29: #{_lambda_.2} parent=11 // pred_check
          %p467 = pneg %p322
        $region30: #{_lambda_.2} parent=11 // pred_check_branch
          %469 = sbr.rel (%p467) target = $region32
        $region31: #{_lambda_.2} parent=11 // pred_region
          %s471 = ssub.s32 256, 256
          %472 = vsyncadd [#allocation15], %s471
          %s473 = sshll.u32 [#allocation16], 4
          %s474 = int_to_ptr.vmem [resolvable:$true] %s473
          %479 = dma.hbm_to_vmem [thread:$0]  %s11, 256, %s474, [#allocation15], 64, 64, 4
        $region32: #{_lambda_.2} parent=11 // pred_fallthru
          _
        // Predicated region
        $region33: #{_lambda_.2} parent=11 // pred_check
          %p480 = pneg %p343
        $region34: #{_lambda_.2} parent=11 // pred_check_branch
          %482 = sbr.rel (%p480) target = $region36
        $region35: #{_lambda_.2} parent=11 // pred_region
          %s484 = ssub.s32 16, 16
          %485 = vsyncadd [#allocation18], %s484
          %s487 = sshll.u32 [#allocation17], 4
          %s488 = int_to_ptr.vmem [resolvable:$true] %s487
          %490 = dma.hbm_to_vmem [thread:$0]  %s12, 16, %s488, [#allocation18]
        $region36: #{_lambda_.2} parent=11 // pred_fallthru
          _
      $region12: #{_lambda_.2} parent=5 // pred_fallthru
        _
      %p491 = scmp.lt.s32.totalorder %s35, 4
      // Predicated region
      $region37: #{_lambda_.2} parent=5 // pred_check
        %p492 = pneg %p491
      $region38: #{_lambda_.2} parent=5 // pred_check_branch
        %494 = sbr.rel (%p492) target = $region40
      $region39: #{_lambda_.2} parent=5 // pred_region
        // Predicated region
        $region41: #{_lambda_.2} parent=39 // pred_check
          %p495 = pneg %p139
        $region42: #{_lambda_.2} parent=39 // pred_check_branch
          %497 = sbr.rel (%p495) target = $region44
        $region43: #{_lambda_.2} parent=39 // pred_region
          %s498 = sand.u32 %s35, 1
          %s499 = scalar_lea.sflag [#allocation9], %s498
          %s500 = sand.u32 %s129, 1
          %s501 = smul.addr %s500, 16
          %s502 = scalar_lea.vmem [#allocation8], %s501
          %s504 = ssub.s32 256, 256
          %505 = vsyncadd %s499, %s504
          %s506 = smul.addr %s35, 4
          %s507 = smul.addr %s506, 64
          %s508 = scalar_lea.hbm %s4, %s507
          %s509 = sshll.u32 %s502, 4
          %s510 = int_to_ptr.vmem [resolvable:$true] %s509
          %515 = dma.hbm_to_vmem [thread:$0]  %s508, 256, %s510, %s499, 64, 64, 4
        $region44: #{_lambda_.2} parent=39 // pred_fallthru
          _
        // Predicated region
        $region45: #{_lambda_.2} parent=39 // pred_check
          %p516 = pneg %p165
        $region46: #{_lambda_.2} parent=39 // pred_check_branch
          %518 = sbr.rel (%p516) target = $region48
        $region47: #{_lambda_.2} parent=39 // pred_region
          %s519 = sand.u32 %s35, 1
          %s520 = scalar_lea.sflag [#allocation9], %s519
          %s521 = sand.u32 %s155, 1
          %s522 = scalar_lea.vmem [#allocation10], %s521
          %s524 = ssub.s32 16, 16
          %525 = vsyncadd %s520, %s524
          %s526 = smul.addr %s35, 16
          %s527 = scalar_lea.hbm %s5, %s526
          %s529 = sshll.u32 %s522, 4
          %s530 = int_to_ptr.vmem [resolvable:$true] %s529
          %532 = dma.hbm_to_vmem [thread:$0]  %s527, 16, %s530, %s520
        $region48: #{_lambda_.2} parent=39 // pred_fallthru
          _
        // Predicated region
        $region49: #{_lambda_.2} parent=39 // pred_check
          %p533 = pneg %p191
        $region50: #{_lambda_.2} parent=39 // pred_check_branch
          %535 = sbr.rel (%p533) target = $region52
        $region51: #{_lambda_.2} parent=39 // pred_region
          %s536 = sand.u32 %s35, 1
          %s537 = scalar_lea.sflag [#allocation12], %s536
          %s538 = sand.u32 %s181, 1
          %s539 = smul.addr %s538, 16
          %s540 = scalar_lea.vmem [#allocation11], %s539
          %s542 = ssub.s32 256, 256
          %543 = vsyncadd %s537, %s542
          %s544 = smul.addr %s35, 4
          %s545 = smul.addr %s544, 64
          %s546 = scalar_lea.hbm %s6, %s545
          %s547 = sshll.u32 %s540, 4
          %s548 = int_to_ptr.vmem [resolvable:$true] %s547
          %553 = dma.hbm_to_vmem [thread:$0]  %s546, 256, %s548, %s537, 64, 64, 4
        $region52: #{_lambda_.2} parent=39 // pred_fallthru
          _
        // Predicated region
        $region53: #{_lambda_.2} parent=39 // pred_check
          %p554 = pneg %p217
        $region54: #{_lambda_.2} parent=39 // pred_check_branch
          %556 = sbr.rel (%p554) target = $region56
        $region55: #{_lambda_.2} parent=39 // pred_region
          %s557 = sand.u32 %s35, 1
          %s558 = scalar_lea.sflag [#allocation12], %s557
          %s559 = sand.u32 %s207, 1
          %s560 = scalar_lea.vmem [#allocation13], %s559
          %s562 = ssub.s32 16, 16
          %563 = vsyncadd %s558, %s562
          %s564 = smul.addr %s35, 16
          %s565 = scalar_lea.hbm %s7, %s564
          %s567 = sshll.u32 %s560, 4
          %s568 = int_to_ptr.vmem [resolvable:$true] %s567
          %570 = dma.hbm_to_vmem [thread:$0]  %s565, 16, %s568, %s558
        $region56: #{_lambda_.2} parent=39 // pred_fallthru
          _
        // Predicated region
        $region57: #{_lambda_.2} parent=39 // pred_check
          %p571 = pneg %p243
        $region58: #{_lambda_.2} parent=39 // pred_check_branch
          %573 = sbr.rel (%p571) target = $region60
        $region59: #{_lambda_.2} parent=39 // pred_region
          %p574 = scmp.lt.s32.totalorder %s35, 3
          %s575 = scalar_select %p574, %s35, 3
          %s576 = smul.addr %s575, 4
          %s577 = smul.addr %s576, 8
          %s578 = scalar_lea.vmem %s8, %s577
        $region60: #{_lambda_.2} parent=39 // pred_fallthru
          _
        // Predicated region
        $region61: #{_lambda_.2} parent=39 // pred_check
          %p579 = pneg %p269
        $region62: #{_lambda_.2} parent=39 // pred_check_branch
          %581 = sbr.rel (%p579) target = $region64
        $region63: #{_lambda_.2} parent=39 // pred_region
          %p582 = scmp.lt.s32.totalorder %s35, 3
          %s583 = scalar_select %p582, %s35, 3
          %s584 = smul.addr %s583, 8
          %s585 = smul.addr %s584, 4
          %s586 = scalar_lea.vmem %s9, %s585
        $region64: #{_lambda_.2} parent=39 // pred_fallthru
          _
        // Predicated region
        $region65: #{_lambda_.2} parent=39 // pred_check
          %p587 = pneg %p295
        $region66: #{_lambda_.2} parent=39 // pred_check_branch
          %589 = sbr.rel (%p587) target = $region68
        $region67: #{_lambda_.2} parent=39 // pred_region
          %s590 = sand.u32 %s35, 1
          %s591 = scalar_lea.sflag [#allocation15], %s590
          %s592 = sand.u32 %s285, 1
          %s593 = scalar_lea.vmem [#allocation14], %s592
          %s595 = ssub.s32 16, 16
          %596 = vsyncadd %s591, %s595
          %s597 = smul.addr %s35, 16
          %s598 = scalar_lea.hbm %s10, %s597
          %s600 = sshll.u32 %s593, 4
          %s601 = int_to_ptr.vmem [resolvable:$true] %s600
          %603 = dma.hbm_to_vmem [thread:$0]  %s598, 16, %s601, %s591
        $region68: #{_lambda_.2} parent=39 // pred_fallthru
          _
      $region40: #{_lambda_.2} parent=5 // pred_fallthru
        _
      %p604 = scmp.le.s32.totalorder 1, %s35
      %p605 = scmp.lt.s32.totalorder %s35, 5
      %p606 = pnand %p604, %p605
      %p607 = pneg %p606
      // Predicated region
      $region69: #{_lambda_.2} parent=5 // pred_check
        _
      $region70: #{_lambda_.2} parent=5 // pred_check_branch
        %609 = sbr.rel (%p606) target = $region72
      $region71: #{_lambda_.2} parent=5 // pred_region
        %s610 = ssub.s32 %s35, 1
        // Predicated region
        $region73: #{_lambda_.2} parent=71 // pred_check
          %p611 = pneg %p98
        $region74: #{_lambda_.2} parent=71 // pred_check_branch
          %613 = sbr.rel (%p611) target = $region76
        $region75: #{_lambda_.2} parent=71 // pred_region
          %614 = dma.done [#allocation6], 16
        $region76: #{_lambda_.2} parent=71 // pred_fallthru
          _
        %s615 = sand.u32 %s40, 1
        %s616 = scalar_lea.sflag [#allocation9], %s615
        %s617 = sand.u32 %s132, 1
        %s618 = smul.addr %s617, 16
        %s619 = scalar_lea.vmem [#allocation8], %s618
        // Predicated region
        $region77: #{_lambda_.2} parent=71 // pred_check
          %p620 = pneg %p145
        $region78: #{_lambda_.2} parent=71 // pred_check_branch
          %622 = sbr.rel (%p620) target = $region80
        $region79: #{_lambda_.2} parent=71 // pred_region
          %623 = dma.done %s616, 256
        $region80: #{_lambda_.2} parent=71 // pred_fallthru
          _
        %s624 = sand.u32 %s40, 1
        %s625 = scalar_lea.sflag [#allocation9], %s624
        %s626 = sand.u32 %s158, 1
        %s627 = scalar_lea.vmem [#allocation10], %s626
        // Predicated region
        $region81: #{_lambda_.2} parent=71 // pred_check
          %p628 = pneg %p171
        $region82: #{_lambda_.2} parent=71 // pred_check_branch
          %630 = sbr.rel (%p628) target = $region84
        $region83: #{_lambda_.2} parent=71 // pred_region
          %631 = dma.done %s625, 16
        $region84: #{_lambda_.2} parent=71 // pred_fallthru
          _
        %s632 = sand.u32 %s40, 1
        %s633 = scalar_lea.sflag [#allocation12], %s632
        %s634 = sand.u32 %s184, 1
        %s635 = smul.addr %s634, 16
        %s636 = scalar_lea.vmem [#allocation11], %s635
        // Predicated region
        $region85: #{_lambda_.2} parent=71 // pred_check
          %p637 = pneg %p197
        $region86: #{_lambda_.2} parent=71 // pred_check_branch
          %639 = sbr.rel (%p637) target = $region88
        $region87: #{_lambda_.2} parent=71 // pred_region
          %640 = dma.done %s633, 256
        $region88: #{_lambda_.2} parent=71 // pred_fallthru
          _
        %s641 = sand.u32 %s40, 1
        %s642 = scalar_lea.sflag [#allocation12], %s641
        %s643 = sand.u32 %s210, 1
        %s644 = scalar_lea.vmem [#allocation13], %s643
        // Predicated region
        $region89: #{_lambda_.2} parent=71 // pred_check
          %p645 = pneg %p223
        $region90: #{_lambda_.2} parent=71 // pred_check_branch
          %647 = sbr.rel (%p645) target = $region92
        $region91: #{_lambda_.2} parent=71 // pred_region
          %648 = dma.done %s642, 16
        $region92: #{_lambda_.2} parent=71 // pred_fallthru
          _
        %s649 = sand.u32 %s40, 1
        %s650 = scalar_lea.sflag [#allocation15], %s649
        %s651 = sand.u32 %s288, 1
        %s652 = scalar_lea.vmem [#allocation14], %s651
        // Predicated region
        $region93: #{_lambda_.2} parent=71 // pred_check
          %p653 = pneg %p301
        $region94: #{_lambda_.2} parent=71 // pred_check_branch
          %655 = sbr.rel (%p653) target = $region96
        $region95: #{_lambda_.2} parent=71 // pred_region
          %656 = dma.done %s650, 16
        $region96: #{_lambda_.2} parent=71 // pred_fallthru
          _
        // Predicated region
        $region97: #{_lambda_.2} parent=71 // pred_check
          %p657 = pneg %p322
        $region98: #{_lambda_.2} parent=71 // pred_check_branch
          %659 = sbr.rel (%p657) target = $region100
        $region99: #{_lambda_.2} parent=71 // pred_region
          %660 = dma.done [#allocation15], 256
        $region100: #{_lambda_.2} parent=71 // pred_fallthru
          _
        // Predicated region
        $region101: #{_lambda_.2} parent=71 // pred_check
          %p661 = pneg %p343
        $region102: #{_lambda_.2} parent=71 // pred_check_branch
          %663 = sbr.rel (%p661) target = $region104
        $region103: #{_lambda_.2} parent=71 // pred_region
          %664 = dma.done [#allocation18], 16
        $region104: #{_lambda_.2} parent=71 // pred_fallthru
          _
        %p665 = pneg %p56
        %p666 = pneg %p53
        %p667 = pneg %p77
        %p668 = pneg %p74
        %p669 = pneg %p98
        %p670 = pneg %p95
        %p671 = pneg %p119
        %p672 = pneg %p116
        %s673 = sand.u32 %s40, 1
        %s674 = scalar_lea.sflag [#allocation9], %s673
        %s675 = sand.u32 %s132, 1
        %s676 = smul.addr %s675, 16
        %s677 = scalar_lea.vmem [#allocation8], %s676
        %p678 = pneg %p145
        %p679 = pneg %p142
        %s680 = sand.u32 %s40, 1
        %s681 = scalar_lea.sflag [#allocation9], %s680
        %s682 = sand.u32 %s158, 1
        %s683 = scalar_lea.vmem [#allocation10], %s682
        %p684 = pneg %p171
        %p685 = pneg %p168
        %s686 = sand.u32 %s40, 1
        %s687 = scalar_lea.sflag [#allocation12], %s686
        %s688 = sand.u32 %s184, 1
        %s689 = smul.addr %s688, 16
        %s690 = scalar_lea.vmem [#allocation11], %s689
        %p691 = pneg %p197
        %p692 = pneg %p194
        %s693 = sand.u32 %s40, 1
        %s694 = scalar_lea.sflag [#allocation12], %s693
        %s695 = sand.u32 %s210, 1
        %s696 = scalar_lea.vmem [#allocation13], %s695
        %p697 = pneg %p223
        %p698 = pneg %p220
        %p699 = scmp.lt.s32.totalorder %s40, 3
        %s700 = scalar_select %p699, %s40, 3
        %s701 = smul.addr %s700, 4
        %s702 = smul.addr %s701, 8
        %s703 = scalar_lea.vmem %s8, %s702
        %p704 = pneg %p249
        %p705 = pneg %p246
        %p706 = scmp.lt.s32.totalorder %s40, 3
        %s707 = scalar_select %p706, %s40, 3
        %s708 = smul.addr %s707, 8
        %s709 = smul.addr %s708, 4
        %s710 = scalar_lea.vmem %s9, %s709
        %p711 = pneg %p275
        %p712 = pneg %p272
        %s713 = sand.u32 %s40, 1
        %s714 = scalar_lea.sflag [#allocation15], %s713
        %s715 = sand.u32 %s288, 1
        %s716 = scalar_lea.vmem [#allocation14], %s715
        %p717 = pneg %p301
        %p718 = pneg %p298
        %p719 = pneg %p322
        %p720 = pneg %p319
        %p721 = pneg %p343
        %p722 = pneg %p340
        %p723 = pneg %p369
        %p724 = pneg %p366
        %p725 = scmp.lt.s32.totalorder %s40, 3
        %s726 = scalar_select %p725, %s40, 3
        %s727 = smul.addr %s726, 4
        %s728 = scalar_lea.vmem %s13, %s727
        %p729 = pneg %p390
        %p730 = pneg %p387
        %p731 = pneg %p411
        %p732 = pneg %p408
        %p733 = pneg %p432
        %p734 = pneg %p429
        %p735 = scmp.lt.s32.totalorder %s40, 3
        %s736 = scalar_select %p735, %s40, 3
        %s737 = smul.addr %s736, 4
        %s738 = smul.addr %s737, 8
        %s739 = scalar_lea.vmem %s8, %s738
        %p740 = scmp.lt.s32.totalorder %s40, 3
        %s741 = scalar_select %p740, %s40, 3
        %s742 = smul.addr %s741, 8
        %s743 = smul.addr %s742, 4
        %s744 = scalar_lea.vmem %s9, %s743
        %p745 = scmp.lt.s32.totalorder %s40, 3
        %s746 = scalar_select %p745, %s40, 3
        %s747 = smul.addr %s746, 4
        %s748 = scalar_lea.vmem %s13, %s747
        %v750 = vld [vmem:[%s3] sm:$0xff]
        %v751 = vld [vmem:[%s3 + $0x8] sm:$0xff]
        %v752 = vld [vmem:[%s3 + $0x10] sm:$0xff]
        %v753 = vld [vmem:[%s3 + $0x18] sm:$0xff]
        %v754 = vld [vmem:[%s3 + $0x20] sm:$0xff]
        %v755 = vld [vmem:[%s3 + $0x28] sm:$0xff]
        %v756 = vld [vmem:[%s3 + $0x30] sm:$0xff]
        %v757 = vld [vmem:[%s3 + $0x38] sm:$0xff]
        %p758 = scmp.eq.s32.totalorder %s40, 0
        // Predicated region
        $region105: #{_lambda_.2} parent=71 // pred_check
          %p759 = pneg %p758
        $region106: #{_lambda_.2} parent=71 // pred_check_branch
          %761 = sbr.rel (%p759) target = $region108
        $region107: #{_lambda_.2} parent=71 // pred_region
          %v762 = vld [vmem:[%s0] sm:$0xf]
          %v763 = vpack.c.bf16 %v762, %v762
          %v764 = vld [vmem:[%s1] sm:$0xf]
          %v765 = vld [vmem:[%s1 + $0x4] sm:$0xf]
          %v766 = vld [vmem:[%s1 + $0x8] sm:$0xf]
          %v767 = vld [vmem:[%s1 + $0xc] sm:$0xf]
          %v768 = vld [vmem:[%s1 + $0x10] sm:$0xf]
          %v769 = vld [vmem:[%s1 + $0x14] sm:$0xf]
          %v770 = vld [vmem:[%s1 + $0x18] sm:$0xf]
          %v771 = vld [vmem:[%s1 + $0x1c] sm:$0xf]
          %v772 = vld [vmem:[#allocation5] sm:$0x1]
          %v774 = vlaneseq
          %v775 = vshrl.u32 %v774, 7
          %v776 = vsub.s32 0, %v775
          %v777 = vrot.slane %v772, %v776
          %v787 = vunpack.c.l.b16 %v764
          %v788 = vunpack.c.l.b16 %v765
          %v789 = vunpack.c.l.b16 %v766
          %v790 = vunpack.c.l.b16 %v767
          %v791 = vunpack.c.l.b16 %v768
          %v792 = vunpack.c.l.b16 %v769
          %v793 = vunpack.c.l.b16 %v770
          %v794 = vunpack.c.l.b16 %v771
          %v795 = vpack.c.b16 %v788, %v787
          %v796 = vpack.c.b16 %v790, %v789
          %v797 = vpack.c.b16 %v792, %v791
          %v798 = vpack.c.b16 %v794, %v793
          %vm803 = vcmask 523264
          %v805 = vsel %vm803, %v763, 0
          %807 = vmatprep.subr.bf16.mxu0 0
          %808 = vmatpush1.bf16.msra.mxu0 0
          %809 = vmatprep.subr.bf16.mxu0 0
          %810 = vmatpush1.bf16.msra.mxu0 0
          %811 = vmatprep.subr.bf16.mxu0 0
          %812 = vmatpush1.bf16.msra.mxu0 0
          %813 = vmatprep.subr.bf16.mxu0 0
          %814 = vmatpush1.bf16.msra.mxu0 0
          %815 = vmatprep.subr.bf16.mxu0 0
          %816 = vmatpush1.bf16.msra.mxu0 %v798
          %817 = vmatprep.subr.bf16.mxu0 0
          %818 = vmatpush1.bf16.msra.mxu0 %v797
          %819 = vmatprep.subr.bf16.mxu0 0
          %820 = vmatpush1.bf16.msra.mxu0 %v796
          %821 = vmatprep.subr.bf16.mxu0 0
          %822 = vmatpush1.bf16.msra.mxu0 %v795
          %823 = vmatprep.subr.bf16.mxu0 0
          %824 = vmatpush2.bf16.msra.mxu0 0
          %825 = vmatprep.subr.bf16.mxu0 0
          %826 = vmatpush2.bf16.msra.mxu0 0
          %827 = vmatprep.subr.bf16.mxu0 0
          %828 = vmatpush2.bf16.msra.mxu0 0
          %829 = vmatprep.subr.bf16.mxu0 0
          %830 = vmatpush2.bf16.msra.mxu0 0
          %831 = vmatprep.subr.bf16.mxu0 0
          %832 = vmatpush2.bf16.msra.mxu0 0
          %833 = vmatprep.subr.bf16.mxu0 0
          %834 = vmatpush2.bf16.msra.mxu0 0
          %835 = vmatprep.subr.bf16.mxu0 0
          %836 = vmatpush2.bf16.msra.mxu0 0
          %837 = vmatprep.subr.bf16.mxu0 0
          %838 = vmatpush2.bf16.msra.mxu0 0
          %839 = vmatprep.mubr.bf16.mxu0 0
          %840 = vmatmul.mubr.bf16.gmra.mxu0 %v805
          %v841 = vpop.f32.mrf.mxu0
          %v842 = vadd.f32 %v777, %v841
          %v843 = vpop.f32.mrf.mxu0
          %v844 = vpop.f32.mrf.mxu0
          %v845 = vpop.f32.mrf.mxu0
          %846 = vdwg.mxu0
          %vm847 = vcmask 257024
          %848 = vst.msk [vmem:[#allocation2] sm:$0xf] %vm847, %v842
          %849 = vst.msk [vmem:[#allocation3] sm:$0xf] %vm847, %v842
        $region108: #{_lambda_.2} parent=71 // pred_fallthru
          _
        %v850 = vld [vmem:[#allocation2] sm:$0xf]
        %v851 = vld [vmem:[#allocation3] sm:$0xf]
        %v852 = vpack.c.bf16 %v751, %v750
        %v853 = vpack.c.bf16 %v753, %v752
        %v854 = vpack.c.bf16 %v755, %v754
        %v855 = vpack.c.bf16 %v757, %v756
        %v856 = vld [vmem:[%s619] sm:$0xf]
        %v857 = vld [vmem:[%s619 + $0x4] sm:$0xf]
        %v858 = vld [vmem:[%s619 + $0x8] sm:$0xf]
        %v859 = vld [vmem:[%s619 + $0xc] sm:$0xf]
        %v864 = vunpack.c.l.b16 %v856
        %v865 = vunpack.c.l.b16 %v857
        %v866 = vunpack.c.l.b16 %v858
        %v867 = vunpack.c.l.b16 %v859
        %v868 = vpack.c.b16 %v865, %v864
        %v869 = vpack.c.b16 %v867, %v866
        %vm872 = vcmask 261120
        %v874 = vsel %vm872, %v852, 0
        %v877 = vsel %vm872, %v853, 0
        %v880 = vsel %vm872, %v854, 0
        %v883 = vsel %vm872, %v855, 0
        %885 = vmatprep.subr.bf16.mxu0 0
        %886 = vmatpush1.bf16.msra.mxu0 0
        %887 = vmatprep.subr.bf16.mxu0 0
        %888 = vmatpush1.bf16.msra.mxu0 0
        %889 = vmatprep.subr.bf16.mxu0 0
        %890 = vmatpush1.bf16.msra.mxu0 0
        %891 = vmatprep.subr.bf16.mxu0 0
        %892 = vmatpush1.bf16.msra.mxu0 0
        %893 = vmatprep.subr.bf16.mxu0 0
        %894 = vmatpush1.bf16.msra.mxu0 0
        %895 = vmatprep.subr.bf16.mxu0 0
        %896 = vmatpush1.bf16.msra.mxu0 0
        %897 = vmatprep.subr.bf16.mxu0 0
        %898 = vmatpush1.bf16.msra.mxu0 %v869
        %899 = vmatprep.subr.bf16.mxu0 0
        %900 = vmatpush1.bf16.msra.mxu0 %v868
        %901 = vmatprep.subr.bf16.mxu0 0
        %902 = vmatpush2.bf16.msra.mxu0 0
        %903 = vmatprep.subr.bf16.mxu0 0
        %904 = vmatpush2.bf16.msra.mxu0 0
        %905 = vmatprep.subr.bf16.mxu0 0
        %906 = vmatpush2.bf16.msra.mxu0 0
        %907 = vmatprep.subr.bf16.mxu0 0
        %908 = vmatpush2.bf16.msra.mxu0 0
        %909 = vmatprep.subr.bf16.mxu0 0
        %910 = vmatpush2.bf16.msra.mxu0 0
        %911 = vmatprep.subr.bf16.mxu0 0
        %912 = vmatpush2.bf16.msra.mxu0 0
        %913 = vmatprep.subr.bf16.mxu0 0
        %914 = vmatpush2.bf16.msra.mxu0 0
        %915 = vmatprep.subr.bf16.mxu0 0
        %916 = vmatpush2.bf16.msra.mxu0 0
        %917 = vmatprep.mubr.bf16.mxu0 0
        %918 = vmatmul.mubr.bf16.gmra.mxu0 %v874
        %v919 = vpop.f32.mrf.mxu0
        %v920 = vadd.f32 0.0, %v919
        %v921 = vpop.f32.mrf.mxu0
        %v922 = vpop.f32.mrf.mxu0
        %v923 = vadd.f32 0.0, %v922
        %v924 = vpop.f32.mrf.mxu0
        %925 = vmatprep.mubr.bf16.mxu0 0
        %926 = vmatmul.mubr.bf16.gmra.mxu0 %v877
        %v927 = vpop.f32.mrf.mxu0
        %v928 = vadd.f32 0.0, %v927
        %v929 = vpop.f32.mrf.mxu0
        %v930 = vpop.f32.mrf.mxu0
        %v931 = vadd.f32 0.0, %v930
        %v932 = vpop.f32.mrf.mxu0
        %933 = vmatprep.mubr.bf16.mxu0 0
        %934 = vmatmul.mubr.bf16.gmra.mxu0 %v880
        %v935 = vpop.f32.mrf.mxu0
        %v936 = vadd.f32 0.0, %v935
        %v937 = vpop.f32.mrf.mxu0
        %v938 = vpop.f32.mrf.mxu0
        %v939 = vadd.f32 0.0, %v938
        %v940 = vpop.f32.mrf.mxu0
        %941 = vmatprep.mubr.bf16.mxu0 0
        %942 = vmatmul.mubr.bf16.gmra.mxu0 %v883
        %v943 = vpop.f32.mrf.mxu0
        %v944 = vadd.f32 0.0, %v943
        %v945 = vpop.f32.mrf.mxu0
        %v946 = vpop.f32.mrf.mxu0
        %v947 = vadd.f32 0.0, %v946
        %v948 = vpop.f32.mrf.mxu0
        %949 = vdwg.mxu0
        %v950 = vld [vmem:[%s627] sm:$0x1]
        %v952 = vlaneseq
        %v953 = vshrl.u32 %v952, 7
        %v954 = vsub.s32 0, %v953
        %v955 = vrot.slane %v950, %v954
        %v957 = vadd.f32 %v920, %v955
        %v958 = vadd.f32 %v923, %v955
        %v959 = vadd.f32 %v928, %v955
        %v960 = vadd.f32 %v931, %v955
        %v961 = vadd.f32 %v936, %v955
        %v962 = vadd.f32 %v939, %v955
        %v963 = vadd.f32 %v944, %v955
        %v964 = vadd.f32 %v947, %v955
        %v965 = vld [vmem:[%s636] sm:$0xf]
        %v966 = vld [vmem:[%s636 + $0x4] sm:$0xf]
        %v967 = vld [vmem:[%s636 + $0x8] sm:$0xf]
        %v968 = vld [vmem:[%s636 + $0xc] sm:$0xf]
        %v969 = vld [vmem:[%s644] sm:$0x1]
        %v970 = vld [vmem:[%s739] sm:$0xff]
        %v971 = vld [vmem:[%s739 + $0x8] sm:$0xff]
        %v972 = vld [vmem:[%s739 + $0x10] sm:$0xff]
        %v973 = vld [vmem:[%s739 + $0x18] sm:$0xff]
        %v974 = vpack.c.bf16 %v850, %v850
        %v976 = vlaneseq
        %v977 = vshrl.u32 %v976, 7
        %v978 = vsub.s32 0, %v977
        %v979 = vrot.slane %v969, %v978
        %v985 = vunpack.c.l.b16 %v965
        %v986 = vunpack.c.l.b16 %v966
        %v987 = vunpack.c.l.b16 %v967
        %v988 = vunpack.c.l.b16 %v968
        %v989 = vpack.c.b16 %v986, %v985
        %v990 = vpack.c.b16 %v988, %v987
        %v994 = vsel %vm872, %v974, 0
        %996 = vmatprep.subr.bf16.mxu0 0
        %997 = vmatpush1.bf16.msra.mxu0 0
        %998 = vmatprep.subr.bf16.mxu0 0
        %999 = vmatpush1.bf16.msra.mxu0 0
        %1000 = vmatprep.subr.bf16.mxu0 0
        %1001 = vmatpush1.bf16.msra.mxu0 0
        %1002 = vmatprep.subr.bf16.mxu0 0
        %1003 = vmatpush1.bf16.msra.mxu0 0
        %1004 = vmatprep.subr.bf16.mxu0 0
        %1005 = vmatpush1.bf16.msra.mxu0 0
        %1006 = vmatprep.subr.bf16.mxu0 0
        %1007 = vmatpush1.bf16.msra.mxu0 0
        %1008 = vmatprep.subr.bf16.mxu0 0
        %1009 = vmatpush1.bf16.msra.mxu0 %v990
        %1010 = vmatprep.subr.bf16.mxu0 0
        %1011 = vmatpush1.bf16.msra.mxu0 %v989
        %1012 = vmatprep.subr.bf16.mxu0 0
        %1013 = vmatpush2.bf16.msra.mxu0 0
        %1014 = vmatprep.subr.bf16.mxu0 0
        %1015 = vmatpush2.bf16.msra.mxu0 0
        %1016 = vmatprep.subr.bf16.mxu0 0
        %1017 = vmatpush2.bf16.msra.mxu0 0
        %1018 = vmatprep.subr.bf16.mxu0 0
        %1019 = vmatpush2.bf16.msra.mxu0 0
        %1020 = vmatprep.subr.bf16.mxu0 0
        %1021 = vmatpush2.bf16.msra.mxu0 0
        %1022 = vmatprep.subr.bf16.mxu0 0
        %1023 = vmatpush2.bf16.msra.mxu0 0
        %1024 = vmatprep.subr.bf16.mxu0 0
        %1025 = vmatpush2.bf16.msra.mxu0 0
        %1026 = vmatprep.subr.bf16.mxu0 0
        %1027 = vmatpush2.bf16.msra.mxu0 0
        %1028 = vmatprep.mubr.bf16.mxu0 0
        %1029 = vmatmul.mubr.bf16.gmra.mxu0 %v994
        %v1030 = vpop.f32.mrf.mxu0
        %v1031 = vadd.f32 %v979, %v1030
        %v1032 = vpop.f32.mrf.mxu0
        %v1033 = vpop.f32.mrf.mxu0
        %v1034 = vpop.f32.mrf.mxu0
        %1035 = vdwg.mxu0
        %v1038 = vunpack.c.l.s4 1966171168
        %v1039 = vunpack.c.0.s8 %v1038
        %v1040 = vlaneseq
        %v1041 = vshrl.u32 %v1040, 7
        %v1042 = vsub.s32 %v1039, %v1041
        %v1043 = vrot.slane %v1031, %v1042
        %v1044 = vcombine.high %v1043, %v1043
        %v1046 = vunpack.c.l.s4 1966171168
        %v1047 = vunpack.c.0.s8 %v1046
        %v1048 = vlaneseq
        %v1049 = vshrl.u32 %v1048, 7
        %v1050 = vsub.s32 %v1047, %v1049
        %v1051 = vrot.slane %v1043, %v1050
        %v1053 = vunpack.c.l.s4 1966171168
        %v1054 = vunpack.c.0.s8 %v1053
        %v1055 = vlaneseq
        %v1056 = vshrl.u32 %v1055, 7
        %v1057 = vsub.s32 %v1054, %v1056
        %v1058 = vrot.slane %v1044, %v1057
        %v1059 = vcombine.high %v1051, %v1051
        %v1060 = vcombine.high %v1058, %v1058
        %v1061 = vlaneseq
        %v1062 = vshrl.u32 %v1061, 7
        %v1063 = vsub.s32 0, %v1062
        %v1064 = vrot.slane %v1051, %v1063
        %v1065 = vlaneseq
        %v1066 = vshrl.u32 %v1065, 7
        %v1067 = vsub.s32 0, %v1066
        %v1068 = vrot.slane %v1058, %v1067
        %v1069 = vlaneseq
        %v1070 = vshrl.u32 %v1069, 7
        %v1071 = vsub.s32 0, %v1070
        %v1072 = vrot.slane %v1059, %v1071
        %v1073 = vlaneseq
        %v1074 = vshrl.u32 %v1073, 7
        %v1075 = vsub.s32 0, %v1074
        %v1076 = vrot.slane %v1060, %v1075
        %v1081 = vadd.f32 %v957, %v1064
        %v1082 = vadd.f32 %v958, %v1064
        %v1083 = vadd.f32 %v959, %v1068
        %v1084 = vadd.f32 %v960, %v1068
        %v1085 = vadd.f32 %v961, %v1072
        %v1086 = vadd.f32 %v962, %v1072
        %v1087 = vadd.f32 %v963, %v1076
        %v1088 = vadd.f32 %v964, %v1076
        %v1089 = vtanh.pop %v1081
        %v1090 = vtanh.pop %v1082
        %v1091 = vtanh.pop %v1083
        %v1092 = vtanh.pop %v1084
        %v1093 = vtanh.pop %v1085
        %v1094 = vtanh.pop %v1086
        %v1095 = vtanh.pop %v1087
        %v1096 = vtanh.pop %v1088
        %v1097 = vpack.c.bf16 %v1090, %v1089
        %v1098 = vpack.c.bf16 %v1092, %v1091
        %v1099 = vpack.c.bf16 %v1094, %v1093
        %v1100 = vpack.c.bf16 %v1096, %v1095
        %v1101 = vpack.c.bf16 %v971, %v970
        %v1102 = vpack.c.bf16 %v973, %v972
        %v1104 = vsel %vm872, %v1097, 0
        %v1107 = vsel %vm872, %v1098, 0
        %v1110 = vsel %vm872, %v1099, 0
        %v1113 = vsel %vm872, %v1100, 0
        %1115 = vmatprep.subr.bf16.mxu0 0
        %1116 = vmatpush1.bf16.msra.mxu0 0
        %1117 = vmatprep.subr.bf16.mxu0 0
        %1118 = vmatpush1.bf16.msra.mxu0 0
        %1119 = vmatprep.subr.bf16.mxu0 0
        %1120 = vmatpush1.bf16.msra.mxu0 0
        %1121 = vmatprep.subr.bf16.mxu0 0
        %1122 = vmatpush1.bf16.msra.mxu0 0
        %1123 = vmatprep.subr.bf16.mxu0 0
        %1124 = vmatpush1.bf16.msra.mxu0 0
        %1125 = vmatprep.subr.bf16.mxu0 0
        %1126 = vmatpush1.bf16.msra.mxu0 0
        %1127 = vmatprep.subr.bf16.mxu0 0
        %1128 = vmatpush1.bf16.msra.mxu0 %v1102
        %1129 = vmatprep.subr.bf16.mxu0 0
        %1130 = vmatpush1.bf16.msra.mxu0 %v1101
        %1131 = vmatprep.subr.bf16.mxu0 0
        %1132 = vmatpush2.bf16.msra.mxu0 0
        %1133 = vmatprep.subr.bf16.mxu0 0
        %1134 = vmatpush2.bf16.msra.mxu0 0
        %1135 = vmatprep.subr.bf16.mxu0 0
        %1136 = vmatpush2.bf16.msra.mxu0 0
        %1137 = vmatprep.subr.bf16.mxu0 0
        %1138 = vmatpush2.bf16.msra.mxu0 0
        %1139 = vmatprep.subr.bf16.mxu0 0
        %1140 = vmatpush2.bf16.msra.mxu0 0
        %1141 = vmatprep.subr.bf16.mxu0 0
        %1142 = vmatpush2.bf16.msra.mxu0 0
        %1143 = vmatprep.subr.bf16.mxu0 0
        %1144 = vmatpush2.bf16.msra.mxu0 0
        %1145 = vmatprep.subr.bf16.mxu0 0
        %1146 = vmatpush2.bf16.msra.mxu0 0
        %1147 = vmatprep.mubr.bf16.mxu0 0
        %1148 = vmatmul.mubr.bf16.gmra.mxu0 %v1104
        %v1149 = vpop.f32.mrf.mxu0
        %v1150 = vadd.f32 0.0, %v1149
        %v1151 = vpop.f32.mrf.mxu0
        %v1152 = vpop.f32.mrf.mxu0
        %v1153 = vadd.f32 0.0, %v1152
        %v1154 = vpop.f32.mrf.mxu0
        %1155 = vmatprep.mubr.bf16.mxu0 0
        %1156 = vmatmul.mubr.bf16.gmra.mxu0 %v1107
        %v1157 = vpop.f32.mrf.mxu0
        %v1158 = vadd.f32 0.0, %v1157
        %v1159 = vpop.f32.mrf.mxu0
        %v1160 = vpop.f32.mrf.mxu0
        %v1161 = vadd.f32 0.0, %v1160
        %v1162 = vpop.f32.mrf.mxu0
        %1163 = vmatprep.mubr.bf16.mxu0 0
        %1164 = vmatmul.mubr.bf16.gmra.mxu0 %v1110
        %v1165 = vpop.f32.mrf.mxu0
        %v1166 = vadd.f32 0.0, %v1165
        %v1167 = vpop.f32.mrf.mxu0
        %v1168 = vpop.f32.mrf.mxu0
        %v1169 = vadd.f32 0.0, %v1168
        %v1170 = vpop.f32.mrf.mxu0
        %1171 = vmatprep.mubr.bf16.mxu0 0
        %1172 = vmatmul.mubr.bf16.gmra.mxu0 %v1113
        %v1173 = vpop.f32.mrf.mxu0
        %v1174 = vadd.f32 0.0, %v1173
        %v1175 = vpop.f32.mrf.mxu0
        %v1176 = vpop.f32.mrf.mxu0
        %v1177 = vadd.f32 0.0, %v1176
        %v1178 = vpop.f32.mrf.mxu0
        %1179 = vdwg.mxu0
        %1188 = vset.pattern.permute.xlu0 0
        %1189 = vperm.xlu0 %1188, %v1150
        %v1190 = vpop.permute.xlu0 %1189
        %1191 = vset.pattern.permute.xlu0 0
        %1192 = vperm.xlu0 %1191, %v1153
        %v1193 = vpop.permute.xlu0 %1192
        %1194 = vset.pattern.permute.xlu0 0
        %1195 = vperm.xlu0 %1194, %v1158
        %v1196 = vpop.permute.xlu0 %1195
        %1197 = vset.pattern.permute.xlu0 0
        %1198 = vperm.xlu0 %1197, %v1161
        %v1199 = vpop.permute.xlu0 %1198
        %1200 = vset.pattern.permute.xlu0 0
        %1201 = vperm.xlu0 %1200, %v1166
        %v1202 = vpop.permute.xlu0 %1201
        %1203 = vset.pattern.permute.xlu0 0
        %1204 = vperm.xlu0 %1203, %v1169
        %v1205 = vpop.permute.xlu0 %1204
        %1206 = vset.pattern.permute.xlu0 0
        %1207 = vperm.xlu0 %1206, %v1174
        %v1208 = vpop.permute.xlu0 %1207
        %1209 = vset.pattern.permute.xlu0 0
        %1210 = vperm.xlu0 %1209, %v1177
        %v1211 = vpop.permute.xlu0 %1210
        %v1212 = vlaneseq
        %v1213 = vand.u32 %v1212, 127
        %v1214 = vlaneseq
        %v1215 = vshrl.u32 %v1214, 7
        %v1216 = vsub.s32 %v1213, %v1215
        %v1217 = vrot.slane %v1190, %v1216
        %v1218 = vadd.s32 %v1213, 4294967288
        %v1219 = vlaneseq
        %v1220 = vshrl.u32 %v1219, 7
        %v1221 = vsub.s32 %v1218, %v1220
        %v1222 = vrot.slane %v1193, %v1221
        %vm1223 = vcmask 130112
        %v1224 = vsel %vm1223, %v1222, %v1217
        %v1225 = vlaneseq
        %v1226 = vshrl.u32 %v1225, 7
        %v1227 = vsub.s32 %v1213, %v1226
        %v1228 = vrot.slane %v1196, %v1227
        %v1229 = vlaneseq
        %v1230 = vshrl.u32 %v1229, 7
        %v1231 = vsub.s32 %v1218, %v1230
        %v1232 = vrot.slane %v1199, %v1231
        %v1233 = vsel %vm1223, %v1232, %v1228
        %v1234 = vlaneseq
        %v1235 = vshrl.u32 %v1234, 7
        %v1236 = vsub.s32 %v1213, %v1235
        %v1237 = vrot.slane %v1202, %v1236
        %v1238 = vlaneseq
        %v1239 = vshrl.u32 %v1238, 7
        %v1240 = vsub.s32 %v1218, %v1239
        %v1241 = vrot.slane %v1205, %v1240
        %v1242 = vsel %vm1223, %v1241, %v1237
        %v1243 = vlaneseq
        %v1244 = vshrl.u32 %v1243, 7
        %v1245 = vsub.s32 %v1213, %v1244
        %v1246 = vrot.slane %v1208, %v1245
        %v1247 = vlaneseq
        %v1248 = vshrl.u32 %v1247, 7
        %v1249 = vsub.s32 %v1218, %v1248
        %v1250 = vrot.slane %v1211, %v1249
        %v1251 = vsel %vm1223, %v1250, %v1246
        %vm1252 = vcmask 1041409
        %v1253 = vsel %vm1252, %v1233, %v1224
        %vm1254 = vcmask 1042434
        %v1255 = vsel %vm1254, %v1242, %v1253
        %vm1256 = vcmask 1043459
        %v1257 = vsel %vm1256, %v1251, %v1255
        %vm1259 = vcmask 125952
        %v1260 = vsel %vm1259, %v1257, -inf
        %1261 = vmax.xlane.f32.xlu0 %v1260
        %v1262 = vpop.xlane.xlu0 %1261
        %v1264 = vlaneseq
        %v1265 = vshrl.u32 %v1264, 7
        %v1266 = vsub.s32 0, %v1265
        %v1267 = vrot.slane %v1262, %v1266
        %v1268 = vlaneseq
        %v1269 = vshrl.u32 %v1268, 7
        %v1270 = vsub.s32 1, %v1269
        %v1271 = vrot.slane %v1262, %v1270
        %v1272 = vlaneseq
        %v1273 = vshrl.u32 %v1272, 7
        %v1274 = vsub.s32 2, %v1273
        %v1275 = vrot.slane %v1262, %v1274
        %v1276 = vlaneseq
        %v1277 = vshrl.u32 %v1276, 7
        %v1278 = vsub.s32 3, %v1277
        %v1279 = vrot.slane %v1262, %v1278
        %v1284 = vsub.f32 %v1150, %v1267
        %v1285 = vsub.f32 %v1153, %v1267
        %v1286 = vsub.f32 %v1158, %v1271
        %v1287 = vsub.f32 %v1161, %v1271
        %v1288 = vsub.f32 %v1166, %v1275
        %v1289 = vsub.f32 %v1169, %v1275
        %v1290 = vsub.f32 %v1174, %v1279
        %v1291 = vsub.f32 %v1177, %v1279
        %v1292 = vmul.f32 %v1284, 1.442695
        %v1293 = vpow.pop %v1292
        %v1294 = vmul.f32 %v1285, 1.442695
        %v1295 = vpow.pop %v1294
        %v1296 = vmul.f32 %v1286, 1.442695
        %v1297 = vpow.pop %v1296
        %v1298 = vmul.f32 %v1287, 1.442695
        %v1299 = vpow.pop %v1298
        %v1300 = vmul.f32 %v1288, 1.442695
        %v1301 = vpow.pop %v1300
        %v1302 = vmul.f32 %v1289, 1.442695
        %v1303 = vpow.pop %v1302
        %v1304 = vmul.f32 %v1290, 1.442695
        %v1305 = vpow.pop %v1304
        %v1306 = vmul.f32 %v1291, 1.442695
        %v1307 = vpow.pop %v1306
        %1316 = vset.pattern.permute.xlu0 0
        %1317 = vperm.xlu0 %1316, %v1293
        %v1318 = vpop.permute.xlu0 %1317
        %1319 = vset.pattern.permute.xlu0 0
        %1320 = vperm.xlu0 %1319, %v1295
        %v1321 = vpop.permute.xlu0 %1320
        %1322 = vset.pattern.permute.xlu0 0
        %1323 = vperm.xlu0 %1322, %v1297
        %v1324 = vpop.permute.xlu0 %1323
        %1325 = vset.pattern.permute.xlu0 0
        %1326 = vperm.xlu0 %1325, %v1299
        %v1327 = vpop.permute.xlu0 %1326
        %1328 = vset.pattern.permute.xlu0 0
        %1329 = vperm.xlu0 %1328, %v1301
        %v1330 = vpop.permute.xlu0 %1329
        %1331 = vset.pattern.permute.xlu0 0
        %1332 = vperm.xlu0 %1331, %v1303
        %v1333 = vpop.permute.xlu0 %1332
        %1334 = vset.pattern.permute.xlu0 0
        %1335 = vperm.xlu0 %1334, %v1305
        %v1336 = vpop.permute.xlu0 %1335
        %1337 = vset.pattern.permute.xlu0 0
        %1338 = vperm.xlu0 %1337, %v1307
        %v1339 = vpop.permute.xlu0 %1338
        %v1340 = vlaneseq
        %v1341 = vshrl.u32 %v1340, 7
        %v1342 = vsub.s32 %v1213, %v1341
        %v1343 = vrot.slane %v1318, %v1342
        %v1344 = vlaneseq
        %v1345 = vshrl.u32 %v1344, 7
        %v1346 = vsub.s32 %v1218, %v1345
        %v1347 = vrot.slane %v1321, %v1346
        %v1348 = vsel %vm1223, %v1347, %v1343
        %v1349 = vlaneseq
        %v1350 = vshrl.u32 %v1349, 7
        %v1351 = vsub.s32 %v1213, %v1350
        %v1352 = vrot.slane %v1324, %v1351
        %v1353 = vlaneseq
        %v1354 = vshrl.u32 %v1353, 7
        %v1355 = vsub.s32 %v1218, %v1354
        %v1356 = vrot.slane %v1327, %v1355
        %v1357 = vsel %vm1223, %v1356, %v1352
        %v1358 = vlaneseq
        %v1359 = vshrl.u32 %v1358, 7
        %v1360 = vsub.s32 %v1213, %v1359
        %v1361 = vrot.slane %v1330, %v1360
        %v1362 = vlaneseq
        %v1363 = vshrl.u32 %v1362, 7
        %v1364 = vsub.s32 %v1218, %v1363
        %v1365 = vrot.slane %v1333, %v1364
        %v1366 = vsel %vm1223, %v1365, %v1361
        %v1367 = vlaneseq
        %v1368 = vshrl.u32 %v1367, 7
        %v1369 = vsub.s32 %v1213, %v1368
        %v1370 = vrot.slane %v1336, %v1369
        %v1371 = vlaneseq
        %v1372 = vshrl.u32 %v1371, 7
        %v1373 = vsub.s32 %v1218, %v1372
        %v1374 = vrot.slane %v1339, %v1373
        %v1375 = vsel %vm1223, %v1374, %v1370
        %v1376 = vsel %vm1252, %v1357, %v1348
        %v1377 = vsel %vm1254, %v1366, %v1376
        %v1378 = vsel %vm1256, %v1375, %v1377
        %v1380 = vsel %vm1259, %v1378, 0.0
        %1381 = vadd.xlane.f32.xlu0 %v1380
        %v1382 = vpop.xlane.xlu0 %1381
        %v1383 = vrcp.pop %v1382
        %v1385 = vlaneseq
        %v1386 = vshrl.u32 %v1385, 7
        %v1387 = vsub.s32 0, %v1386
        %v1388 = vrot.slane %v1383, %v1387
        %v1389 = vlaneseq
        %v1390 = vshrl.u32 %v1389, 7
        %v1391 = vsub.s32 1, %v1390
        %v1392 = vrot.slane %v1383, %v1391
        %v1393 = vlaneseq
        %v1394 = vshrl.u32 %v1393, 7
        %v1395 = vsub.s32 2, %v1394
        %v1396 = vrot.slane %v1383, %v1395
        %v1397 = vlaneseq
        %v1398 = vshrl.u32 %v1397, 7
        %v1399 = vsub.s32 3, %v1398
        %v1400 = vrot.slane %v1383, %v1399
        %v1405 = vmul.f32 %v1293, %v1388
        %v1406 = vmul.f32 %v1295, %v1388
        %v1407 = vmul.f32 %v1297, %v1392
        %v1408 = vmul.f32 %v1299, %v1392
        %v1409 = vmul.f32 %v1301, %v1396
        %v1410 = vmul.f32 %v1303, %v1396
        %v1411 = vmul.f32 %v1305, %v1400
        %v1412 = vmul.f32 %v1307, %v1400
        %1414 = vset.pattern.permute.xlu0 0
        %1415 = vperm.xlu0 %1414, %v1405
        %v1416 = vpop.permute.xlu0 %1415
        %1419 = vset.pattern.permute.xlu0 0
        %1420 = vperm.xlu0 %1419, %v1406
        %v1421 = vpop.permute.xlu0 %1420
        %1424 = vset.pattern.permute.xlu0 0
        %1425 = vperm.xlu0 %1424, %v1407
        %v1426 = vpop.permute.xlu0 %1425
        %1429 = vset.pattern.permute.xlu0 0
        %1430 = vperm.xlu0 %1429, %v1408
        %v1431 = vpop.permute.xlu0 %1430
        %1434 = vset.pattern.permute.xlu0 0
        %1435 = vperm.xlu0 %1434, %v1409
        %v1436 = vpop.permute.xlu0 %1435
        %1439 = vset.pattern.permute.xlu0 0
        %1440 = vperm.xlu0 %1439, %v1410
        %v1441 = vpop.permute.xlu0 %1440
        %1444 = vset.pattern.permute.xlu0 0
        %1445 = vperm.xlu0 %1444, %v1411
        %v1446 = vpop.permute.xlu0 %1445
        %1449 = vset.pattern.permute.xlu0 0
        %1450 = vperm.xlu0 %1449, %v1412
        %v1451 = vpop.permute.xlu0 %1450
        %v1453 = vmul.f32 %v1416, %v750
        %v1454 = vmul.f32 %v1421, %v751
        %v1455 = vmul.f32 %v1426, %v752
        %v1456 = vmul.f32 %v1431, %v753
        %v1457 = vmul.f32 %v1436, %v754
        %v1458 = vmul.f32 %v1441, %v755
        %v1459 = vmul.f32 %v1446, %v756
        %v1460 = vmul.f32 %v1451, %v757
        %v1461 = vsel %vm872, %v1453, 0.0
        %v1462 = vsel %vm872, %v1454, 0.0
        %v1463 = vadd.f32 %v1461, %v1462
        %v1464 = vrot.slane %v1463, 4
        %v1465 = vadd.f32 %v1463, %v1464
        %v1466 = vrot.slane %v1465, 2
        %v1467 = vadd.f32 %v1465, %v1466
        %v1468 = vrot.slane %v1467, 1
        %v1469 = vadd.f32 %v1467, %v1468
        %v1470 = vsel %vm872, %v1455, 0.0
        %v1471 = vsel %vm872, %v1456, 0.0
        %v1472 = vadd.f32 %v1470, %v1471
        %v1473 = vrot.slane %v1472, 4
        %v1474 = vadd.f32 %v1472, %v1473
        %v1475 = vrot.slane %v1474, 2
        %v1476 = vadd.f32 %v1474, %v1475
        %v1477 = vrot.slane %v1476, 1
        %v1478 = vadd.f32 %v1476, %v1477
        %v1479 = vsel %vm872, %v1457, 0.0
        %v1480 = vsel %vm872, %v1458, 0.0
        %v1481 = vadd.f32 %v1479, %v1480
        %v1482 = vrot.slane %v1481, 4
        %v1483 = vadd.f32 %v1481, %v1482
        %v1484 = vrot.slane %v1483, 2
        %v1485 = vadd.f32 %v1483, %v1484
        %v1486 = vrot.slane %v1485, 1
        %v1487 = vadd.f32 %v1485, %v1486
        %v1488 = vsel %vm872, %v1459, 0.0
        %v1489 = vsel %vm872, %v1460, 0.0
        %v1490 = vadd.f32 %v1488, %v1489
        %v1491 = vrot.slane %v1490, 4
        %v1492 = vadd.f32 %v1490, %v1491
        %v1493 = vrot.slane %v1492, 2
        %v1494 = vadd.f32 %v1492, %v1493
        %v1495 = vrot.slane %v1494, 1
        %v1496 = vadd.f32 %v1494, %v1495
        %v1501 = vsel %vm1252, %v1478, %v1469
        %v1502 = vsel %vm1254, %v1487, %v1501
        %v1503 = vsel %vm1256, %v1496, %v1502
        %1506 = vrot.lane.b32.xlu0 %v850, 32
        %v1507 = vpop.permute.xlu0 %1506
        %v1509 = vsel %vm872, %v1503, %v1507
        %v1510 = vpack.c.bf16 %v1509, %v1509
        %v1511 = vld [vmem:[%s744] sm:$0xf]
        %v1512 = vld [vmem:[%s744 + $0x4] sm:$0xf]
        %v1513 = vld [vmem:[%s744 + $0x8] sm:$0xf]
        %v1514 = vld [vmem:[%s744 + $0xc] sm:$0xf]
        %v1515 = vld [vmem:[%s744 + $0x10] sm:$0xf]
        %v1516 = vld [vmem:[%s744 + $0x14] sm:$0xf]
        %v1517 = vld [vmem:[%s744 + $0x18] sm:$0xf]
        %v1518 = vld [vmem:[%s744 + $0x1c] sm:$0xf]
        %v1519 = vld [vmem:[%s652] sm:$0x1]
        %v1521 = vlaneseq
        %v1522 = vshrl.u32 %v1521, 7
        %v1523 = vsub.s32 0, %v1522
        %v1524 = vrot.slane %v1519, %v1523
        %v1534 = vunpack.c.l.b16 %v1511
        %v1535 = vunpack.c.l.b16 %v1512
        %v1536 = vunpack.c.l.b16 %v1513
        %v1537 = vunpack.c.l.b16 %v1514
        %v1538 = vunpack.c.l.b16 %v1515
        %v1539 = vunpack.c.l.b16 %v1516
        %v1540 = vunpack.c.l.b16 %v1517
        %v1541 = vunpack.c.l.b16 %v1518
        %v1542 = vpack.c.b16 %v1535, %v1534
        %v1543 = vpack.c.b16 %v1537, %v1536
        %v1544 = vpack.c.b16 %v1539, %v1538
        %v1545 = vpack.c.b16 %v1541, %v1540
        %vm1550 = vcmask 523264
        %v1552 = vsel %vm1550, %v1510, 0
        %1554 = vmatprep.subr.bf16.mxu0 0
        %1555 = vmatpush1.bf16.msra.mxu0 0
        %1556 = vmatprep.subr.bf16.mxu0 0
        %1557 = vmatpush1.bf16.msra.mxu0 0
        %1558 = vmatprep.subr.bf16.mxu0 0
        %1559 = vmatpush1.bf16.msra.mxu0 0
        %1560 = vmatprep.subr.bf16.mxu0 0
        %1561 = vmatpush1.bf16.msra.mxu0 0
        %1562 = vmatprep.subr.bf16.mxu0 0
        %1563 = vmatpush1.bf16.msra.mxu0 %v1545
        %1564 = vmatprep.subr.bf16.mxu0 0
        %1565 = vmatpush1.bf16.msra.mxu0 %v1544
        %1566 = vmatprep.subr.bf16.mxu0 0
        %1567 = vmatpush1.bf16.msra.mxu0 %v1543
        %1568 = vmatprep.subr.bf16.mxu0 0
        %1569 = vmatpush1.bf16.msra.mxu0 %v1542
        %1570 = vmatprep.subr.bf16.mxu0 0
        %1571 = vmatpush2.bf16.msra.mxu0 0
        %1572 = vmatprep.subr.bf16.mxu0 0
        %1573 = vmatpush2.bf16.msra.mxu0 0
        %1574 = vmatprep.subr.bf16.mxu0 0
        %1575 = vmatpush2.bf16.msra.mxu0 0
        %1576 = vmatprep.subr.bf16.mxu0 0
        %1577 = vmatpush2.bf16.msra.mxu0 0
        %1578 = vmatprep.subr.bf16.mxu0 0
        %1579 = vmatpush2.bf16.msra.mxu0 0
        %1580 = vmatprep.subr.bf16.mxu0 0
        %1581 = vmatpush2.bf16.msra.mxu0 0
        %1582 = vmatprep.subr.bf16.mxu0 0
        %1583 = vmatpush2.bf16.msra.mxu0 0
        %1584 = vmatprep.subr.bf16.mxu0 0
        %1585 = vmatpush2.bf16.msra.mxu0 0
        %1586 = vmatprep.mubr.bf16.mxu0 0
        %1587 = vmatmul.mubr.bf16.gmra.mxu0 %v1552
        %v1588 = vpop.f32.mrf.mxu0
        %v1589 = vadd.f32 %v1524, %v1588
        %v1590 = vpop.f32.mrf.mxu0
        %v1591 = vpop.f32.mrf.mxu0
        %v1592 = vpop.f32.mrf.mxu0
        %1593 = vdwg.mxu0
        %v1594 = vxor.u32 %v1589, 2147483648
        %v1595 = vmul.f32 %v1594, 1.442695
        %v1596 = vpow.pop %v1595
        %v1597 = vadd.f32 %v1596, 1.0
        %v1598 = vrcp.pop %v1597
        %v1599 = vmul.f32 1.0, %v1598
        %v1600 = vtanh.pop %v1589
        %1602 = vrot.lane.b32.xlu0 %v851, 32
        %v1603 = vpop.permute.xlu0 %1602
        %v1605 = vmul.f32 %v1599, %v1603
        %1607 = vrot.lane.b32.xlu0 %v1600, 32
        %v1608 = vpop.permute.xlu0 %1607
        %v1610 = vmul.f32 %v1599, %v1608
        %1612 = vrot.lane.b32.xlu0 %v1610, 32
        %v1613 = vpop.permute.xlu0 %1612
        %v1615 = vadd.f32 %v1605, %v1613
        %v1616 = vtanh.pop %v1615
        %1618 = vrot.lane.b32.xlu0 %v1616, 32
        %v1619 = vpop.permute.xlu0 %1618
        %v1621 = vmul.f32 %v1599, %v1619
        %1623 = vrot.lane.b32.xlu0 %v1621, 64
        %v1624 = vpop.permute.xlu0 %1623
        %vm1626 = vcmask 257024
        %1627 = vst.msk [vmem:[#allocation2] sm:$0xf] %vm1626, %v1624
        %1629 = vrot.lane.b32.xlu0 %v1615, 96
        %v1630 = vpop.permute.xlu0 %1629
        %1632 = vst.msk [vmem:[#allocation3] sm:$0xf] %vm1626, %v1630
        %1633 = vst.msk [vmem:[%s748] sm:$0xf] %vm1626, %v1624
        %v1634 = vpack.c.bf16 %v1621, %v1621
        %v1635 = vld [vmem:[#allocation16] sm:$0xf]
        %v1636 = vld [vmem:[#allocation16 + $0x4] sm:$0xf]
        %v1637 = vld [vmem:[#allocation16 + $0x8] sm:$0xf]
        %v1638 = vld [vmem:[#allocation16 + $0xc] sm:$0xf]
        %v1639 = vld [vmem:[#allocation17] sm:$0x1]
        %v1641 = vlaneseq
        %v1642 = vshrl.u32 %v1641, 7
        %v1643 = vsub.s32 0, %v1642
        %v1644 = vrot.slane %v1639, %v1643
        %1647 = vrot.lane.b32.xlu0 %v1634, 64
        %v1648 = vpop.permute.xlu0 %1647
        %v1653 = vunpack.c.l.b16 %v1635
        %v1654 = vunpack.c.l.b16 %v1636
        %v1655 = vunpack.c.l.b16 %v1637
        %v1656 = vunpack.c.l.b16 %v1638
        %v1657 = vpack.c.b16 %v1654, %v1653
        %v1658 = vpack.c.b16 %v1656, %v1655
        %v1662 = vsel %vm872, %v1648, 0
        %1664 = vmatprep.subr.bf16.mxu0 0
        %1665 = vmatpush1.bf16.msra.mxu0 0
        %1666 = vmatprep.subr.bf16.mxu0 0
        %1667 = vmatpush1.bf16.msra.mxu0 0
        %1668 = vmatprep.subr.bf16.mxu0 0
        %1669 = vmatpush1.bf16.msra.mxu0 0
        %1670 = vmatprep.subr.bf16.mxu0 0
        %1671 = vmatpush1.bf16.msra.mxu0 0
        %1672 = vmatprep.subr.bf16.mxu0 0
        %1673 = vmatpush1.bf16.msra.mxu0 0
        %1674 = vmatprep.subr.bf16.mxu0 0
        %1675 = vmatpush1.bf16.msra.mxu0 0
        %1676 = vmatprep.subr.bf16.mxu0 0
        %1677 = vmatpush1.bf16.msra.mxu0 %v1658
        %1678 = vmatprep.subr.bf16.mxu0 0
        %1679 = vmatpush1.bf16.msra.mxu0 %v1657
        %1680 = vmatprep.subr.bf16.mxu0 0
        %1681 = vmatpush2.bf16.msra.mxu0 0
        %1682 = vmatprep.subr.bf16.mxu0 0
        %1683 = vmatpush2.bf16.msra.mxu0 0
        %1684 = vmatprep.subr.bf16.mxu0 0
        %1685 = vmatpush2.bf16.msra.mxu0 0
        %1686 = vmatprep.subr.bf16.mxu0 0
        %1687 = vmatpush2.bf16.msra.mxu0 0
        %1688 = vmatprep.subr.bf16.mxu0 0
        %1689 = vmatpush2.bf16.msra.mxu0 0
        %1690 = vmatprep.subr.bf16.mxu0 0
        %1691 = vmatpush2.bf16.msra.mxu0 0
        %1692 = vmatprep.subr.bf16.mxu0 0
        %1693 = vmatpush2.bf16.msra.mxu0 0
        %1694 = vmatprep.subr.bf16.mxu0 0
        %1695 = vmatpush2.bf16.msra.mxu0 0
        %1696 = vmatprep.mubr.bf16.mxu0 0
        %1697 = vmatmul.mubr.bf16.gmra.mxu0 %v1662
        %v1698 = vpop.f32.mrf.mxu0
        %v1699 = vadd.f32 %v1644, %v1698
        %v1700 = vpop.f32.mrf.mxu0
        %v1701 = vpop.f32.mrf.mxu0
        %v1702 = vpop.f32.mrf.mxu0
        %1703 = vdwg.mxu0
        // Predicated region
        $region109: #{_lambda_.2} parent=71 // pred_check
          %p1704 = pneg %p758
        $region110: #{_lambda_.2} parent=71 // pred_check_branch
          %1706 = sbr.rel (%p1704) target = $region112
        $region111: #{_lambda_.2} parent=71 // pred_region
          %1707 = vst [vmem:[#allocation4] sm:$0xf] %v1699
        $region112: #{_lambda_.2} parent=71 // pred_fallthru
          _
        %p1708 = scmp.gt.s32.totalorder %s40, 0
        // Predicated region
        $region113: #{_lambda_.2} parent=71 // pred_check
          %p1709 = pneg %p1708
        $region114: #{_lambda_.2} parent=71 // pred_check_branch
          %1711 = sbr.rel (%p1709) target = $region116
        $region115: #{_lambda_.2} parent=71 // pred_region
          %v1712 = vld [vmem:[#allocation4] sm:$0xf]
          %v1713 = vmax.f32 %v1712, %v1699
          %1714 = vst [vmem:[#allocation4] sm:$0xf] %v1713
        $region116: #{_lambda_.2} parent=71 // pred_fallthru
          _
        %1715 = vst.msk [vmem:[%s15] sm:$0xf] %vm1626, %v1624
        %1716 = vst.msk [vmem:[%s16] sm:$0xf] %vm1626, %v1630
        %v1717 = vld [vmem:[#allocation4] sm:$0xf]
        %1718 = vst [vmem:[#allocation19] sm:$0xf] %v1717
        %p1719 = scmp.lt.s32.totalorder %s40, 3
        %s1720 = scalar_select %p1719, %s40, 3
        %s1721 = smul.addr %s1720, 4
        %s1722 = scalar_lea.vmem %s13, %s1721
        // Predicated region
        $region117: #{_lambda_.2} parent=71 // pred_check
          %p1723 = pneg %p366
        $region118: #{_lambda_.2} parent=71 // pred_check_branch
          %1725 = sbr.rel (%p1723) target = $region120
        $region119: #{_lambda_.2} parent=71 // pred_region
          _
        $region120: #{_lambda_.2} parent=71 // pred_fallthru
          _
        // Predicated region
        $region121: #{_lambda_.2} parent=71 // pred_check
          %p1726 = pneg %p387
        $region122: #{_lambda_.2} parent=71 // pred_check_branch
          %1728 = sbr.rel (%p1726) target = $region124
        $region123: #{_lambda_.2} parent=71 // pred_region
          %s1730 = ssub.s32 64, 64
          %1731 = vsyncadd [#allocation7], %s1730
          %s1733 = sshll.u32 [#allocation19], 4
          %s1734 = int_to_ptr.vmem [resolvable:$true] %s1733
          %1736 = dma.vmem_to_hbm [thread:$0]  %s1734, 64, %s14, [#allocation7]
        $region124: #{_lambda_.2} parent=71 // pred_fallthru
          _
        // Predicated region
        $region125: #{_lambda_.2} parent=71 // pred_check
          %p1737 = pneg %p408
        $region126: #{_lambda_.2} parent=71 // pred_check_branch
          %1739 = sbr.rel (%p1737) target = $region128
        $region127: #{_lambda_.2} parent=71 // pred_region
          _
        $region128: #{_lambda_.2} parent=71 // pred_fallthru
          _
        // Predicated region
        $region129: #{_lambda_.2} parent=71 // pred_check
          %p1740 = pneg %p429
        $region130: #{_lambda_.2} parent=71 // pred_check_branch
          %1742 = sbr.rel (%p1740) target = $region132
        $region131: #{_lambda_.2} parent=71 // pred_region
          _
        $region132: #{_lambda_.2} parent=71 // pred_fallthru
          _
        // Predicated region
        $region133: #{_lambda_.2} parent=71 // pred_check
          %p1743 = pneg %p387
        $region134: #{_lambda_.2} parent=71 // pred_check_branch
          %1745 = sbr.rel (%p1743) target = $region136
        $region135: #{_lambda_.2} parent=71 // pred_region
          %1746 = dma.done [#allocation7], 64
        $region136: #{_lambda_.2} parent=71 // pred_fallthru
          _
        // Predicated region
        $region137: #{_lambda_.2} parent=71 // pred_check
          %p1747 = pneg %p408
        $region138: #{_lambda_.2} parent=71 // pred_check_branch
          %1749 = sbr.rel (%p1747) target = $region140
        $region139: #{_lambda_.2} parent=71 // pred_region
          _
        $region140: #{_lambda_.2} parent=71 // pred_fallthru
          _
        // Predicated region
        $region141: #{_lambda_.2} parent=71 // pred_check
          %p1750 = pneg %p429
        $region142: #{_lambda_.2} parent=71 // pred_check_branch
          %1752 = sbr.rel (%p1750) target = $region144
        $region143: #{_lambda_.2} parent=71 // pred_region
          _
        $region144: #{_lambda_.2} parent=71 // pred_fallthru
          _
      $region72: #{_lambda_.2} parent=5 // pred_fallthru
        _
      %p1753 = scmp.le.s32.totalorder 2, %s35
      // Predicated region
      $region145: #{_lambda_.2} parent=5 // pred_check
        %p1754 = pneg %p1753
      $region146: #{_lambda_.2} parent=5 // pred_check_branch
        %1756 = sbr.rel (%p1754) target = $region148
      $region147: #{_lambda_.2} parent=5 // pred_region
        %s1757 = ssub.s32 %s35, 2
        // Predicated region
        $region149: #{_lambda_.2} parent=147 // pred_check
          %p1758 = pneg %p372
        $region150: #{_lambda_.2} parent=147 // pred_check_branch
          %1760 = sbr.rel (%p1758) target = $region152
        $region151: #{_lambda_.2} parent=147 // pred_region
          %p1761 = scmp.lt.s32.totalorder %s41, 3
          %s1762 = scalar_select %p1761, %s41, 3
          %s1763 = smul.addr %s1762, 4
          %s1764 = scalar_lea.vmem %s13, %s1763
        $region152: #{_lambda_.2} parent=147 // pred_fallthru
          _
      $region148: #{_lambda_.2} parent=5 // pred_fallthru
        _
    $region6: #{_lambda_.2} parent=1 // loop_footer
      %s39 = sadd.s32 1, %s35
    $region7: #{_lambda_.2} parent=1 // loop_footer_branch
      %34 = sbr.rel target = $region3
    $region8: #{_lambda_.2} parent=1 // loop_exit
      _
    %1765 = vsyncpa [#allocation6], 1
    %s1766 = scalar_lea.sflag [#allocation6], 1
    %1767 = vsyncpa %s1766, 1
    %1768 = vsyncpa [#allocation9], 1
    %s1769 = scalar_lea.sflag [#allocation9], 1
    %1770 = vsyncpa %s1769, 1
    %1771 = vsyncpa [#allocation12], 1
    %s1772 = scalar_lea.sflag [#allocation12], 1
    %1773 = vsyncpa %s1772, 1
    %1774 = vsyncpa [#allocation15], 1
    %s1775 = scalar_lea.sflag [#allocation15], 1
    %1776 = vsyncpa %s1775, 1
    %1777 = vsyncpa [#allocation18], 1
    %1778 = vsyncpa [#allocation7], 1
    %s1779 = scalar_lea.sflag [#allocation7], 1
    %1780 = vsyncpa %s1779, 1

// kernel: _lambda_.3
$region0: #{_lambda_.3}
  #allocation0 [shape = 'u32[]', space=smem, size = 0x4, offset = 0x4, fixed_abs, tag = 'smem constant byte address 0x4 - core index']
  #allocation1 [shape = 'u32[144,128]{1,0:T(1,128)}', space=vmem, size = 0x12000, scoped, tag = 'internal scratch']
  #allocation2 [shape = 'f32[4,32]{1,0:T(4,128)}', space=vmem, size = 0x800, scoped, tag = 'scratch operand']
  #allocation3 [shape = 'f32[4,32]{1,0:T(4,128)}', space=vmem, size = 0x800, scoped, tag = 'scratch operand']
  #allocation4 [shape = 'f32[4,4,32]{2,1,0:T(4,128)}', space=vmem, size = 0x2000, scoped, tag = 'scratch operand']
  %s0 = inlined_call_operand.vmem [shape: f32[6,4,32], index: 0, kind: input, shape index: {}]
  %s1 = inlined_call_operand.vmem [shape: f32[4,4,32], index: 1, kind: input, shape index: {}]
  %s2 = inlined_call_operand.vmem [shape: f32[4,32], index: 2, kind: input, shape index: {}]
  %s3 = inlined_call_operand.vmem [shape: f32[4,32], index: 3, kind: input, shape index: {}]
  %s4 = inlined_call_operand.vmem [shape: bf16[32,32], index: 4, kind: input, shape index: {}]
  %s5 = inlined_call_operand.vmem [shape: f32[1,32], index: 5, kind: input, shape index: {}]
  %s6 = inlined_call_operand.vmem [shape: bf16[32,32], index: 6, kind: input, shape index: {}]
  %s7 = inlined_call_operand.vmem [shape: f32[1,32], index: 7, kind: input, shape index: {}]
  %s8 = inlined_call_operand.vmem [shape: f32[32,1], index: 8, kind: input, shape index: {}]
  %s9 = inlined_call_operand.vmem [shape: bf16[96,128], index: 9, kind: input, shape index: {}]
  %s10 = inlined_call_operand.vmem [shape: f32[1,128], index: 10, kind: input, shape index: {}]
  %s11 = inlined_call_operand.vmem [shape: bf16[32,128], index: 11, kind: input, shape index: {}]
  %s12 = inlined_call_operand.vmem [shape: f32[1,128], index: 12, kind: input, shape index: {}]
  %s13 = inlined_call_operand.hbm [shape: f32[6,4,128], index: 13, kind: output, shape index: {}]
  %s14 = sld [smem:[#allocation0]]
  $region89: #{_lambda_.3} parent=0
    _
  %s16 = ssub.s32 1, %s14
  %s17 = scalar_select 0, %s16, %s14
  $region1: #{_lambda_.3} parent=0
    #allocation5 [shape = 'u8[4096]{0}', space=vmem, size = 0x1000, scoped, tag = 'output window, operand 0']
    #allocation6 [shape = 's32[2]{0}', space=sflag, size = 0x8, scoped, tag = 'scoped memory for _lambda_.3']
    %18 = vsyncpa [#allocation6], 0
    %s19 = scalar_lea.sflag [#allocation6], 1
    %20 = vsyncpa %s19, 0
    loop: start=0, step=1, limit=8
    $region2: #{_lambda_.3} parent=1 // loop_pre_header
      _
    $region3: #{_lambda_.3} parent=1 // loop_header
      %s22 = sphi 0, %s26
      %p23 = scmp.ge.s32.totalorder %s22, 8
      %s32 = sphi 0, %s34
      %s35 = sphi 0, %s32
      %s36 = sphi 0, %s35
      %s52 = sphi 0, %s36
      %s56 = sphi 0, %s56
      %s58 = sphi 0, %s56
      %s59 = sphi 0, %s58
      %s73 = sphi 0, %s59
      %s77 = sphi 0, %s77
      %s79 = sphi 0, %s77
      %s80 = sphi 0, %s79
      %s94 = sphi 0, %s80
      %s98 = sphi 0, %s98
      %s100 = sphi 0, %s98
      %s101 = sphi 0, %s100
      %s115 = sphi 0, %s101
      %s119 = sphi 0, %s119
      %s121 = sphi 0, %s119
      %s122 = sphi 0, %s121
      %s136 = sphi 0, %s122
      %s140 = sphi 0, %s140
      %s142 = sphi 0, %s140
      %s143 = sphi 0, %s142
      %s157 = sphi 0, %s143
      %s161 = sphi 0, %s161
      %s163 = sphi 0, %s161
      %s164 = sphi 0, %s163
      %s178 = sphi 0, %s164
      %s182 = sphi 0, %s182
      %s184 = sphi 0, %s182
      %s185 = sphi 0, %s184
      %s199 = sphi 0, %s185
      %s203 = sphi 0, %s203
      %s205 = sphi 0, %s203
      %s206 = sphi 0, %s205
      %s220 = sphi 0, %s206
      %s224 = sphi 0, %s224
      %s226 = sphi 0, %s224
      %s227 = sphi 0, %s226
      %s241 = sphi 0, %s227
      %s245 = sphi 0, %s245
      %s247 = sphi 0, %s245
      %s248 = sphi 0, %s247
      %s262 = sphi 0, %s248
      %s266 = sphi 0, %s266
      %s268 = sphi 0, %s266
      %s269 = sphi 0, %s268
      %s283 = sphi 0, %s269
      %s287 = sphi 0, %s287
      %s289 = sphi 0, %s287
      %s290 = sphi 0, %s289
      %s304 = sphi 0, %s290
      %s310 = sphi 0, %s312
      %s313 = sphi 0, %s310
      %s314 = sphi 0, %s313
      %s330 = sphi 0, %s314
    $region4: #{_lambda_.3} parent=1 // loop_header_branch
      %25 = sbr.rel (%p23) target = $region8
    $region5: #{_lambda_.3} parent=1 // loop_body
      %s27 = ssub.s32 %s22, 1
      %s28 = ssub.s32 %s22, 2
      %s29 = sadd.s32 %s22, 1
      %s30 = ssub.s32 %s22, %s29
      %p31 = scmp.eq.s32.totalorder %s30, 0
      %s33 = sadd.s32 %s32, 1
      %s34 = scalar_select %p31, %s32, %s33
      %p37 = pneg %p31
      %p38 = scmp.eq.s32.totalorder %s22, 5
      %p39 = por %p37, %p38
      %p40 = scmp.ne.s32.totalorder %s32, %s35
      %p41 = scmp.eq.s32.totalorder %s22, 0
      %p42 = por %p40, %p41
      %p43 = scmp.ne.s32.totalorder %s32, %s35
      %p44 = scmp.eq.s32.totalorder %s27, 5
      %p45 = por %p43, %p44
      %p46 = scmp.ne.s32.totalorder %s35, %s36
      %p47 = scmp.eq.s32.totalorder %s27, 0
      %p48 = por %p46, %p47
      %p49 = scmp.ne.s32.totalorder %s35, %s36
      %p50 = scmp.eq.s32.totalorder %s28, 5
      %p51 = por %p49, %p50
      %p53 = scmp.ne.s32.totalorder %s36, %s52
      %p54 = scmp.eq.s32.totalorder %s28, 0
      %p55 = por %p53, %p54
      %s57 = sadd.s32 %s56, 1
      %p60 = scmp.eq.s32.totalorder %s22, 5
      %p61 = scmp.ne.s32.totalorder %s56, %s58
      %p62 = scmp.eq.s32.totalorder %s22, 0
      %p63 = por %p61, %p62
      %p64 = scmp.ne.s32.totalorder %s56, %s58
      %p65 = scmp.eq.s32.totalorder %s27, 5
      %p66 = por %p64, %p65
      %p67 = scmp.ne.s32.totalorder %s58, %s59
      %p68 = scmp.eq.s32.totalorder %s27, 0
      %p69 = por %p67, %p68
      %p70 = scmp.ne.s32.totalorder %s58, %s59
      %p71 = scmp.eq.s32.totalorder %s28, 5
      %p72 = por %p70, %p71
      %p74 = scmp.ne.s32.totalorder %s59, %s73
      %p75 = scmp.eq.s32.totalorder %s28, 0
      %p76 = por %p74, %p75
      %s78 = sadd.s32 %s77, 1
      %p81 = scmp.eq.s32.totalorder %s22, 5
      %p82 = scmp.ne.s32.totalorder %s77, %s79
      %p83 = scmp.eq.s32.totalorder %s22, 0
      %p84 = por %p82, %p83
      %p85 = scmp.ne.s32.totalorder %s77, %s79
      %p86 = scmp.eq.s32.totalorder %s27, 5
      %p87 = por %p85, %p86
      %p88 = scmp.ne.s32.totalorder %s79, %s80
      %p89 = scmp.eq.s32.totalorder %s27, 0
      %p90 = por %p88, %p89
      %p91 = scmp.ne.s32.totalorder %s79, %s80
      %p92 = scmp.eq.s32.totalorder %s28, 5
      %p93 = por %p91, %p92
      %p95 = scmp.ne.s32.totalorder %s80, %s94
      %p96 = scmp.eq.s32.totalorder %s28, 0
      %p97 = por %p95, %p96
      %s99 = sadd.s32 %s98, 1
      %p102 = scmp.eq.s32.totalorder %s22, 5
      %p103 = scmp.ne.s32.totalorder %s98, %s100
      %p104 = scmp.eq.s32.totalorder %s22, 0
      %p105 = por %p103, %p104
      %p106 = scmp.ne.s32.totalorder %s98, %s100
      %p107 = scmp.eq.s32.totalorder %s27, 5
      %p108 = por %p106, %p107
      %p109 = scmp.ne.s32.totalorder %s100, %s101
      %p110 = scmp.eq.s32.totalorder %s27, 0
      %p111 = por %p109, %p110
      %p112 = scmp.ne.s32.totalorder %s100, %s101
      %p113 = scmp.eq.s32.totalorder %s28, 5
      %p114 = por %p112, %p113
      %p116 = scmp.ne.s32.totalorder %s101, %s115
      %p117 = scmp.eq.s32.totalorder %s28, 0
      %p118 = por %p116, %p117
      %s120 = sadd.s32 %s119, 1
      %p123 = scmp.eq.s32.totalorder %s22, 5
      %p124 = scmp.ne.s32.totalorder %s119, %s121
      %p125 = scmp.eq.s32.totalorder %s22, 0
      %p126 = por %p124, %p125
      %p127 = scmp.ne.s32.totalorder %s119, %s121
      %p128 = scmp.eq.s32.totalorder %s27, 5
      %p129 = por %p127, %p128
      %p130 = scmp.ne.s32.totalorder %s121, %s122
      %p131 = scmp.eq.s32.totalorder %s27, 0
      %p132 = por %p130, %p131
      %p133 = scmp.ne.s32.totalorder %s121, %s122
      %p134 = scmp.eq.s32.totalorder %s28, 5
      %p135 = por %p133, %p134
      %p137 = scmp.ne.s32.totalorder %s122, %s136
      %p138 = scmp.eq.s32.totalorder %s28, 0
      %p139 = por %p137, %p138
      %s141 = sadd.s32 %s140, 1
      %p144 = scmp.eq.s32.totalorder %s22, 5
      %p145 = scmp.ne.s32.totalorder %s140, %s142
      %p146 = scmp.eq.s32.totalorder %s22, 0
      %p147 = por %p145, %p146
      %p148 = scmp.ne.s32.totalorder %s140, %s142
      %p149 = scmp.eq.s32.totalorder %s27, 5
      %p150 = por %p148, %p149
      %p151 = scmp.ne.s32.totalorder %s142, %s143
      %p152 = scmp.eq.s32.totalorder %s27, 0
      %p153 = por %p151, %p152
      %p154 = scmp.ne.s32.totalorder %s142, %s143
      %p155 = scmp.eq.s32.totalorder %s28, 5
      %p156 = por %p154, %p155
      %p158 = scmp.ne.s32.totalorder %s143, %s157
      %p159 = scmp.eq.s32.totalorder %s28, 0
      %p160 = por %p158, %p159
      %s162 = sadd.s32 %s161, 1
      %p165 = scmp.eq.s32.totalorder %s22, 5
      %p166 = scmp.ne.s32.totalorder %s161, %s163
      %p167 = scmp.eq.s32.totalorder %s22, 0
      %p168 = por %p166, %p167
      %p169 = scmp.ne.s32.totalorder %s161, %s163
      %p170 = scmp.eq.s32.totalorder %s27, 5
      %p171 = por %p169, %p170
      %p172 = scmp.ne.s32.totalorder %s163, %s164
      %p173 = scmp.eq.s32.totalorder %s27, 0
      %p174 = por %p172, %p173
      %p175 = scmp.ne.s32.totalorder %s163, %s164
      %p176 = scmp.eq.s32.totalorder %s28, 5
      %p177 = por %p175, %p176
      %p179 = scmp.ne.s32.totalorder %s164, %s178
      %p180 = scmp.eq.s32.totalorder %s28, 0
      %p181 = por %p179, %p180
      %s183 = sadd.s32 %s182, 1
      %p186 = scmp.eq.s32.totalorder %s22, 5
      %p187 = scmp.ne.s32.totalorder %s182, %s184
      %p188 = scmp.eq.s32.totalorder %s22, 0
      %p189 = por %p187, %p188
      %p190 = scmp.ne.s32.totalorder %s182, %s184
      %p191 = scmp.eq.s32.totalorder %s27, 5
      %p192 = por %p190, %p191
      %p193 = scmp.ne.s32.totalorder %s184, %s185
      %p194 = scmp.eq.s32.totalorder %s27, 0
      %p195 = por %p193, %p194
      %p196 = scmp.ne.s32.totalorder %s184, %s185
      %p197 = scmp.eq.s32.totalorder %s28, 5
      %p198 = por %p196, %p197
      %p200 = scmp.ne.s32.totalorder %s185, %s199
      %p201 = scmp.eq.s32.totalorder %s28, 0
      %p202 = por %p200, %p201
      %s204 = sadd.s32 %s203, 1
      %p207 = scmp.eq.s32.totalorder %s22, 5
      %p208 = scmp.ne.s32.totalorder %s203, %s205
      %p209 = scmp.eq.s32.totalorder %s22, 0
      %p210 = por %p208, %p209
      %p211 = scmp.ne.s32.totalorder %s203, %s205
      %p212 = scmp.eq.s32.totalorder %s27, 5
      %p213 = por %p211, %p212
      %p214 = scmp.ne.s32.totalorder %s205, %s206
      %p215 = scmp.eq.s32.totalorder %s27, 0
      %p216 = por %p214, %p215
      %p217 = scmp.ne.s32.totalorder %s205, %s206
      %p218 = scmp.eq.s32.totalorder %s28, 5
      %p219 = por %p217, %p218
      %p221 = scmp.ne.s32.totalorder %s206, %s220
      %p222 = scmp.eq.s32.totalorder %s28, 0
      %p223 = por %p221, %p222
      %s225 = sadd.s32 %s224, 1
      %p228 = scmp.eq.s32.totalorder %s22, 5
      %p229 = scmp.ne.s32.totalorder %s224, %s226
      %p230 = scmp.eq.s32.totalorder %s22, 0
      %p231 = por %p229, %p230
      %p232 = scmp.ne.s32.totalorder %s224, %s226
      %p233 = scmp.eq.s32.totalorder %s27, 5
      %p234 = por %p232, %p233
      %p235 = scmp.ne.s32.totalorder %s226, %s227
      %p236 = scmp.eq.s32.totalorder %s27, 0
      %p237 = por %p235, %p236
      %p238 = scmp.ne.s32.totalorder %s226, %s227
      %p239 = scmp.eq.s32.totalorder %s28, 5
      %p240 = por %p238, %p239
      %p242 = scmp.ne.s32.totalorder %s227, %s241
      %p243 = scmp.eq.s32.totalorder %s28, 0
      %p244 = por %p242, %p243
      %s246 = sadd.s32 %s245, 1
      %p249 = scmp.eq.s32.totalorder %s22, 5
      %p250 = scmp.ne.s32.totalorder %s245, %s247
      %p251 = scmp.eq.s32.totalorder %s22, 0
      %p252 = por %p250, %p251
      %p253 = scmp.ne.s32.totalorder %s245, %s247
      %p254 = scmp.eq.s32.totalorder %s27, 5
      %p255 = por %p253, %p254
      %p256 = scmp.ne.s32.totalorder %s247, %s248
      %p257 = scmp.eq.s32.totalorder %s27, 0
      %p258 = por %p256, %p257
      %p259 = scmp.ne.s32.totalorder %s247, %s248
      %p260 = scmp.eq.s32.totalorder %s28, 5
      %p261 = por %p259, %p260
      %p263 = scmp.ne.s32.totalorder %s248, %s262
      %p264 = scmp.eq.s32.totalorder %s28, 0
      %p265 = por %p263, %p264
      %s267 = sadd.s32 %s266, 1
      %p270 = scmp.eq.s32.totalorder %s22, 5
      %p271 = scmp.ne.s32.totalorder %s266, %s268
      %p272 = scmp.eq.s32.totalorder %s22, 0
      %p273 = por %p271, %p272
      %p274 = scmp.ne.s32.totalorder %s266, %s268
      %p275 = scmp.eq.s32.totalorder %s27, 5
      %p276 = por %p274, %p275
      %p277 = scmp.ne.s32.totalorder %s268, %s269
      %p278 = scmp.eq.s32.totalorder %s27, 0
      %p279 = por %p277, %p278
      %p280 = scmp.ne.s32.totalorder %s268, %s269
      %p281 = scmp.eq.s32.totalorder %s28, 5
      %p282 = por %p280, %p281
      %p284 = scmp.ne.s32.totalorder %s269, %s283
      %p285 = scmp.eq.s32.totalorder %s28, 0
      %p286 = por %p284, %p285
      %s288 = sadd.s32 %s287, 1
      %p291 = scmp.eq.s32.totalorder %s22, 5
      %p292 = scmp.ne.s32.totalorder %s287, %s289
      %p293 = scmp.eq.s32.totalorder %s22, 0
      %p294 = por %p292, %p293
      %p295 = scmp.ne.s32.totalorder %s287, %s289
      %p296 = scmp.eq.s32.totalorder %s27, 5
      %p297 = por %p295, %p296
      %p298 = scmp.ne.s32.totalorder %s289, %s290
      %p299 = scmp.eq.s32.totalorder %s27, 0
      %p300 = por %p298, %p299
      %p301 = scmp.ne.s32.totalorder %s289, %s290
      %p302 = scmp.eq.s32.totalorder %s28, 5
      %p303 = por %p301, %p302
      %p305 = scmp.ne.s32.totalorder %s290, %s304
      %p306 = scmp.eq.s32.totalorder %s28, 0
      %p307 = por %p305, %p306
      %s308 = ssub.s32 %s22, %s29
      %p309 = scmp.eq.s32.totalorder %s308, 0
      %s311 = sadd.s32 %s310, 1
      %s312 = scalar_select %p309, %s310, %s311
      %p315 = pneg %p309
      %p316 = scmp.eq.s32.totalorder %s22, 5
      %p317 = por %p315, %p316
      %p318 = scmp.ne.s32.totalorder %s310, %s313
      %p319 = scmp.eq.s32.totalorder %s22, 0
      %p320 = por %p318, %p319
      %p321 = scmp.ne.s32.totalorder %s310, %s313
      %p322 = scmp.eq.s32.totalorder %s27, 5
      %p323 = por %p321, %p322
      %p324 = scmp.ne.s32.totalorder %s313, %s314
      %p325 = scmp.eq.s32.totalorder %s27, 0
      %p326 = por %p324, %p325
      %p327 = scmp.ne.s32.totalorder %s313, %s314
      %p328 = scmp.eq.s32.totalorder %s28, 5
      %p329 = por %p327, %p328
      %p331 = scmp.ne.s32.totalorder %s314, %s330
      %p332 = scmp.eq.s32.totalorder %s28, 0
      %p333 = por %p331, %p332
      %p334 = scmp.le.s32.totalorder 1, %s22
      %p335 = scmp.lt.s32.totalorder %s22, 7
      %p336 = pnand %p334, %p335
      %p337 = pneg %p336
      // Predicated region
      $region9: #{_lambda_.3} parent=5 // pred_check
        _
      $region10: #{_lambda_.3} parent=5 // pred_check_branch
        %339 = sbr.rel (%p336) target = $region12
      $region11: #{_lambda_.3} parent=5 // pred_region
        %s340 = ssub.s32 %s22, 1
        // Predicated region
        $region13: #{_lambda_.3} parent=11 // pred_check
          %p341 = pneg %p69
        $region14: #{_lambda_.3} parent=11 // pred_check_branch
          %343 = sbr.rel (%p341) target = $region16
        $region15: #{_lambda_.3} parent=11 // pred_region
          _
        $region16: #{_lambda_.3} parent=11 // pred_fallthru
          _
        // Predicated region
        $region17: #{_lambda_.3} parent=11 // pred_check
          %p344 = pneg %p90
        $region18: #{_lambda_.3} parent=11 // pred_check_branch
          %346 = sbr.rel (%p344) target = $region20
        $region19: #{_lambda_.3} parent=11 // pred_region
          _
        $region20: #{_lambda_.3} parent=11 // pred_fallthru
          _
        // Predicated region
        $region21: #{_lambda_.3} parent=11 // pred_check
          %p347 = pneg %p111
        $region22: #{_lambda_.3} parent=11 // pred_check_branch
          %349 = sbr.rel (%p347) target = $region24
        $region23: #{_lambda_.3} parent=11 // pred_region
          _
        $region24: #{_lambda_.3} parent=11 // pred_fallthru
          _
        // Predicated region
        $region25: #{_lambda_.3} parent=11 // pred_check
          %p350 = pneg %p132
        $region26: #{_lambda_.3} parent=11 // pred_check_branch
          %352 = sbr.rel (%p350) target = $region28
        $region27: #{_lambda_.3} parent=11 // pred_region
          _
        $region28: #{_lambda_.3} parent=11 // pred_fallthru
          _
        // Predicated region
        $region29: #{_lambda_.3} parent=11 // pred_check
          %p353 = pneg %p153
        $region30: #{_lambda_.3} parent=11 // pred_check_branch
          %355 = sbr.rel (%p353) target = $region32
        $region31: #{_lambda_.3} parent=11 // pred_region
          _
        $region32: #{_lambda_.3} parent=11 // pred_fallthru
          _
        // Predicated region
        $region33: #{_lambda_.3} parent=11 // pred_check
          %p356 = pneg %p174
        $region34: #{_lambda_.3} parent=11 // pred_check_branch
          %358 = sbr.rel (%p356) target = $region36
        $region35: #{_lambda_.3} parent=11 // pred_region
          _
        $region36: #{_lambda_.3} parent=11 // pred_fallthru
          _
        // Predicated region
        $region37: #{_lambda_.3} parent=11 // pred_check
          %p359 = pneg %p195
        $region38: #{_lambda_.3} parent=11 // pred_check_branch
          %361 = sbr.rel (%p359) target = $region40
        $region39: #{_lambda_.3} parent=11 // pred_region
          _
        $region40: #{_lambda_.3} parent=11 // pred_fallthru
          _
        // Predicated region
        $region41: #{_lambda_.3} parent=11 // pred_check
          %p362 = pneg %p216
        $region42: #{_lambda_.3} parent=11 // pred_check_branch
          %364 = sbr.rel (%p362) target = $region44
        $region43: #{_lambda_.3} parent=11 // pred_region
          _
        $region44: #{_lambda_.3} parent=11 // pred_fallthru
          _
        // Predicated region
        $region45: #{_lambda_.3} parent=11 // pred_check
          %p365 = pneg %p237
        $region46: #{_lambda_.3} parent=11 // pred_check_branch
          %367 = sbr.rel (%p365) target = $region48
        $region47: #{_lambda_.3} parent=11 // pred_region
          _
        $region48: #{_lambda_.3} parent=11 // pred_fallthru
          _
        // Predicated region
        $region49: #{_lambda_.3} parent=11 // pred_check
          %p368 = pneg %p258
        $region50: #{_lambda_.3} parent=11 // pred_check_branch
          %370 = sbr.rel (%p368) target = $region52
        $region51: #{_lambda_.3} parent=11 // pred_region
          _
        $region52: #{_lambda_.3} parent=11 // pred_fallthru
          _
        // Predicated region
        $region53: #{_lambda_.3} parent=11 // pred_check
          %p371 = pneg %p279
        $region54: #{_lambda_.3} parent=11 // pred_check_branch
          %373 = sbr.rel (%p371) target = $region56
        $region55: #{_lambda_.3} parent=11 // pred_region
          _
        $region56: #{_lambda_.3} parent=11 // pred_fallthru
          _
        // Predicated region
        $region57: #{_lambda_.3} parent=11 // pred_check
          %p374 = pneg %p300
        $region58: #{_lambda_.3} parent=11 // pred_check_branch
          %376 = sbr.rel (%p374) target = $region60
        $region59: #{_lambda_.3} parent=11 // pred_region
          _
        $region60: #{_lambda_.3} parent=11 // pred_fallthru
          _
      $region12: #{_lambda_.3} parent=5 // pred_fallthru
        _
      %p377 = scmp.lt.s32.totalorder %s22, 6
      // Predicated region
      $region61: #{_lambda_.3} parent=5 // pred_check
        %p378 = pneg %p377
      $region62: #{_lambda_.3} parent=5 // pred_check_branch
        %380 = sbr.rel (%p378) target = $region64
      $region63: #{_lambda_.3} parent=5 // pred_region
        // Predicated region
        $region65: #{_lambda_.3} parent=63 // pred_check
          %p381 = pneg %p42
        $region66: #{_lambda_.3} parent=63 // pred_check_branch
          %383 = sbr.rel (%p381) target = $region68
        $region67: #{_lambda_.3} parent=63 // pred_region
          %p384 = scmp.lt.s32.totalorder %s22, 5
          %s385 = scalar_select %p384, %s22, 5
          %s386 = smul.addr %s385, 4
          %s387 = scalar_lea.vmem %s0, %s386
        $region68: #{_lambda_.3} parent=63 // pred_fallthru
          _
      $region64: #{_lambda_.3} parent=5 // pred_fallthru
        _
      %p388 = scmp.le.s32.totalorder 1, %s22
      %p389 = scmp.lt.s32.totalorder %s22, 7
      %p390 = pnand %p388, %p389
      %p391 = pneg %p390
      // Predicated region
      $region69: #{_lambda_.3} parent=5 // pred_check
        _
      $region70: #{_lambda_.3} parent=5 // pred_check_branch
        %393 = sbr.rel (%p390) target = $region72
      $region71: #{_lambda_.3} parent=5 // pred_region
        %s394 = ssub.s32 %s22, 1
        %p395 = scmp.lt.s32.totalorder %s27, 5
        %s396 = scalar_select %p395, %s27, 5
        %s397 = smul.addr %s396, 4
        %s398 = scalar_lea.vmem %s0, %s397
        %p399 = pneg %p48
        %p400 = pneg %p45
        %p401 = pneg %p69
        %p402 = pneg %p66
        %p403 = pneg %p90
        %p404 = pneg %p87
        %p405 = pneg %p111
        %p406 = pneg %p108
        %p407 = pneg %p132
        %p408 = pneg %p129
        %p409 = pneg %p153
        %p410 = pneg %p150
        %p411 = pneg %p174
        %p412 = pneg %p171
        %p413 = pneg %p195
        %p414 = pneg %p192
        %p415 = pneg %p216
        %p416 = pneg %p213
        %p417 = pneg %p237
        %p418 = pneg %p234
        %p419 = pneg %p258
        %p420 = pneg %p255
        %p421 = pneg %p279
        %p422 = pneg %p276
        %p423 = pneg %p300
        %p424 = pneg %p297
        %p425 = pneg %p326
        %p426 = pneg %p323
        %s427 = sand.u32 %s313, 1
        %s428 = scalar_lea.sflag [#allocation6], %s427
        %s429 = sand.u32 %s313, 1
        %s430 = smul.addr %s429, 4
        %s431 = scalar_lea.vmem [#allocation5], %s430
        %p432 = scmp.lt.s32.totalorder %s27, 5
        %s433 = scalar_select %p432, %s27, 5
        %s434 = smul.addr %s433, 4
        %s435 = scalar_lea.vmem %s0, %s434
        %v437 = vld [vmem:[%s1] sm:$0xf]
        %v438 = vld [vmem:[%s1 + $0x4] sm:$0xf]
        %v439 = vld [vmem:[%s1 + $0x8] sm:$0xf]
        %v440 = vld [vmem:[%s1 + $0xc] sm:$0xf]
        %p441 = scmp.eq.s32.totalorder %s27, 0
        // Predicated region
        $region73: #{_lambda_.3} parent=71 // pred_check
          %p442 = pneg %p441
        $region74: #{_lambda_.3} parent=71 // pred_check_branch
          %444 = sbr.rel (%p442) target = $region76
        $region75: #{_lambda_.3} parent=71 // pred_region
          %v445 = vld [vmem:[%s2] sm:$0xf]
          %vm446 = vcmask 257024
          %447 = vst.msk [vmem:[#allocation2] sm:$0xf] %vm446, %v445
          %v448 = vld [vmem:[%s3] sm:$0xf]
          %449 = vst.msk [vmem:[#allocation3] sm:$0xf] %vm446, %v448
          %v450 = vpack.c.bf16 %v437, %v437
          %v451 = vpack.c.bf16 %v438, %v438
          %v452 = vpack.c.bf16 %v439, %v439
          %v453 = vpack.c.bf16 %v440, %v440
          %v454 = vld [vmem:[%s4] sm:$0xf]
          %v455 = vld [vmem:[%s4 + $0x4] sm:$0xf]
          %v456 = vld [vmem:[%s4 + $0x8] sm:$0xf]
          %v457 = vld [vmem:[%s4 + $0xc] sm:$0xf]
          %v462 = vcombine.low %v450, %v451
          %v463 = vcombine.low %v452, %v453
          %v465 = vunpack.c.l.s4 1983009808
          %v466 = vunpack.c.0.s8 %v465
          %v467 = vlaneseq
          %v468 = vshrl.u32 %v467, 7
          %v469 = vsub.s32 %v466, %v468
          %v470 = vrot.slane %v462, %v469
          %v472 = vunpack.c.l.s4 1983009808
          %v473 = vunpack.c.0.s8 %v472
          %v474 = vlaneseq
          %v475 = vshrl.u32 %v474, 7
          %v476 = vsub.s32 %v473, %v475
          %v477 = vrot.slane %v463, %v476
          %v478 = vcombine.low %v470, %v477
          %v483 = vunpack.c.l.b16 %v454
          %v484 = vunpack.c.l.b16 %v455
          %v485 = vunpack.c.l.b16 %v456
          %v486 = vunpack.c.l.b16 %v457
          %v487 = vpack.c.b16 %v484, %v483
          %v488 = vpack.c.b16 %v486, %v485
          %vm491 = vcmask 261120
          %v493 = vsel %vm491, %v478, 0
          %495 = vmatprep.subr.bf16.mxu0 0
          %496 = vmatpush1.bf16.msra.mxu0 0
          %497 = vmatprep.subr.bf16.mxu0 0
          %498 = vmatpush1.bf16.msra.mxu0 0
          %499 = vmatprep.subr.bf16.mxu0 0
          %500 = vmatpush1.bf16.msra.mxu0 0
          %501 = vmatprep.subr.bf16.mxu0 0
          %502 = vmatpush1.bf16.msra.mxu0 0
          %503 = vmatprep.subr.bf16.mxu0 0
          %504 = vmatpush1.bf16.msra.mxu0 0
          %505 = vmatprep.subr.bf16.mxu0 0
          %506 = vmatpush1.bf16.msra.mxu0 0
          %507 = vmatprep.subr.bf16.mxu0 0
          %508 = vmatpush1.bf16.msra.mxu0 %v488
          %509 = vmatprep.subr.bf16.mxu0 0
          %510 = vmatpush1.bf16.msra.mxu0 %v487
          %511 = vmatprep.subr.bf16.mxu0 0
          %512 = vmatpush2.bf16.msra.mxu0 0
          %513 = vmatprep.subr.bf16.mxu0 0
          %514 = vmatpush2.bf16.msra.mxu0 0
          %515 = vmatprep.subr.bf16.mxu0 0
          %516 = vmatpush2.bf16.msra.mxu0 0
          %517 = vmatprep.subr.bf16.mxu0 0
          %518 = vmatpush2.bf16.msra.mxu0 0
          %519 = vmatprep.subr.bf16.mxu0 0
          %520 = vmatpush2.bf16.msra.mxu0 0
          %521 = vmatprep.subr.bf16.mxu0 0
          %522 = vmatpush2.bf16.msra.mxu0 0
          %523 = vmatprep.subr.bf16.mxu0 0
          %524 = vmatpush2.bf16.msra.mxu0 0
          %525 = vmatprep.subr.bf16.mxu0 0
          %526 = vmatpush2.bf16.msra.mxu0 0
          %527 = vmatprep.mubr.bf16.mxu0 0
          %528 = vmatmul.mubr.bf16.gmra.mxu0 %v493
          %v529 = vpop.f32.mrf.mxu0
          %v530 = vadd.f32 0.0, %v529
          %v531 = vpop.f32.mrf.mxu0
          %v532 = vpop.f32.mrf.mxu0
          %v533 = vadd.f32 0.0, %v532
          %v534 = vpop.f32.mrf.mxu0
          %535 = vdwg.mxu0
          %v538 = vcombine.high %v530, %v530
          %v539 = vcombine.high %v533, %v533
          %v542 = vld [vmem:[%s5] sm:$0x1]
          %v544 = vlaneseq
          %v545 = vshrl.u32 %v544, 7
          %v546 = vsub.s32 0, %v545
          %v547 = vrot.slane %v542, %v546
          %v549 = vadd.f32 %v530, %v547
          %v550 = vadd.f32 %v538, %v547
          %v551 = vadd.f32 %v533, %v547
          %v552 = vadd.f32 %v539, %v547
          %553 = vst.msk [vmem:[#allocation4] sm:$0xf] %vm446, %v549
          %554 = vst.msk [vmem:[#allocation4 + $0x4] sm:$0xf] %vm446, %v550
          %555 = vst.msk [vmem:[#allocation4 + $0x8] sm:$0xf] %vm446, %v551
          %556 = vst.msk [vmem:[#allocation4 + $0xc] sm:$0xf] %vm446, %v552
        $region76: #{_lambda_.3} parent=71 // pred_fallthru
          _
        %v557 = vld [vmem:[%s435] sm:$0xf]
        %v558 = vld [vmem:[#allocation2] sm:$0xf]
        %v559 = vld [vmem:[#allocation3] sm:$0xf]
        %v560 = vld [vmem:[#allocation4] sm:$0xf]
        %v561 = vld [vmem:[#allocation4 + $0x4] sm:$0xf]
        %v562 = vld [vmem:[#allocation4 + $0x8] sm:$0xf]
        %v563 = vld [vmem:[#allocation4 + $0xc] sm:$0xf]
        %v564 = vld [vmem:[%s6] sm:$0xf]
        %v565 = vld [vmem:[%s6 + $0x4] sm:$0xf]
        %v566 = vld [vmem:[%s6 + $0x8] sm:$0xf]
        %v567 = vld [vmem:[%s6 + $0xc] sm:$0xf]
        %v568 = vld [vmem:[%s7] sm:$0x1]
        %v569 = vld [vmem:[%s8] sm:$0xff]
        %v570 = vld [vmem:[%s8 + $0x8] sm:$0xff]
        %v571 = vld [vmem:[%s8 + $0x10] sm:$0xff]
        %v572 = vld [vmem:[%s8 + $0x18] sm:$0xff]
        %v573 = vpack.c.bf16 %v558, %v558
        %v575 = vlaneseq
        %v576 = vshrl.u32 %v575, 7
        %v577 = vsub.s32 0, %v576
        %v578 = vrot.slane %v568, %v577
        %v584 = vunpack.c.l.b16 %v564
        %v585 = vunpack.c.l.b16 %v565
        %v586 = vunpack.c.l.b16 %v566
        %v587 = vunpack.c.l.b16 %v567
        %v588 = vpack.c.b16 %v585, %v584
        %v589 = vpack.c.b16 %v587, %v586
        %vm592 = vcmask 261120
        %v594 = vsel %vm592, %v573, 0
        %596 = vmatprep.subr.bf16.mxu0 0
        %597 = vmatpush1.bf16.msra.mxu0 0
        %598 = vmatprep.subr.bf16.mxu0 0
        %599 = vmatpush1.bf16.msra.mxu0 0
        %600 = vmatprep.subr.bf16.mxu0 0
        %601 = vmatpush1.bf16.msra.mxu0 0
        %602 = vmatprep.subr.bf16.mxu0 0
        %603 = vmatpush1.bf16.msra.mxu0 0
        %604 = vmatprep.subr.bf16.mxu0 0
        %605 = vmatpush1.bf16.msra.mxu0 0
        %606 = vmatprep.subr.bf16.mxu0 0
        %607 = vmatpush1.bf16.msra.mxu0 0
        %608 = vmatprep.subr.bf16.mxu0 0
        %609 = vmatpush1.bf16.msra.mxu0 %v589
        %610 = vmatprep.subr.bf16.mxu0 0
        %611 = vmatpush1.bf16.msra.mxu0 %v588
        %612 = vmatprep.subr.bf16.mxu0 0
        %613 = vmatpush2.bf16.msra.mxu0 0
        %614 = vmatprep.subr.bf16.mxu0 0
        %615 = vmatpush2.bf16.msra.mxu0 0
        %616 = vmatprep.subr.bf16.mxu0 0
        %617 = vmatpush2.bf16.msra.mxu0 0
        %618 = vmatprep.subr.bf16.mxu0 0
        %619 = vmatpush2.bf16.msra.mxu0 0
        %620 = vmatprep.subr.bf16.mxu0 0
        %621 = vmatpush2.bf16.msra.mxu0 0
        %622 = vmatprep.subr.bf16.mxu0 0
        %623 = vmatpush2.bf16.msra.mxu0 0
        %624 = vmatprep.subr.bf16.mxu0 0
        %625 = vmatpush2.bf16.msra.mxu0 0
        %626 = vmatprep.subr.bf16.mxu0 0
        %627 = vmatpush2.bf16.msra.mxu0 0
        %628 = vmatprep.mubr.bf16.mxu0 0
        %629 = vmatmul.mubr.bf16.gmra.mxu0 %v594
        %v630 = vpop.f32.mrf.mxu0
        %v631 = vadd.f32 %v578, %v630
        %v632 = vpop.f32.mrf.mxu0
        %v633 = vpop.f32.mrf.mxu0
        %v634 = vpop.f32.mrf.mxu0
        %635 = vdwg.mxu0
        %v638 = vunpack.c.l.s4 1966171168
        %v639 = vunpack.c.0.s8 %v638
        %v640 = vlaneseq
        %v641 = vshrl.u32 %v640, 7
        %v642 = vsub.s32 %v639, %v641
        %v643 = vrot.slane %v631, %v642
        %v644 = vcombine.high %v643, %v643
        %v646 = vunpack.c.l.s4 1966171168
        %v647 = vunpack.c.0.s8 %v646
        %v648 = vlaneseq
        %v649 = vshrl.u32 %v648, 7
        %v650 = vsub.s32 %v647, %v649
        %v651 = vrot.slane %v643, %v650
        %v653 = vunpack.c.l.s4 1966171168
        %v654 = vunpack.c.0.s8 %v653
        %v655 = vlaneseq
        %v656 = vshrl.u32 %v655, 7
        %v657 = vsub.s32 %v654, %v656
        %v658 = vrot.slane %v644, %v657
        %v659 = vcombine.high %v651, %v651
        %v660 = vcombine.high %v658, %v658
        %v661 = vlaneseq
        %v662 = vshrl.u32 %v661, 7
        %v663 = vsub.s32 0, %v662
        %v664 = vrot.slane %v651, %v663
        %v665 = vlaneseq
        %v666 = vshrl.u32 %v665, 7
        %v667 = vsub.s32 0, %v666
        %v668 = vrot.slane %v658, %v667
        %v669 = vlaneseq
        %v670 = vshrl.u32 %v669, 7
        %v671 = vsub.s32 0, %v670
        %v672 = vrot.slane %v659, %v671
        %v673 = vlaneseq
        %v674 = vshrl.u32 %v673, 7
        %v675 = vsub.s32 0, %v674
        %v676 = vrot.slane %v660, %v675
        %v681 = vadd.f32 %v560, %v664
        %v682 = vadd.f32 %v561, %v668
        %v683 = vadd.f32 %v562, %v672
        %v684 = vadd.f32 %v563, %v676
        %v685 = vtanh.pop %v681
        %v686 = vtanh.pop %v682
        %v687 = vtanh.pop %v683
        %v688 = vtanh.pop %v684
        %v693 = vcombine.low %v685, %v686
        %v694 = vcombine.low %v687, %v688
        %v697 = vpack.c.bf16 %v694, %v693
        %v698 = vpack.c.bf16 %v570, %v569
        %v699 = vpack.c.bf16 %v572, %v571
        %v701 = vsel %vm592, %v697, 0
        %703 = vmatprep.subr.bf16.mxu0 0
        %704 = vmatpush1.bf16.msra.mxu0 0
        %705 = vmatprep.subr.bf16.mxu0 0
        %706 = vmatpush1.bf16.msra.mxu0 0
        %707 = vmatprep.subr.bf16.mxu0 0
        %708 = vmatpush1.bf16.msra.mxu0 0
        %709 = vmatprep.subr.bf16.mxu0 0
        %710 = vmatpush1.bf16.msra.mxu0 0
        %711 = vmatprep.subr.bf16.mxu0 0
        %712 = vmatpush1.bf16.msra.mxu0 0
        %713 = vmatprep.subr.bf16.mxu0 0
        %714 = vmatpush1.bf16.msra.mxu0 0
        %715 = vmatprep.subr.bf16.mxu0 0
        %716 = vmatpush1.bf16.msra.mxu0 %v699
        %717 = vmatprep.subr.bf16.mxu0 0
        %718 = vmatpush1.bf16.msra.mxu0 %v698
        %719 = vmatprep.subr.bf16.mxu0 0
        %720 = vmatpush2.bf16.msra.mxu0 0
        %721 = vmatprep.subr.bf16.mxu0 0
        %722 = vmatpush2.bf16.msra.mxu0 0
        %723 = vmatprep.subr.bf16.mxu0 0
        %724 = vmatpush2.bf16.msra.mxu0 0
        %725 = vmatprep.subr.bf16.mxu0 0
        %726 = vmatpush2.bf16.msra.mxu0 0
        %727 = vmatprep.subr.bf16.mxu0 0
        %728 = vmatpush2.bf16.msra.mxu0 0
        %729 = vmatprep.subr.bf16.mxu0 0
        %730 = vmatpush2.bf16.msra.mxu0 0
        %731 = vmatprep.subr.bf16.mxu0 0
        %732 = vmatpush2.bf16.msra.mxu0 0
        %733 = vmatprep.subr.bf16.mxu0 0
        %734 = vmatpush2.bf16.msra.mxu0 0
        %735 = vmatprep.mubr.bf16.mxu0 0
        %736 = vmatmul.mubr.bf16.gmra.mxu0 %v701
        %v737 = vpop.f32.mrf.mxu0
        %v738 = vadd.f32 0.0, %v737
        %v739 = vpop.f32.mrf.mxu0
        %v740 = vpop.f32.mrf.mxu0
        %v741 = vadd.f32 0.0, %v740
        %v742 = vpop.f32.mrf.mxu0
        %743 = vdwg.mxu0
        %v746 = vcombine.high %v738, %v738
        %v747 = vcombine.high %v741, %v741
        %750 = vset.pattern.permute.xlu0 0
        %751 = vperm.xlu0 %750, %v738
        %v752 = vpop.permute.xlu0 %751
        %753 = vset.pattern.permute.xlu0 0
        %754 = vperm.xlu0 %753, %v746
        %v755 = vpop.permute.xlu0 %754
        %756 = vset.pattern.permute.xlu0 0
        %757 = vperm.xlu0 %756, %v741
        %v758 = vpop.permute.xlu0 %757
        %759 = vset.pattern.permute.xlu0 0
        %760 = vperm.xlu0 %759, %v747
        %v761 = vpop.permute.xlu0 %760
        %v762 = vlaneseq
        %v763 = vand.u32 %v762, 127
        %v764 = vlaneseq
        %v765 = vshrl.u32 %v764, 7
        %v766 = vsub.s32 %v763, %v765
        %v767 = vrot.slane %v752, %v766
        %v768 = vlaneseq
        %v769 = vshrl.u32 %v768, 7
        %v770 = vsub.s32 %v763, %v769
        %v771 = vrot.slane %v755, %v770
        %v772 = vlaneseq
        %v773 = vshrl.u32 %v772, 7
        %v774 = vsub.s32 %v763, %v773
        %v775 = vrot.slane %v758, %v774
        %v776 = vlaneseq
        %v777 = vshrl.u32 %v776, 7
        %v778 = vsub.s32 %v763, %v777
        %v779 = vrot.slane %v761, %v778
        %vm780 = vcmask 1041409
        %v781 = vsel %vm780, %v771, %v767
        %vm782 = vcmask 1042434
        %v783 = vsel %vm782, %v775, %v781
        %vm784 = vcmask 1043459
        %v785 = vsel %vm784, %v779, %v783
        %vm787 = vcmask 27648
        %v788 = vsel %vm787, %v785, -inf
        %789 = vmax.xlane.f32.xlu0 %v788
        %v790 = vpop.xlane.xlu0 %789
        %v793 = vunpack.c.l.s4 839922192
        %v794 = vunpack.c.0.s8 %v793
        %v795 = vlaneseq
        %v796 = vshrl.u32 %v795, 7
        %v797 = vsub.s32 %v794, %v796
        %v798 = vrot.slane %v790, %v797
        %v799 = vlaneseq
        %v800 = vshrl.u32 %v799, 7
        %v801 = vsub.s32 0, %v800
        %v802 = vrot.slane %v798, %v801
        %804 = vbcast.lane.b32.xlu0 %v802, 256
        %v805 = vpop.permute.xlu0 %804
        %v806 = vlaneseq
        %v807 = vshrl.u32 %v806, 7
        %v808 = vsub.s32 1, %v807
        %v809 = vrot.slane %v798, %v808
        %811 = vbcast.lane.b32.xlu0 %v809, 256
        %v812 = vpop.permute.xlu0 %811
        %v813 = vlaneseq
        %v814 = vshrl.u32 %v813, 7
        %v815 = vsub.s32 2, %v814
        %v816 = vrot.slane %v798, %v815
        %818 = vbcast.lane.b32.xlu0 %v816, 256
        %v819 = vpop.permute.xlu0 %818
        %v820 = vlaneseq
        %v821 = vshrl.u32 %v820, 7
        %v822 = vsub.s32 3, %v821
        %v823 = vrot.slane %v798, %v822
        %825 = vbcast.lane.b32.xlu0 %v823, 256
        %v826 = vpop.permute.xlu0 %825
        %v831 = vsub.f32 %v738, %v805
        %v832 = vsub.f32 %v746, %v812
        %v833 = vsub.f32 %v741, %v819
        %v834 = vsub.f32 %v747, %v826
        %v835 = vmul.f32 %v831, 1.442695
        %v836 = vpow.pop %v835
        %v837 = vmul.f32 %v832, 1.442695
        %v838 = vpow.pop %v837
        %v839 = vmul.f32 %v833, 1.442695
        %v840 = vpow.pop %v839
        %v841 = vmul.f32 %v834, 1.442695
        %v842 = vpow.pop %v841
        %847 = vset.pattern.permute.xlu0 0
        %848 = vperm.xlu0 %847, %v836
        %v849 = vpop.permute.xlu0 %848
        %850 = vset.pattern.permute.xlu0 0
        %851 = vperm.xlu0 %850, %v838
        %v852 = vpop.permute.xlu0 %851
        %853 = vset.pattern.permute.xlu0 0
        %854 = vperm.xlu0 %853, %v840
        %v855 = vpop.permute.xlu0 %854
        %856 = vset.pattern.permute.xlu0 0
        %857 = vperm.xlu0 %856, %v842
        %v858 = vpop.permute.xlu0 %857
        %v859 = vlaneseq
        %v860 = vshrl.u32 %v859, 7
        %v861 = vsub.s32 %v763, %v860
        %v862 = vrot.slane %v849, %v861
        %v863 = vlaneseq
        %v864 = vshrl.u32 %v863, 7
        %v865 = vsub.s32 %v763, %v864
        %v866 = vrot.slane %v852, %v865
        %v867 = vlaneseq
        %v868 = vshrl.u32 %v867, 7
        %v869 = vsub.s32 %v763, %v868
        %v870 = vrot.slane %v855, %v869
        %v871 = vlaneseq
        %v872 = vshrl.u32 %v871, 7
        %v873 = vsub.s32 %v763, %v872
        %v874 = vrot.slane %v858, %v873
        %v875 = vsel %vm780, %v866, %v862
        %v876 = vsel %vm782, %v870, %v875
        %v877 = vsel %vm784, %v874, %v876
        %v879 = vsel %vm787, %v877, 0.0
        %880 = vadd.xlane.f32.xlu0 %v879
        %v881 = vpop.xlane.xlu0 %880
        %v882 = vrcp.pop %v881
        %v885 = vunpack.c.l.s4 839922192
        %v886 = vunpack.c.0.s8 %v885
        %v887 = vlaneseq
        %v888 = vshrl.u32 %v887, 7
        %v889 = vsub.s32 %v886, %v888
        %v890 = vrot.slane %v882, %v889
        %v891 = vlaneseq
        %v892 = vshrl.u32 %v891, 7
        %v893 = vsub.s32 0, %v892
        %v894 = vrot.slane %v890, %v893
        %896 = vbcast.lane.b32.xlu0 %v894, 256
        %v897 = vpop.permute.xlu0 %896
        %v898 = vlaneseq
        %v899 = vshrl.u32 %v898, 7
        %v900 = vsub.s32 1, %v899
        %v901 = vrot.slane %v890, %v900
        %903 = vbcast.lane.b32.xlu0 %v901, 256
        %v904 = vpop.permute.xlu0 %903
        %v905 = vlaneseq
        %v906 = vshrl.u32 %v905, 7
        %v907 = vsub.s32 2, %v906
        %v908 = vrot.slane %v890, %v907
        %910 = vbcast.lane.b32.xlu0 %v908, 256
        %v911 = vpop.permute.xlu0 %910
        %v912 = vlaneseq
        %v913 = vshrl.u32 %v912, 7
        %v914 = vsub.s32 3, %v913
        %v915 = vrot.slane %v890, %v914
        %917 = vbcast.lane.b32.xlu0 %v915, 256
        %v918 = vpop.permute.xlu0 %917
        %v923 = vmul.f32 %v836, %v897
        %v924 = vmul.f32 %v838, %v904
        %v925 = vmul.f32 %v840, %v911
        %v926 = vmul.f32 %v842, %v918
        %928 = vset.pattern.permute.xlu0 0
        %929 = vperm.xlu0 %928, %v923
        %v930 = vpop.permute.xlu0 %929
        %v933 = vunpack.c.l.s4 839922192
        %v934 = vunpack.c.0.s8 %v933
        %v935 = vlaneseq
        %v936 = vshrl.u32 %v935, 7
        %v937 = vsub.s32 %v934, %v936
        %v938 = vrot.slane %v930, %v937
        %940 = vset.pattern.permute.xlu0 0
        %941 = vperm.xlu0 %940, %v924
        %v942 = vpop.permute.xlu0 %941
        %v945 = vunpack.c.l.s4 839922192
        %v946 = vunpack.c.0.s8 %v945
        %v947 = vlaneseq
        %v948 = vshrl.u32 %v947, 7
        %v949 = vsub.s32 %v946, %v948
        %v950 = vrot.slane %v942, %v949
        %952 = vset.pattern.permute.xlu0 0
        %953 = vperm.xlu0 %952, %v925
        %v954 = vpop.permute.xlu0 %953
        %v957 = vunpack.c.l.s4 839922192
        %v958 = vunpack.c.0.s8 %v957
        %v959 = vlaneseq
        %v960 = vshrl.u32 %v959, 7
        %v961 = vsub.s32 %v958, %v960
        %v962 = vrot.slane %v954, %v961
        %964 = vset.pattern.permute.xlu0 0
        %965 = vperm.xlu0 %964, %v926
        %v966 = vpop.permute.xlu0 %965
        %v969 = vunpack.c.l.s4 839922192
        %v970 = vunpack.c.0.s8 %v969
        %v971 = vlaneseq
        %v972 = vshrl.u32 %v971, 7
        %v973 = vsub.s32 %v970, %v972
        %v974 = vrot.slane %v966, %v973
        %v975 = vmul.f32 %v938, %v437
        %v976 = vmul.f32 %v950, %v438
        %v977 = vmul.f32 %v962, %v439
        %v978 = vmul.f32 %v974, %v440
        %vm979 = vcmask 257024
        %v980 = vsel %vm979, %v975, 0.0
        %v981 = vrot.slane %v980, 4
        %v982 = vadd.f32 %v980, %v981
        %v983 = vrot.slane %v982, 2
        %v984 = vadd.f32 %v982, %v983
        %v985 = vrot.slane %v984, 1
        %v986 = vadd.f32 %v984, %v985
        %v987 = vsel %vm979, %v976, 0.0
        %v988 = vrot.slane %v987, 4
        %v989 = vadd.f32 %v987, %v988
        %v990 = vrot.slane %v989, 2
        %v991 = vadd.f32 %v989, %v990
        %v992 = vrot.slane %v991, 1
        %v993 = vadd.f32 %v991, %v992
        %v994 = vsel %vm979, %v977, 0.0
        %v995 = vrot.slane %v994, 4
        %v996 = vadd.f32 %v994, %v995
        %v997 = vrot.slane %v996, 2
        %v998 = vadd.f32 %v996, %v997
        %v999 = vrot.slane %v998, 1
        %v1000 = vadd.f32 %v998, %v999
        %v1001 = vsel %vm979, %v978, 0.0
        %v1002 = vrot.slane %v1001, 4
        %v1003 = vadd.f32 %v1001, %v1002
        %v1004 = vrot.slane %v1003, 2
        %v1005 = vadd.f32 %v1003, %v1004
        %v1006 = vrot.slane %v1005, 1
        %v1007 = vadd.f32 %v1005, %v1006
        %1009 = vrot.lane.b32.xlu0 %v558, 32
        %v1010 = vpop.permute.xlu0 %1009
        %v1016 = vsel %vm780, %v993, %v986
        %v1017 = vsel %vm782, %v1000, %v1016
        %v1018 = vsel %vm784, %v1007, %v1017
        %1019 = vrot.lane.b32.xlu0 %v1018, 64
        %v1020 = vpop.permute.xlu0 %1019
        %v1022 = vsel %vm592, %v557, %v1010
        %vm1023 = vcmask 523264
        %v1024 = vsel %vm1023, %v1022, %v1020
        %v1025 = vpack.c.bf16 %v1024, %v1024
        %v1026 = vld [vmem:[%s9] sm:$0xf]
        %v1027 = vld [vmem:[%s9 + $0x4] sm:$0xf]
        %v1028 = vld [vmem:[%s9 + $0x8] sm:$0xf]
        %v1029 = vld [vmem:[%s9 + $0xc] sm:$0xf]
        %v1030 = vld [vmem:[%s9 + $0x10] sm:$0xf]
        %v1031 = vld [vmem:[%s9 + $0x14] sm:$0xf]
        %v1032 = vld [vmem:[%s9 + $0x18] sm:$0xf]
        %v1033 = vld [vmem:[%s9 + $0x1c] sm:$0xf]
        %v1034 = vld [vmem:[%s9 + $0x20] sm:$0xf]
        %v1035 = vld [vmem:[%s9 + $0x24] sm:$0xf]
        %v1036 = vld [vmem:[%s9 + $0x28] sm:$0xf]
        %v1037 = vld [vmem:[%s9 + $0x2c] sm:$0xf]
        %v1038 = vld [vmem:[%s10] sm:$0x1]
        %v1040 = vlaneseq
        %v1041 = vshrl.u32 %v1040, 7
        %v1042 = vsub.s32 0, %v1041
        %v1043 = vrot.slane %v1038, %v1042
        %v1057 = vunpack.c.l.b16 %v1026
        %v1058 = vunpack.c.l.b16 %v1027
        %v1059 = vunpack.c.l.b16 %v1028
        %v1060 = vunpack.c.l.b16 %v1029
        %v1061 = vunpack.c.l.b16 %v1030
        %v1062 = vunpack.c.l.b16 %v1031
        %v1063 = vunpack.c.l.b16 %v1032
        %v1064 = vunpack.c.l.b16 %v1033
        %v1065 = vunpack.c.l.b16 %v1034
        %v1066 = vunpack.c.l.b16 %v1035
        %v1067 = vunpack.c.l.b16 %v1036
        %v1068 = vunpack.c.l.b16 %v1037
        %v1069 = vpack.c.b16 %v1058, %v1057
        %v1070 = vpack.c.b16 %v1060, %v1059
        %v1071 = vpack.c.b16 %v1062, %v1061
        %v1072 = vpack.c.b16 %v1064, %v1063
        %v1073 = vpack.c.b16 %v1066, %v1065
        %v1074 = vpack.c.b16 %v1068, %v1067
        %vm1081 = vcmask 785408
        %v1083 = vsel %vm1081, %v1025, 0
        %1085 = vmatprep.subr.bf16.mxu0 0
        %1086 = vmatpush1.bf16.msra.mxu0 0
        %1087 = vmatprep.subr.bf16.mxu0 0
        %1088 = vmatpush1.bf16.msra.mxu0 0
        %1089 = vmatprep.subr.bf16.mxu0 0
        %1090 = vmatpush1.bf16.msra.mxu0 %v1074
        %1091 = vmatprep.subr.bf16.mxu0 0
        %1092 = vmatpush1.bf16.msra.mxu0 %v1073
        %1093 = vmatprep.subr.bf16.mxu0 0
        %1094 = vmatpush1.bf16.msra.mxu0 %v1072
        %1095 = vmatprep.subr.bf16.mxu0 0
        %1096 = vmatpush1.bf16.msra.mxu0 %v1071
        %1097 = vmatprep.subr.bf16.mxu0 0
        %1098 = vmatpush1.bf16.msra.mxu0 %v1070
        %1099 = vmatprep.subr.bf16.mxu0 0
        %1100 = vmatpush1.bf16.msra.mxu0 %v1069
        %1101 = vmatprep.subr.bf16.mxu0 0
        %1102 = vmatpush2.bf16.msra.mxu0 0
        %1103 = vmatprep.subr.bf16.mxu0 0
        %1104 = vmatpush2.bf16.msra.mxu0 0
        %1105 = vmatprep.subr.bf16.mxu0 0
        %1106 = vmatpush2.bf16.msra.mxu0 0
        %1107 = vmatprep.subr.bf16.mxu0 0
        %1108 = vmatpush2.bf16.msra.mxu0 0
        %1109 = vmatprep.subr.bf16.mxu0 0
        %1110 = vmatpush2.bf16.msra.mxu0 0
        %1111 = vmatprep.subr.bf16.mxu0 0
        %1112 = vmatpush2.bf16.msra.mxu0 0
        %1113 = vmatprep.subr.bf16.mxu0 0
        %1114 = vmatpush2.bf16.msra.mxu0 0
        %1115 = vmatprep.subr.bf16.mxu0 0
        %1116 = vmatpush2.bf16.msra.mxu0 0
        %1117 = vmatprep.mubr.bf16.mxu0 0
        %1118 = vmatmul.mubr.bf16.gmra.mxu0 %v1083
        %v1119 = vpop.f32.mrf.mxu0
        %v1120 = vadd.f32 %v1043, %v1119
        %v1121 = vpop.f32.mrf.mxu0
        %v1122 = vpop.f32.mrf.mxu0
        %v1123 = vpop.f32.mrf.mxu0
        %1124 = vdwg.mxu0
        %v1125 = vxor.u32 %v1120, 2147483648
        %v1126 = vmul.f32 %v1125, 1.442695
        %v1127 = vpow.pop %v1126
        %v1128 = vadd.f32 %v1127, 1.0
        %v1129 = vrcp.pop %v1128
        %v1130 = vmul.f32 1.0, %v1129
        %v1131 = vtanh.pop %v1120
        %1133 = vrot.lane.b32.xlu0 %v559, 32
        %v1134 = vpop.permute.xlu0 %1133
        %v1136 = vmul.f32 %v1130, %v1134
        %1138 = vrot.lane.b32.xlu0 %v1131, 32
        %v1139 = vpop.permute.xlu0 %1138
        %v1141 = vmul.f32 %v1130, %v1139
        %1143 = vrot.lane.b32.xlu0 %v1141, 32
        %v1144 = vpop.permute.xlu0 %1143
        %v1146 = vadd.f32 %v1136, %v1144
        %v1147 = vtanh.pop %v1146
        %1149 = vrot.lane.b32.xlu0 %v1147, 32
        %v1150 = vpop.permute.xlu0 %1149
        %v1152 = vmul.f32 %v1130, %v1150
        %1154 = vrot.lane.b32.xlu0 %v1152, 64
        %v1155 = vpop.permute.xlu0 %1154
        %1157 = vst.msk [vmem:[#allocation2] sm:$0xf] %vm979, %v1155
        %1159 = vrot.lane.b32.xlu0 %v1146, 96
        %v1160 = vpop.permute.xlu0 %1159
        %1162 = vst.msk [vmem:[#allocation3] sm:$0xf] %vm979, %v1160
        %v1163 = vpack.c.bf16 %v1152, %v1152
        %v1164 = vld [vmem:[%s11] sm:$0xf]
        %v1165 = vld [vmem:[%s11 + $0x4] sm:$0xf]
        %v1166 = vld [vmem:[%s11 + $0x8] sm:$0xf]
        %v1167 = vld [vmem:[%s11 + $0xc] sm:$0xf]
        %v1168 = vld [vmem:[%s12] sm:$0x1]
        %v1170 = vlaneseq
        %v1171 = vshrl.u32 %v1170, 7
        %v1172 = vsub.s32 0, %v1171
        %v1173 = vrot.slane %v1168, %v1172
        %1176 = vrot.lane.b32.xlu0 %v1163, 64
        %v1177 = vpop.permute.xlu0 %1176
        %v1182 = vunpack.c.l.b16 %v1164
        %v1183 = vunpack.c.l.b16 %v1165
        %v1184 = vunpack.c.l.b16 %v1166
        %v1185 = vunpack.c.l.b16 %v1167
        %v1186 = vpack.c.b16 %v1183, %v1182
        %v1187 = vpack.c.b16 %v1185, %v1184
        %v1191 = vsel %vm592, %v1177, 0
        %1193 = vmatprep.subr.bf16.mxu0 0
        %1194 = vmatpush1.bf16.msra.mxu0 0
        %1195 = vmatprep.subr.bf16.mxu0 0
        %1196 = vmatpush1.bf16.msra.mxu0 0
        %1197 = vmatprep.subr.bf16.mxu0 0
        %1198 = vmatpush1.bf16.msra.mxu0 0
        %1199 = vmatprep.subr.bf16.mxu0 0
        %1200 = vmatpush1.bf16.msra.mxu0 0
        %1201 = vmatprep.subr.bf16.mxu0 0
        %1202 = vmatpush1.bf16.msra.mxu0 0
        %1203 = vmatprep.subr.bf16.mxu0 0
        %1204 = vmatpush1.bf16.msra.mxu0 0
        %1205 = vmatprep.subr.bf16.mxu0 0
        %1206 = vmatpush1.bf16.msra.mxu0 %v1187
        %1207 = vmatprep.subr.bf16.mxu0 0
        %1208 = vmatpush1.bf16.msra.mxu0 %v1186
        %1209 = vmatprep.subr.bf16.mxu0 0
        %1210 = vmatpush2.bf16.msra.mxu0 0
        %1211 = vmatprep.subr.bf16.mxu0 0
        %1212 = vmatpush2.bf16.msra.mxu0 0
        %1213 = vmatprep.subr.bf16.mxu0 0
        %1214 = vmatpush2.bf16.msra.mxu0 0
        %1215 = vmatprep.subr.bf16.mxu0 0
        %1216 = vmatpush2.bf16.msra.mxu0 0
        %1217 = vmatprep.subr.bf16.mxu0 0
        %1218 = vmatpush2.bf16.msra.mxu0 0
        %1219 = vmatprep.subr.bf16.mxu0 0
        %1220 = vmatpush2.bf16.msra.mxu0 0
        %1221 = vmatprep.subr.bf16.mxu0 0
        %1222 = vmatpush2.bf16.msra.mxu0 0
        %1223 = vmatprep.subr.bf16.mxu0 0
        %1224 = vmatpush2.bf16.msra.mxu0 0
        %1225 = vmatprep.mubr.bf16.mxu0 0
        %1226 = vmatmul.mubr.bf16.gmra.mxu0 %v1191
        %v1227 = vpop.f32.mrf.mxu0
        %v1228 = vadd.f32 %v1173, %v1227
        %v1229 = vpop.f32.mrf.mxu0
        %v1230 = vpop.f32.mrf.mxu0
        %v1231 = vpop.f32.mrf.mxu0
        %1232 = vdwg.mxu0
        %vm1233 = vcmask 1043456
        %v1234 = vsel %vm1233, %v1228, -inf
        %1235 = vmax.xlane.f32.xlu0 %v1234
        %v1236 = vpop.xlane.xlu0 %1235
        %v1237 = vsub.f32 %v1228, %v1236
        %v1238 = vmul.f32 %v1237, 1.442695
        %v1239 = vpow.pop %v1238
        %v1240 = vsel %vm1233, %v1239, 0.0
        %1241 = vadd.xlane.f32.xlu0 %v1240
        %v1242 = vpop.xlane.xlu0 %1241
        %v1243 = vlog2.pop %v1242
        %v1244 = vmul.f32 %v1243, 0.6931472
        %v1245 = vsub.f32 %v1237, %v1244
        %1246 = vst [vmem:[%s431] sm:$0xf] %v1245
        %s1247 = sand.u32 %s313, 1
        %s1248 = scalar_lea.sflag [#allocation6], %s1247
        %s1249 = sand.u32 %s313, 1
        %s1250 = smul.addr %s1249, 4
        %s1251 = scalar_lea.vmem [#allocation5], %s1250
        // Predicated region
        $region77: #{_lambda_.3} parent=71 // pred_check
          %p1252 = pneg %p323
        $region78: #{_lambda_.3} parent=71 // pred_check_branch
          %1254 = sbr.rel (%p1252) target = $region80
        $region79: #{_lambda_.3} parent=71 // pred_region
          %s1256 = ssub.s32 64, 64
          %1257 = vsyncadd %s1248, %s1256
          %s1258 = smul.addr %s27, 64
          %s1259 = scalar_lea.hbm %s13, %s1258
          %s1261 = sshll.u32 %s1251, 4
          %s1262 = int_to_ptr.vmem [resolvable:$true] %s1261
          %1264 = dma.vmem_to_hbm [thread:$0]  %s1262, 64, %s1259, %s1248
        $region80: #{_lambda_.3} parent=71 // pred_fallthru
          _
      $region72: #{_lambda_.3} parent=5 // pred_fallthru
        _
      %p1265 = scmp.le.s32.totalorder 2, %s22
      // Predicated region
      $region81: #{_lambda_.3} parent=5 // pred_check
        %p1266 = pneg %p1265
      $region82: #{_lambda_.3} parent=5 // pred_check_branch
        %1268 = sbr.rel (%p1266) target = $region84
      $region83: #{_lambda_.3} parent=5 // pred_region
        %s1269 = ssub.s32 %s22, 2
        // Predicated region
        $region85: #{_lambda_.3} parent=83 // pred_check
          %p1270 = pneg %p329
        $region86: #{_lambda_.3} parent=83 // pred_check_branch
          %1272 = sbr.rel (%p1270) target = $region88
        $region87: #{_lambda_.3} parent=83 // pred_region
          %s1273 = sand.u32 %s314, 1
          %s1274 = scalar_lea.sflag [#allocation6], %s1273
          %s1275 = sand.u32 %s314, 1
          %s1276 = smul.addr %s1275, 4
          %s1277 = scalar_lea.vmem [#allocation5], %s1276
          %1278 = dma.done %s1274, 64
        $region88: #{_lambda_.3} parent=83 // pred_fallthru
          _
      $region84: #{_lambda_.3} parent=5 // pred_fallthru
        _
    $region6: #{_lambda_.3} parent=1 // loop_footer
      %s26 = sadd.s32 1, %s22
    $region7: #{_lambda_.3} parent=1 // loop_footer_branch
      %21 = sbr.rel target = $region3
    $region8: #{_lambda_.3} parent=1 // loop_exit
      _
    %1279 = vsyncpa [#allocation6], 1
    %s1280 = scalar_lea.sflag [#allocation6], 1
    %1281 = vsyncpa %s1280, 1

</llo_original>
